<compile_context>
chip_gen: v7x
topology: tpu7x:2x2x1
jax: 0.10.0
libtpu: 0.0.40
codegen_flags: <defaults>
</compile_context>

<pallas_src>
import jax
import jax.numpy as jnp
from jax import lax
from jax.experimental import pallas as pl
from jax.experimental.pallas import tpu as pltpu


def _residual_block_kernel(xp_ref, w1_ref, b1_ref, w2_ref, b2_ref, o_ref):
    # xp_ref : (1, H+2, W+2, Cp)  zero-padded input block (one batch element)
    # w*_ref : (9*Cp, Cp)         im2col conv weights (MXU compute dtype)
    # b*_ref : (1, Cp)            conv biases (f32)
    # o_ref  : (1, H, W, Cp)      output block
    _, Hp, Wp, Cp = xp_ref.shape
    H, W = Hp - 2, Wp - 2
    M = H * W
    cdt = w1_ref.dtype                       # MXU input dtype (f32 or bf16)

    def im2col(tap):
        # tap(dy, dx) -> (H, W, Cp) shifted window, already in compute dtype.
        cols = [tap(dy, dx).reshape(M, Cp) for dy in range(3) for dx in range(3)]
        return jnp.concatenate(cols, axis=-1)           # (M, 9*Cp), 128-aligned

    # ---- conv1 + bias + ReLU: single K = 9*Cp MXU matmul -------------------
    p1 = im2col(lambda dy, dx: xp_ref[0, dy:dy + H, dx:dx + W, :].astype(cdt))
    a1 = jnp.dot(p1, w1_ref[...], preferred_element_type=jnp.float32)
    h = jnp.maximum(a1 + b1_ref[...], 0.0)              # (M, Cp) f32

    # ---- build conv2 halo functionally (no padded scratch round-trip) ------
    hc = h.astype(cdt).reshape(H, W, Cp)
    zrow = jnp.zeros((1, W, Cp), cdt)
    hp = jnp.concatenate([zrow, hc, zrow], axis=0)      # (H+2, W,   Cp)
    zcol = jnp.zeros((Hp, 1, Cp), cdt)
    hp = jnp.concatenate([zcol, hp, zcol], axis=1)      # (H+2, W+2, Cp)

    # ---- conv2 + bias: single K = 9*Cp MXU matmul --------------------------
    p2 = im2col(lambda dy, dx: hp[dy:dy + H, dx:dx + W, :])
    a2 = jnp.dot(p2, w2_ref[...], preferred_element_type=jnp.float32)

    # ---- residual add (Residual.forward: x = blocks(x); x += res), f32 -----
    res = xp_ref[0, 1:1 + H, 1:1 + W, :].reshape(M, Cp).astype(jnp.float32)
    out = a2 + b2_ref[...] + res
    o_ref[0] = out.reshape(H, W, Cp).astype(o_ref.dtype)


def residual_block(x_nchw, w1, b1, w2, b2, *, compute_dtype=jnp.float32):
    """x_nchw: (N, C, H, W) PyTorch layout; w*: (3,3,C,C) HWIO; b*: (C,)."""
    N, C, H, W = x_nchw.shape
    Cp = ((C + 127) // 128) * 128            # lane-dense channel padding

    # Layout glue: NCHW -> NHWC, +1 spatial halo, channels zero-padded to Cp.
    x_nhwc = jnp.transpose(x_nchw, (0, 2, 3, 1))
    xp = jnp.pad(x_nhwc, ((0, 0), (1, 1), (1, 1), (0, Cp - C)))

    def prep_w(w):                           # HWIO -> (9*Cp, Cp) im2col weights
        wp = jnp.pad(w, ((0, 0), (0, 0), (0, Cp - C), (0, Cp - C)))
        return wp.reshape(9 * Cp, Cp).astype(compute_dtype)

    def prep_b(b):
        return jnp.pad(b.reshape(1, C), ((0, 0), (0, Cp - C))).astype(jnp.float32)

    out_p = pl.pallas_call(
        _residual_block_kernel,
        out_shape=jax.ShapeDtypeStruct((N, H, W, Cp), x_nchw.dtype),
        grid=(N,),                            # one batch element per grid step
        in_specs=[
            pl.BlockSpec((1, H + 2, W + 2, Cp), lambda n: (n, 0, 0, 0)),
            pl.BlockSpec((9 * Cp, Cp), lambda n: (0, 0)),   # weights stay resident
            pl.BlockSpec((1, Cp), lambda n: (0, 0)),
            pl.BlockSpec((9 * Cp, Cp), lambda n: (0, 0)),
            pl.BlockSpec((1, Cp), lambda n: (0, 0)),
        ],
        out_specs=pl.BlockSpec((1, H, W, Cp), lambda n: (n, 0, 0, 0)),
        compiler_params=pltpu.CompilerParams(
            dimension_semantics=("parallel",),  # megacore: split batch over TCs
        ),
    )(xp, prep_w(w1), prep_b(b1), prep_w(w2), prep_b(b2))

    # Glue back: drop channel padding, NHWC -> NCHW.
    return jnp.transpose(out_p[..., :C], (0, 3, 1, 2))


# ---------------------- pure-JAX reference for validation ----------------------
def _ref_conv_nhwc(x, w, b):
    y = lax.conv_general_dilated(x, w, window_strides=(1, 1), padding="SAME",
                                 dimension_numbers=("NHWC", "HWIO", "NHWC"))
    return y + b.reshape(1, 1, 1, -1)


def residual_block_reference(x_nchw, w1, b1, w2, b2):
    x = jnp.transpose(x_nchw, (0, 2, 3, 1))
    h = jnp.maximum(_ref_conv_nhwc(x, w1, b1), 0.0)
    y = _ref_conv_nhwc(h, w2, b2)
    return jnp.transpose(y + x, (0, 3, 1, 2))


if __name__ == "__main__":
    # Deterministic synthetic params / inputs (no checkpoint loading).
    N, C, H, W = 2, 4, 16, 16
    key = jax.random.PRNGKey(0)
    k1, k2, k3, k4, k5 = jax.random.split(key, 5)
    w1 = 0.1 * jax.random.normal(k1, (3, 3, C, C), jnp.float32)   # HWIO
    b1 = 0.1 * jax.random.normal(k2, (C,), jnp.float32)
    w2 = 0.1 * jax.random.normal(k3, (3, 3, C, C), jnp.float32)   # HWIO
    b2 = 0.1 * jax.random.normal(k4, (C,), jnp.float32)
    x = jax.random.normal(k5, (N, C, H, W), jnp.float32)          # NCHW input

    fn = jax.jit(residual_block, static_argnames=("compute_dtype",))
    ref = jax.block_until_ready(residual_block_reference(x, w1, b1, w2, b2))

    # f32 MXU path (default; v5e-friendly) — strict check vs reference.
    out_f32 = jax.block_until_ready(fn(x, w1, b1, w2, b2, compute_dtype=jnp.float32))
    assert out_f32.shape == x.shape and out_f32.dtype == x.dtype
    assert jnp.allclose(out_f32, ref, rtol=1e-3, atol=1e-3), "f32 mismatch vs reference"

    # bf16 MXU-input path (v6e/v7x recommendation); f32 accumulation/elementwise.
    out_bf16 = jax.block_until_ready(fn(x, w1, b1, w2, b2, compute_dtype=jnp.bfloat16))
    assert out_bf16.shape == x.shape and out_bf16.dtype == x.dtype
    assert jnp.allclose(out_bf16, ref, rtol=1e-1, atol=1e-1), "bf16 mismatch vs reference"

    print("KERNEL_OK")
</pallas_src>

<mosaic_0001>
module attributes {stable_mosaic.version = 11 : i64} {
  func.func @_residual_block_kernel(%arg0: i32, %arg1: memref<1x18x18x128xf32, #tpu.memory_space<vmem>>, %arg2: memref<1152x128xf32, #tpu.memory_space<vmem>>, %arg3: memref<1x128xf32, #tpu.memory_space<vmem>>, %arg4: memref<1152x128xf32, #tpu.memory_space<vmem>>, %arg5: memref<1x128xf32, #tpu.memory_space<vmem>>, %arg6: memref<1x16x16x128xf32, #tpu.memory_space<vmem>>) attributes {dimension_semantics = [#tpu.dimension_semantics<parallel>], iteration_bounds = array<i64: 2>, scalar_prefetch = 0 : i64, scratch_operands = 0 : i64, tpu.core_type = #tpu.core_type<tc>, window_params = [{transform_indices = @transform_0, window_bounds = array<i64: 1, 18, 18, 128>}, {pipeline_mode = #tpu.pipeline_mode<synchronous>, transform_indices = @transform_1, window_bounds = array<i64: 1152, 128>}, {pipeline_mode = #tpu.pipeline_mode<synchronous>, transform_indices = @transform_2, window_bounds = array<i64: 1, 128>}, {pipeline_mode = #tpu.pipeline_mode<synchronous>, transform_indices = @transform_3, window_bounds = array<i64: 1152, 128>}, {pipeline_mode = #tpu.pipeline_mode<synchronous>, transform_indices = @transform_4, window_bounds = array<i64: 1, 128>}, {transform_indices = @transform_5, window_bounds = array<i64: 1, 16, 16, 128>}]} {
    %c0 = arith.constant 0 : index
    %c0_0 = arith.constant 0 : index
    %c0_1 = arith.constant 0 : index
    %c0_2 = arith.constant 0 : index
    %0 = vector.load %arg1[%c0, %c0_0, %c0_1, %c0_2] : memref<1x18x18x128xf32, #tpu.memory_space<vmem>>, vector<1x16x16x128xf32>
    %1 = vector.shape_cast %0 : vector<1x16x16x128xf32> to vector<16x16x128xf32>
    %2 = vector.shape_cast %1 : vector<16x16x128xf32> to vector<256x128xf32>
    %c0_3 = arith.constant 0 : index
    %c0_4 = arith.constant 0 : index
    %c1 = arith.constant 1 : index
    %c0_5 = arith.constant 0 : index
    %3 = vector.load %arg1[%c0_3, %c0_4, %c1, %c0_5] : memref<1x18x18x128xf32, #tpu.memory_space<vmem>>, vector<1x16x16x128xf32>
    %4 = vector.shape_cast %3 : vector<1x16x16x128xf32> to vector<16x16x128xf32>
    %5 = vector.shape_cast %4 : vector<16x16x128xf32> to vector<256x128xf32>
    %c0_6 = arith.constant 0 : index
    %c0_7 = arith.constant 0 : index
    %c2 = arith.constant 2 : index
    %c0_8 = arith.constant 0 : index
    %6 = vector.load %arg1[%c0_6, %c0_7, %c2, %c0_8] : memref<1x18x18x128xf32, #tpu.memory_space<vmem>>, vector<1x16x16x128xf32>
    %7 = vector.shape_cast %6 : vector<1x16x16x128xf32> to vector<16x16x128xf32>
    %8 = vector.shape_cast %7 : vector<16x16x128xf32> to vector<256x128xf32>
    %c0_9 = arith.constant 0 : index
    %c1_10 = arith.constant 1 : index
    %c0_11 = arith.constant 0 : index
    %c0_12 = arith.constant 0 : index
    %9 = vector.load %arg1[%c0_9, %c1_10, %c0_11, %c0_12] : memref<1x18x18x128xf32, #tpu.memory_space<vmem>>, vector<1x16x16x128xf32>
    %10 = vector.shape_cast %9 : vector<1x16x16x128xf32> to vector<16x16x128xf32>
    %11 = vector.shape_cast %10 : vector<16x16x128xf32> to vector<256x128xf32>
    %c0_13 = arith.constant 0 : index
    %c1_14 = arith.constant 1 : index
    %c1_15 = arith.constant 1 : index
    %c0_16 = arith.constant 0 : index
    %12 = vector.load %arg1[%c0_13, %c1_14, %c1_15, %c0_16] : memref<1x18x18x128xf32, #tpu.memory_space<vmem>>, vector<1x16x16x128xf32>
    %13 = vector.shape_cast %12 : vector<1x16x16x128xf32> to vector<16x16x128xf32>
    %14 = vector.shape_cast %13 : vector<16x16x128xf32> to vector<256x128xf32>
    %c0_17 = arith.constant 0 : index
    %c1_18 = arith.constant 1 : index
    %c2_19 = arith.constant 2 : index
    %c0_20 = arith.constant 0 : index
    %15 = vector.load %arg1[%c0_17, %c1_18, %c2_19, %c0_20] : memref<1x18x18x128xf32, #tpu.memory_space<vmem>>, vector<1x16x16x128xf32>
    %16 = vector.shape_cast %15 : vector<1x16x16x128xf32> to vector<16x16x128xf32>
    %17 = vector.shape_cast %16 : vector<16x16x128xf32> to vector<256x128xf32>
    %c0_21 = arith.constant 0 : index
    %c2_22 = arith.constant 2 : index
    %c0_23 = arith.constant 0 : index
    %c0_24 = arith.constant 0 : index
    %18 = vector.load %arg1[%c0_21, %c2_22, %c0_23, %c0_24] : memref<1x18x18x128xf32, #tpu.memory_space<vmem>>, vector<1x16x16x128xf32>
    %19 = vector.shape_cast %18 : vector<1x16x16x128xf32> to vector<16x16x128xf32>
    %20 = vector.shape_cast %19 : vector<16x16x128xf32> to vector<256x128xf32>
    %c0_25 = arith.constant 0 : index
    %c2_26 = arith.constant 2 : index
    %c1_27 = arith.constant 1 : index
    %c0_28 = arith.constant 0 : index
    %21 = vector.load %arg1[%c0_25, %c2_26, %c1_27, %c0_28] : memref<1x18x18x128xf32, #tpu.memory_space<vmem>>, vector<1x16x16x128xf32>
    %22 = vector.shape_cast %21 : vector<1x16x16x128xf32> to vector<16x16x128xf32>
    %23 = vector.shape_cast %22 : vector<16x16x128xf32> to vector<256x128xf32>
    %c0_29 = arith.constant 0 : index
    %c2_30 = arith.constant 2 : index
    %c2_31 = arith.constant 2 : index
    %c0_32 = arith.constant 0 : index
    %24 = vector.load %arg1[%c0_29, %c2_30, %c2_31, %c0_32] : memref<1x18x18x128xf32, #tpu.memory_space<vmem>>, vector<1x16x16x128xf32>
    %25 = vector.shape_cast %24 : vector<1x16x16x128xf32> to vector<16x16x128xf32>
    %26 = vector.shape_cast %25 : vector<16x16x128xf32> to vector<256x128xf32>
    %27 = tpu.concatenate %2, %5, %8, %11, %14, %17, %20, %23, %26 in 1 : vector<256x128xf32>, vector<256x128xf32>, vector<256x128xf32>, vector<256x128xf32>, vector<256x128xf32>, vector<256x128xf32>, vector<256x128xf32>, vector<256x128xf32>, vector<256x128xf32> -> vector<256x1152xf32>
    %c0_33 = arith.constant 0 : index
    %c0_34 = arith.constant 0 : index
    %28 = vector.load %arg2[%c0_33, %c0_34] : memref<1152x128xf32, #tpu.memory_space<vmem>>, vector<1152x128xf32>
    %cst = arith.constant dense<0.000000e+00> : vector<256x128xf32>
    %29 = tpu.matmul %27, %28, %cst {dimension_numbers = #tpu.dot_dimension_numbers<[1], [0], [0], [1], [0, 0, 1, 1], [], []>} : vector<256x1152xf32>, vector<1152x128xf32>, vector<256x128xf32> -> vector<256x128xf32>
    %c0_35 = arith.constant 0 : index
    %c0_36 = arith.constant 0 : index
    %30 = vector.load %arg3[%c0_35, %c0_36] : memref<1x128xf32, #tpu.memory_space<vmem>>, vector<1x128xf32>
    %31 = vector.broadcast %30 : vector<1x128xf32> to vector<256x128xf32>
    %32 = arith.addf %29, %31 : vector<256x128xf32>
    %cst_37 = arith.constant 0.000000e+00 : f32
    %33 = vector.broadcast %cst_37 : f32 to vector<256x128xf32>
    %34 = arith.maximumf %32, %33 : vector<256x128xf32>
    %35 = vector.shape_cast %34 : vector<256x128xf32> to vector<16x16x128xf32>
    %cst_38 = arith.constant 0.000000e+00 : f32
    %36 = vector.broadcast %cst_38 : f32 to vector<1x16x128xf32>
    %37 = tpu.concatenate %36, %35, %36 in 0 : vector<1x16x128xf32>, vector<16x16x128xf32>, vector<1x16x128xf32> -> vector<18x16x128xf32>
    %cst_39 = arith.constant 0.000000e+00 : f32
    %38 = vector.broadcast %cst_39 : f32 to vector<18x1x128xf32>
    %39 = tpu.concatenate %38, %37, %38 in 1 : vector<18x1x128xf32>, vector<18x16x128xf32>, vector<18x1x128xf32> -> vector<18x18x128xf32>
    %40 = vector.extract_strided_slice %39 {offsets = [0, 0, 0], sizes = [16, 16, 128], strides = [1, 1, 1]} : vector<18x18x128xf32> to vector<16x16x128xf32>
    %41 = vector.shape_cast %40 : vector<16x16x128xf32> to vector<256x128xf32>
    %42 = vector.extract_strided_slice %39 {offsets = [0, 1, 0], sizes = [16, 16, 128], strides = [1, 1, 1]} : vector<18x18x128xf32> to vector<16x16x128xf32>
    %43 = vector.shape_cast %42 : vector<16x16x128xf32> to vector<256x128xf32>
    %44 = vector.extract_strided_slice %39 {offsets = [0, 2, 0], sizes = [16, 16, 128], strides = [1, 1, 1]} : vector<18x18x128xf32> to vector<16x16x128xf32>
    %45 = vector.shape_cast %44 : vector<16x16x128xf32> to vector<256x128xf32>
    %46 = vector.extract_strided_slice %39 {offsets = [1, 0, 0], sizes = [16, 16, 128], strides = [1, 1, 1]} : vector<18x18x128xf32> to vector<16x16x128xf32>
    %47 = vector.shape_cast %46 : vector<16x16x128xf32> to vector<256x128xf32>
    %48 = vector.extract_strided_slice %39 {offsets = [1, 1, 0], sizes = [16, 16, 128], strides = [1, 1, 1]} : vector<18x18x128xf32> to vector<16x16x128xf32>
    %49 = vector.shape_cast %48 : vector<16x16x128xf32> to vector<256x128xf32>
    %50 = vector.extract_strided_slice %39 {offsets = [1, 2, 0], sizes = [16, 16, 128], strides = [1, 1, 1]} : vector<18x18x128xf32> to vector<16x16x128xf32>
    %51 = vector.shape_cast %50 : vector<16x16x128xf32> to vector<256x128xf32>
    %52 = vector.extract_strided_slice %39 {offsets = [2, 0, 0], sizes = [16, 16, 128], strides = [1, 1, 1]} : vector<18x18x128xf32> to vector<16x16x128xf32>
    %53 = vector.shape_cast %52 : vector<16x16x128xf32> to vector<256x128xf32>
    %54 = vector.extract_strided_slice %39 {offsets = [2, 1, 0], sizes = [16, 16, 128], strides = [1, 1, 1]} : vector<18x18x128xf32> to vector<16x16x128xf32>
    %55 = vector.shape_cast %54 : vector<16x16x128xf32> to vector<256x128xf32>
    %56 = vector.extract_strided_slice %39 {offsets = [2, 2, 0], sizes = [16, 16, 128], strides = [1, 1, 1]} : vector<18x18x128xf32> to vector<16x16x128xf32>
    %57 = vector.shape_cast %56 : vector<16x16x128xf32> to vector<256x128xf32>
    %58 = tpu.concatenate %41, %43, %45, %47, %49, %51, %53, %55, %57 in 1 : vector<256x128xf32>, vector<256x128xf32>, vector<256x128xf32>, vector<256x128xf32>, vector<256x128xf32>, vector<256x128xf32>, vector<256x128xf32>, vector<256x128xf32>, vector<256x128xf32> -> vector<256x1152xf32>
    %c0_40 = arith.constant 0 : index
    %c0_41 = arith.constant 0 : index
    %59 = vector.load %arg4[%c0_40, %c0_41] : memref<1152x128xf32, #tpu.memory_space<vmem>>, vector<1152x128xf32>
    %cst_42 = arith.constant dense<0.000000e+00> : vector<256x128xf32>
    %60 = tpu.matmul %58, %59, %cst_42 {dimension_numbers = #tpu.dot_dimension_numbers<[1], [0], [0], [1], [0, 0, 1, 1], [], []>} : vector<256x1152xf32>, vector<1152x128xf32>, vector<256x128xf32> -> vector<256x128xf32>
    %c0_43 = arith.constant 0 : index
    %c1_44 = arith.constant 1 : index
    %c1_45 = arith.constant 1 : index
    %c0_46 = arith.constant 0 : index
    %61 = vector.load %arg1[%c0_43, %c1_44, %c1_45, %c0_46] : memref<1x18x18x128xf32, #tpu.memory_space<vmem>>, vector<1x16x16x128xf32>
    %62 = vector.shape_cast %61 : vector<1x16x16x128xf32> to vector<16x16x128xf32>
    %63 = vector.shape_cast %62 : vector<16x16x128xf32> to vector<256x128xf32>
    %c0_47 = arith.constant 0 : index
    %c0_48 = arith.constant 0 : index
    %64 = vector.load %arg5[%c0_47, %c0_48] : memref<1x128xf32, #tpu.memory_space<vmem>>, vector<1x128xf32>
    %65 = vector.broadcast %64 : vector<1x128xf32> to vector<256x128xf32>
    %66 = arith.addf %60, %65 : vector<256x128xf32>
    %67 = arith.addf %66, %63 : vector<256x128xf32>
    %68 = vector.shape_cast %67 : vector<256x128xf32> to vector<16x16x128xf32>
    %c0_49 = arith.constant 0 : index
    %c0_50 = arith.constant 0 : index
    %c0_51 = arith.constant 0 : index
    %c0_52 = arith.constant 0 : index
    %69 = vector.load %arg6[%c0_49, %c0_50, %c0_51, %c0_52] : memref<1x16x16x128xf32, #tpu.memory_space<vmem>>, vector<1x16x16x128xf32>
    %70 = vector.shape_cast %69 : vector<1x16x16x128xf32> to vector<16x16x128xf32>
    %71 = vector.shape_cast %68 : vector<16x16x128xf32> to vector<1x16x16x128xf32>
    tpu.vector_store %arg6[%c0_49, %c0_50, %c0_51, %c0_52], %71 {strides = array<i32>} : memref<1x16x16x128xf32, #tpu.memory_space<vmem>>, vector<1x16x16x128xf32>,
    return
  }
  func.func @transform_0(%arg0: i32) -> (i32, i32, i32, i32) {
    %c0_i32 = arith.constant 0 : i32
    %c0_i32_0 = arith.constant 0 : i32
    %c0_i32_1 = arith.constant 0 : i32
    %c0_i32_2 = arith.constant 0 : i32
    return %arg0, %c0_i32, %c0_i32_0, %c0_i32_1 : i32, i32, i32, i32
  }
  func.func @transform_1(%arg0: i32) -> (i32, i32) {
    %c0_i32 = arith.constant 0 : i32
    %c0_i32_0 = arith.constant 0 : i32
    %c0_i32_1 = arith.constant 0 : i32
    return %c0_i32, %c0_i32_0 : i32, i32
  }
  func.func @transform_2(%arg0: i32) -> (i32, i32) {
    %c0_i32 = arith.constant 0 : i32
    %c0_i32_0 = arith.constant 0 : i32
    %c0_i32_1 = arith.constant 0 : i32
    return %c0_i32, %c0_i32_0 : i32, i32
  }
  func.func @transform_3(%arg0: i32) -> (i32, i32) {
    %c0_i32 = arith.constant 0 : i32
    %c0_i32_0 = arith.constant 0 : i32
    %c0_i32_1 = arith.constant 0 : i32
    return %c0_i32, %c0_i32_0 : i32, i32
  }
  func.func @transform_4(%arg0: i32) -> (i32, i32) {
    %c0_i32 = arith.constant 0 : i32
    %c0_i32_0 = arith.constant 0 : i32
    %c0_i32_1 = arith.constant 0 : i32
    return %c0_i32, %c0_i32_0 : i32, i32
  }
  func.func @transform_5(%arg0: i32) -> (i32, i32, i32, i32) {
    %c0_i32 = arith.constant 0 : i32
    %c0_i32_0 = arith.constant 0 : i32
    %c0_i32_1 = arith.constant 0 : i32
    %c0_i32_2 = arith.constant 0 : i32
    return %arg0, %c0_i32, %c0_i32_0, %c0_i32_1 : i32, i32, i32, i32
  }
}

</mosaic_0001>

<llo_original>
// kernel: residual_block.1
$region0: #{residual_block.1}
  #allocation0 [shape = 'u32[]', space=smem, size = 0x4, offset = 0x4, fixed_abs, tag = 'smem constant byte address 0x4 - core index']
  #allocation1 [shape = 'u32[144,128]{1,0:T(1,128)}', space=vmem, size = 0x12000, scoped, tag = 'internal scratch']
  %s0 = inlined_call_operand.vmem [shape: f32[2,18,18,128], index: 0, kind: input, shape index: {}]
  %s1 = inlined_call_operand.vmem [shape: f32[1152,128], index: 1, kind: input, shape index: {}]
  %s2 = inlined_call_operand.vmem [shape: f32[1,128], index: 2, kind: input, shape index: {}]
  %s3 = inlined_call_operand.vmem [shape: f32[1152,128], index: 3, kind: input, shape index: {}]
  %s4 = inlined_call_operand.vmem [shape: f32[1,128], index: 4, kind: input, shape index: {}]
  %s5 = inlined_call_operand.vmem [shape: f32[2,16,16,128], index: 5, kind: output, shape index: {}]
  %s6 = sld [smem:[#allocation0]]
  $region53: #{residual_block.1} parent=0
    _
  %s8 = ssub.s32 1, %s6
  %s9 = scalar_select 0, %s8, %s6
  loop: start=0, step=1, limit=4
  $region2: #{residual_block.1} parent=0 // loop_pre_header
    _
  $region3: #{residual_block.1} parent=0 // loop_header
    %s11 = sphi 0, %s15
    %p12 = scmp.ge.s32.totalorder %s11, 4
    %s21 = sphi 0, %s23
    %s24 = sphi 0, %s21
    %s25 = sphi 0, %s24
    %s41 = sphi 0, %s25
    %s45 = sphi 0, %s45
    %s47 = sphi 0, %s45
    %s48 = sphi 0, %s47
    %s62 = sphi 0, %s48
    %s66 = sphi 0, %s66
    %s68 = sphi 0, %s66
    %s69 = sphi 0, %s68
    %s83 = sphi 0, %s69
    %s87 = sphi 0, %s87
    %s89 = sphi 0, %s87
    %s90 = sphi 0, %s89
    %s104 = sphi 0, %s90
    %s108 = sphi 0, %s108
    %s110 = sphi 0, %s108
    %s111 = sphi 0, %s110
    %s125 = sphi 0, %s111
    %s131 = sphi 0, %s133
    %s134 = sphi 0, %s131
    %s135 = sphi 0, %s134
    %s151 = sphi 0, %s135
  $region4: #{residual_block.1} parent=0 // loop_header_branch
    %14 = sbr.rel (%p12) target = $region8
  $region5: #{residual_block.1} parent=0 // loop_body
    %s16 = ssub.s32 %s11, 1
    %s17 = ssub.s32 %s11, 2
    %s18 = sadd.s32 %s11, 1
    %s19 = ssub.s32 %s11, %s18
    %p20 = scmp.eq.s32.totalorder %s19, 0
    %s22 = sadd.s32 %s21, 1
    %s23 = scalar_select %p20, %s21, %s22
    %p26 = pneg %p20
    %p27 = scmp.eq.s32.totalorder %s11, 1
    %p28 = por %p26, %p27
    %p29 = scmp.ne.s32.totalorder %s21, %s24
    %p30 = scmp.eq.s32.totalorder %s11, 0
    %p31 = por %p29, %p30
    %p32 = scmp.ne.s32.totalorder %s21, %s24
    %p33 = scmp.eq.s32.totalorder %s16, 1
    %p34 = por %p32, %p33
    %p35 = scmp.ne.s32.totalorder %s24, %s25
    %p36 = scmp.eq.s32.totalorder %s16, 0
    %p37 = por %p35, %p36
    %p38 = scmp.ne.s32.totalorder %s24, %s25
    %p39 = scmp.eq.s32.totalorder %s17, 1
    %p40 = por %p38, %p39
    %p42 = scmp.ne.s32.totalorder %s25, %s41
    %p43 = scmp.eq.s32.totalorder %s17, 0
    %p44 = por %p42, %p43
    %s46 = sadd.s32 %s45, 1
    %p49 = scmp.eq.s32.totalorder %s11, 1
    %p50 = scmp.ne.s32.totalorder %s45, %s47
    %p51 = scmp.eq.s32.totalorder %s11, 0
    %p52 = por %p50, %p51
    %p53 = scmp.ne.s32.totalorder %s45, %s47
    %p54 = scmp.eq.s32.totalorder %s16, 1
    %p55 = por %p53, %p54
    %p56 = scmp.ne.s32.totalorder %s47, %s48
    %p57 = scmp.eq.s32.totalorder %s16, 0
    %p58 = por %p56, %p57
    %p59 = scmp.ne.s32.totalorder %s47, %s48
    %p60 = scmp.eq.s32.totalorder %s17, 1
    %p61 = por %p59, %p60
    %p63 = scmp.ne.s32.totalorder %s48, %s62
    %p64 = scmp.eq.s32.totalorder %s17, 0
    %p65 = por %p63, %p64
    %s67 = sadd.s32 %s66, 1
    %p70 = scmp.eq.s32.totalorder %s11, 1
    %p71 = scmp.ne.s32.totalorder %s66, %s68
    %p72 = scmp.eq.s32.totalorder %s11, 0
    %p73 = por %p71, %p72
    %p74 = scmp.ne.s32.totalorder %s66, %s68
    %p75 = scmp.eq.s32.totalorder %s16, 1
    %p76 = por %p74, %p75
    %p77 = scmp.ne.s32.totalorder %s68, %s69
    %p78 = scmp.eq.s32.totalorder %s16, 0
    %p79 = por %p77, %p78
    %p80 = scmp.ne.s32.totalorder %s68, %s69
    %p81 = scmp.eq.s32.totalorder %s17, 1
    %p82 = por %p80, %p81
    %p84 = scmp.ne.s32.totalorder %s69, %s83
    %p85 = scmp.eq.s32.totalorder %s17, 0
    %p86 = por %p84, %p85
    %s88 = sadd.s32 %s87, 1
    %p91 = scmp.eq.s32.totalorder %s11, 1
    %p92 = scmp.ne.s32.totalorder %s87, %s89
    %p93 = scmp.eq.s32.totalorder %s11, 0
    %p94 = por %p92, %p93
    %p95 = scmp.ne.s32.totalorder %s87, %s89
    %p96 = scmp.eq.s32.totalorder %s16, 1
    %p97 = por %p95, %p96
    %p98 = scmp.ne.s32.totalorder %s89, %s90
    %p99 = scmp.eq.s32.totalorder %s16, 0
    %p100 = por %p98, %p99
    %p101 = scmp.ne.s32.totalorder %s89, %s90
    %p102 = scmp.eq.s32.totalorder %s17, 1
    %p103 = por %p101, %p102
    %p105 = scmp.ne.s32.totalorder %s90, %s104
    %p106 = scmp.eq.s32.totalorder %s17, 0
    %p107 = por %p105, %p106
    %s109 = sadd.s32 %s108, 1
    %p112 = scmp.eq.s32.totalorder %s11, 1
    %p113 = scmp.ne.s32.totalorder %s108, %s110
    %p114 = scmp.eq.s32.totalorder %s11, 0
    %p115 = por %p113, %p114
    %p116 = scmp.ne.s32.totalorder %s108, %s110
    %p117 = scmp.eq.s32.totalorder %s16, 1
    %p118 = por %p116, %p117
    %p119 = scmp.ne.s32.totalorder %s110, %s111
    %p120 = scmp.eq.s32.totalorder %s16, 0
    %p121 = por %p119, %p120
    %p122 = scmp.ne.s32.totalorder %s110, %s111
    %p123 = scmp.eq.s32.totalorder %s17, 1
    %p124 = por %p122, %p123
    %p126 = scmp.ne.s32.totalorder %s111, %s125
    %p127 = scmp.eq.s32.totalorder %s17, 0
    %p128 = por %p126, %p127
    %s129 = ssub.s32 %s11, %s18
    %p130 = scmp.eq.s32.totalorder %s129, 0
    %s132 = sadd.s32 %s131, 1
    %s133 = scalar_select %p130, %s131, %s132
    %p136 = pneg %p130
    %p137 = scmp.eq.s32.totalorder %s11, 1
    %p138 = por %p136, %p137
    %p139 = scmp.ne.s32.totalorder %s131, %s134
    %p140 = scmp.eq.s32.totalorder %s11, 0
    %p141 = por %p139, %p140
    %p142 = scmp.ne.s32.totalorder %s131, %s134
    %p143 = scmp.eq.s32.totalorder %s16, 1
    %p144 = por %p142, %p143
    %p145 = scmp.ne.s32.totalorder %s134, %s135
    %p146 = scmp.eq.s32.totalorder %s16, 0
    %p147 = por %p145, %p146
    %p148 = scmp.ne.s32.totalorder %s134, %s135
    %p149 = scmp.eq.s32.totalorder %s17, 1
    %p150 = por %p148, %p149
    %p152 = scmp.ne.s32.totalorder %s135, %s151
    %p153 = scmp.eq.s32.totalorder %s17, 0
    %p154 = por %p152, %p153
    %p155 = scmp.le.s32.totalorder 1, %s11
    %p156 = scmp.lt.s32.totalorder %s11, 3
    %p157 = pnand %p155, %p156
    %p158 = pneg %p157
    // Predicated region
    $region9: #{residual_block.1} parent=5 // pred_check
      _
    $region10: #{residual_block.1} parent=5 // pred_check_branch
      %160 = sbr.rel (%p157) target = $region12
    $region11: #{residual_block.1} parent=5 // pred_region
      %s161 = ssub.s32 %s11, 1
      // Predicated region
      $region13: #{residual_block.1} parent=11 // pred_check
        %p162 = pneg %p58
      $region14: #{residual_block.1} parent=11 // pred_check_branch
        %164 = sbr.rel (%p162) target = $region16
      $region15: #{residual_block.1} parent=11 // pred_region
        _
      $region16: #{residual_block.1} parent=11 // pred_fallthru
        _
      // Predicated region
      $region17: #{residual_block.1} parent=11 // pred_check
        %p165 = pneg %p79
      $region18: #{residual_block.1} parent=11 // pred_check_branch
        %167 = sbr.rel (%p165) target = $region20
      $region19: #{residual_block.1} parent=11 // pred_region
        _
      $region20: #{residual_block.1} parent=11 // pred_fallthru
        _
      // Predicated region
      $region21: #{residual_block.1} parent=11 // pred_check
        %p168 = pneg %p100
      $region22: #{residual_block.1} parent=11 // pred_check_branch
        %170 = sbr.rel (%p168) target = $region24
      $region23: #{residual_block.1} parent=11 // pred_region
        _
      $region24: #{residual_block.1} parent=11 // pred_fallthru
        _
      // Predicated region
      $region25: #{residual_block.1} parent=11 // pred_check
        %p171 = pneg %p121
      $region26: #{residual_block.1} parent=11 // pred_check_branch
        %173 = sbr.rel (%p171) target = $region28
      $region27: #{residual_block.1} parent=11 // pred_region
        _
      $region28: #{residual_block.1} parent=11 // pred_fallthru
        _
    $region12: #{residual_block.1} parent=5 // pred_fallthru
      _
    %p174 = scmp.lt.s32.totalorder %s11, 2
    // Predicated region
    $region29: #{residual_block.1} parent=5 // pred_check
      %p175 = pneg %p174
    $region30: #{residual_block.1} parent=5 // pred_check_branch
      %177 = sbr.rel (%p175) target = $region32
    $region31: #{residual_block.1} parent=5 // pred_region
      // Predicated region
      $region33: #{residual_block.1} parent=31 // pred_check
        %p178 = pneg %p31
      $region34: #{residual_block.1} parent=31 // pred_check_branch
        %180 = sbr.rel (%p178) target = $region36
      $region35: #{residual_block.1} parent=31 // pred_region
        %p181 = scmp.lt.s32.totalorder %s11, 1
        %s182 = scalar_select %p181, %s11, 1
        %s183 = smul.addr %s182, 54
        %s184 = smul.addr %s183, 8
        %s185 = scalar_lea.vmem %s0, %s184
      $region36: #{residual_block.1} parent=31 // pred_fallthru
        _
    $region32: #{residual_block.1} parent=5 // pred_fallthru
      _
    %p186 = scmp.le.s32.totalorder 1, %s11
    %p187 = scmp.lt.s32.totalorder %s11, 3
    %p188 = pnand %p186, %p187
    %p189 = pneg %p188
    // Predicated region
    $region37: #{residual_block.1} parent=5 // pred_check
      _
    $region38: #{residual_block.1} parent=5 // pred_check_branch
      %191 = sbr.rel (%p188) target = $region40
    $region39: #{residual_block.1} parent=5 // pred_region
      %s192 = ssub.s32 %s11, 1
      %p193 = scmp.lt.s32.totalorder %s16, 1
      %s194 = scalar_select %p193, %s16, 1
      %s195 = smul.addr %s194, 54
      %s196 = smul.addr %s195, 8
      %s197 = scalar_lea.vmem %s0, %s196
      %p198 = pneg %p37
      %p199 = pneg %p34
      %p200 = pneg %p58
      %p201 = pneg %p55
      %p202 = pneg %p79
      %p203 = pneg %p76
      %p204 = pneg %p100
      %p205 = pneg %p97
      %p206 = pneg %p121
      %p207 = pneg %p118
      %p208 = pneg %p147
      %p209 = pneg %p144
      %p210 = scmp.lt.s32.totalorder %s16, 1
      %s211 = scalar_select %p210, %s16, 1
      %s212 = smul.addr %s211, 32
      %s213 = smul.addr %s212, 8
      %s214 = scalar_lea.vmem %s5, %s213
      %p215 = scmp.lt.s32.totalorder %s16, 1
      %s216 = scalar_select %p215, %s16, 1
      %s217 = smul.addr %s216, 54
      %s218 = smul.addr %s217, 8
      %s219 = scalar_lea.vmem %s0, %s218
      %p220 = scmp.lt.s32.totalorder %s16, 1
      %s221 = scalar_select %p220, %s16, 1
      %s222 = smul.addr %s221, 32
      %s223 = smul.addr %s222, 8
      %s224 = scalar_lea.vmem %s5, %s223
      %v225 = vld [vmem:[%s219] sm:$0xff]
      %v226 = vld [vmem:[%s219 + $0x8] sm:$0xff]
      %v227 = vld [vmem:[%s219 + $0x18] sm:$0xff]
      %v228 = vld [vmem:[%s219 + $0x20] sm:$0xff]
      %v229 = vld [vmem:[%s219 + $0x30] sm:$0xff]
      %v230 = vld [vmem:[%s219 + $0x38] sm:$0xff]
      %v231 = vld [vmem:[%s219 + $0x48] sm:$0xff]
      %v232 = vld [vmem:[%s219 + $0x50] sm:$0xff]
      %v233 = vld [vmem:[%s219 + $0x60] sm:$0xff]
      %v234 = vld [vmem:[%s219 + $0x68] sm:$0xff]
      %v235 = vld [vmem:[%s219 + $0x78] sm:$0xff]
      %v236 = vld [vmem:[%s219 + $0x80] sm:$0xff]
      %v237 = vld [vmem:[%s219 + $0x90] sm:$0xff]
      %v238 = vld [vmem:[%s219 + $0x98] sm:$0xff]
      %v239 = vld [vmem:[%s219 + $0xa8] sm:$0xff]
      %v240 = vld [vmem:[%s219 + $0xb0] sm:$0xff]
      %v241 = vld [vmem:[%s219 + $0xc0] sm:$0xff]
      %v242 = vld [vmem:[%s219 + $0xc8] sm:$0xff]
      %v243 = vld [vmem:[%s219 + $0xd8] sm:$0xff]
      %v244 = vld [vmem:[%s219 + $0xe0] sm:$0xff]
      %v245 = vld [vmem:[%s219 + $0xf0] sm:$0xff]
      %v246 = vld [vmem:[%s219 + $0xf8] sm:$0xff]
      %v247 = vld [vmem:[%s219 + $0x108] sm:$0xff]
      %v248 = vld [vmem:[%s219 + $0x110] sm:$0xff]
      %v249 = vld [vmem:[%s219 + $0x120] sm:$0xff]
      %v250 = vld [vmem:[%s219 + $0x128] sm:$0xff]
      %v251 = vld [vmem:[%s219 + $0x138] sm:$0xff]
      %v252 = vld [vmem:[%s219 + $0x140] sm:$0xff]
      %v253 = vld [vmem:[%s219 + $0x150] sm:$0xff]
      %v254 = vld [vmem:[%s219 + $0x158] sm:$0xff]
      %v255 = vld [vmem:[%s219 + $0x168] sm:$0xff]
      %v256 = vld [vmem:[%s219 + $0x170] sm:$0xff]
      %v257 = vld [vmem:[%s219 + $0x1] sm:$0xff]
      %v258 = vld [vmem:[%s219 + $0x9] sm:$0xff]
      %v259 = vld [vmem:[%s219 + $0x19] sm:$0xff]
      %v260 = vld [vmem:[%s219 + $0x21] sm:$0xff]
      %v261 = vld [vmem:[%s219 + $0x31] sm:$0xff]
      %v262 = vld [vmem:[%s219 + $0x39] sm:$0xff]
      %v263 = vld [vmem:[%s219 + $0x49] sm:$0xff]
      %v264 = vld [vmem:[%s219 + $0x51] sm:$0xff]
      %v265 = vld [vmem:[%s219 + $0x61] sm:$0xff]
      %v266 = vld [vmem:[%s219 + $0x69] sm:$0xff]
      %v267 = vld [vmem:[%s219 + $0x79] sm:$0xff]
      %v268 = vld [vmem:[%s219 + $0x81] sm:$0xff]
      %v269 = vld [vmem:[%s219 + $0x91] sm:$0xff]
      %v270 = vld [vmem:[%s219 + $0x99] sm:$0xff]
      %v271 = vld [vmem:[%s219 + $0xa9] sm:$0xff]
      %v272 = vld [vmem:[%s219 + $0xb1] sm:$0xff]
      %v273 = vld [vmem:[%s219 + $0xc1] sm:$0xff]
      %v274 = vld [vmem:[%s219 + $0xc9] sm:$0xff]
      %v275 = vld [vmem:[%s219 + $0xd9] sm:$0xff]
      %v276 = vld [vmem:[%s219 + $0xe1] sm:$0xff]
      %v277 = vld [vmem:[%s219 + $0xf1] sm:$0xff]
      %v278 = vld [vmem:[%s219 + $0xf9] sm:$0xff]
      %v279 = vld [vmem:[%s219 + $0x109] sm:$0xff]
      %v280 = vld [vmem:[%s219 + $0x111] sm:$0xff]
      %v281 = vld [vmem:[%s219 + $0x121] sm:$0xff]
      %v282 = vld [vmem:[%s219 + $0x129] sm:$0xff]
      %v283 = vld [vmem:[%s219 + $0x139] sm:$0xff]
      %v284 = vld [vmem:[%s219 + $0x141] sm:$0xff]
      %v285 = vld [vmem:[%s219 + $0x151] sm:$0xff]
      %v286 = vld [vmem:[%s219 + $0x159] sm:$0xff]
      %v287 = vld [vmem:[%s219 + $0x169] sm:$0xff]
      %v288 = vld [vmem:[%s219 + $0x171] sm:$0xff]
      %v289 = vld [vmem:[%s219 + $0x2] sm:$0xff]
      %v290 = vld [vmem:[%s219 + $0xa] sm:$0xff]
      %v291 = vld [vmem:[%s219 + $0x1a] sm:$0xff]
      %v292 = vld [vmem:[%s219 + $0x22] sm:$0xff]
      %v293 = vld [vmem:[%s219 + $0x32] sm:$0xff]
      %v294 = vld [vmem:[%s219 + $0x3a] sm:$0xff]
      %v295 = vld [vmem:[%s219 + $0x4a] sm:$0xff]
      %v296 = vld [vmem:[%s219 + $0x52] sm:$0xff]
      %v297 = vld [vmem:[%s219 + $0x62] sm:$0xff]
      %v298 = vld [vmem:[%s219 + $0x6a] sm:$0xff]
      %v299 = vld [vmem:[%s219 + $0x7a] sm:$0xff]
      %v300 = vld [vmem:[%s219 + $0x82] sm:$0xff]
      %v301 = vld [vmem:[%s219 + $0x92] sm:$0xff]
      %v302 = vld [vmem:[%s219 + $0x9a] sm:$0xff]
      %v303 = vld [vmem:[%s219 + $0xaa] sm:$0xff]
      %v304 = vld [vmem:[%s219 + $0xb2] sm:$0xff]
      %v305 = vld [vmem:[%s219 + $0xc2] sm:$0xff]
      %v306 = vld [vmem:[%s219 + $0xca] sm:$0xff]
      %v307 = vld [vmem:[%s219 + $0xda] sm:$0xff]
      %v308 = vld [vmem:[%s219 + $0xe2] sm:$0xff]
      %v309 = vld [vmem:[%s219 + $0xf2] sm:$0xff]
      %v310 = vld [vmem:[%s219 + $0xfa] sm:$0xff]
      %v311 = vld [vmem:[%s219 + $0x10a] sm:$0xff]
      %v312 = vld [vmem:[%s219 + $0x112] sm:$0xff]
      %v313 = vld [vmem:[%s219 + $0x122] sm:$0xff]
      %v314 = vld [vmem:[%s219 + $0x12a] sm:$0xff]
      %v315 = vld [vmem:[%s219 + $0x13a] sm:$0xff]
      %v316 = vld [vmem:[%s219 + $0x142] sm:$0xff]
      %v317 = vld [vmem:[%s219 + $0x152] sm:$0xff]
      %v318 = vld [vmem:[%s219 + $0x15a] sm:$0xff]
      %v319 = vld [vmem:[%s219 + $0x16a] sm:$0xff]
      %v320 = vld [vmem:[%s219 + $0x172] sm:$0xff]
      %s321 = scalar_lea.vmem %s219, 24
      %v322 = vld [vmem:[%s321] sm:$0xff]
      %v323 = vld [vmem:[%s321 + $0x8] sm:$0xff]
      %v324 = vld [vmem:[%s321 + $0x18] sm:$0xff]
      %v325 = vld [vmem:[%s321 + $0x20] sm:$0xff]
      %v326 = vld [vmem:[%s321 + $0x30] sm:$0xff]
      %v327 = vld [vmem:[%s321 + $0x38] sm:$0xff]
      %v328 = vld [vmem:[%s321 + $0x48] sm:$0xff]
      %v329 = vld [vmem:[%s321 + $0x50] sm:$0xff]
      %v330 = vld [vmem:[%s321 + $0x60] sm:$0xff]
      %v331 = vld [vmem:[%s321 + $0x68] sm:$0xff]
      %v332 = vld [vmem:[%s321 + $0x78] sm:$0xff]
      %v333 = vld [vmem:[%s321 + $0x80] sm:$0xff]
      %v334 = vld [vmem:[%s321 + $0x90] sm:$0xff]
      %v335 = vld [vmem:[%s321 + $0x98] sm:$0xff]
      %v336 = vld [vmem:[%s321 + $0xa8] sm:$0xff]
      %v337 = vld [vmem:[%s321 + $0xb0] sm:$0xff]
      %v338 = vld [vmem:[%s321 + $0xc0] sm:$0xff]
      %v339 = vld [vmem:[%s321 + $0xc8] sm:$0xff]
      %v340 = vld [vmem:[%s321 + $0xd8] sm:$0xff]
      %v341 = vld [vmem:[%s321 + $0xe0] sm:$0xff]
      %v342 = vld [vmem:[%s321 + $0xf0] sm:$0xff]
      %v343 = vld [vmem:[%s321 + $0xf8] sm:$0xff]
      %v344 = vld [vmem:[%s321 + $0x108] sm:$0xff]
      %v345 = vld [vmem:[%s321 + $0x110] sm:$0xff]
      %v346 = vld [vmem:[%s321 + $0x120] sm:$0xff]
      %v347 = vld [vmem:[%s321 + $0x128] sm:$0xff]
      %v348 = vld [vmem:[%s321 + $0x138] sm:$0xff]
      %v349 = vld [vmem:[%s321 + $0x140] sm:$0xff]
      %v350 = vld [vmem:[%s321 + $0x150] sm:$0xff]
      %v351 = vld [vmem:[%s321 + $0x158] sm:$0xff]
      %v352 = vld [vmem:[%s321 + $0x168] sm:$0xff]
      %v353 = vld [vmem:[%s321 + $0x170] sm:$0xff]
      %v354 = vld [vmem:[%s321 + $0x1] sm:$0xff]
      %v355 = vld [vmem:[%s321 + $0x9] sm:$0xff]
      %v356 = vld [vmem:[%s321 + $0x19] sm:$0xff]
      %v357 = vld [vmem:[%s321 + $0x21] sm:$0xff]
      %v358 = vld [vmem:[%s321 + $0x31] sm:$0xff]
      %v359 = vld [vmem:[%s321 + $0x39] sm:$0xff]
      %v360 = vld [vmem:[%s321 + $0x49] sm:$0xff]
      %v361 = vld [vmem:[%s321 + $0x51] sm:$0xff]
      %v362 = vld [vmem:[%s321 + $0x61] sm:$0xff]
      %v363 = vld [vmem:[%s321 + $0x69] sm:$0xff]
      %v364 = vld [vmem:[%s321 + $0x79] sm:$0xff]
      %v365 = vld [vmem:[%s321 + $0x81] sm:$0xff]
      %v366 = vld [vmem:[%s321 + $0x91] sm:$0xff]
      %v367 = vld [vmem:[%s321 + $0x99] sm:$0xff]
      %v368 = vld [vmem:[%s321 + $0xa9] sm:$0xff]
      %v369 = vld [vmem:[%s321 + $0xb1] sm:$0xff]
      %v370 = vld [vmem:[%s321 + $0xc1] sm:$0xff]
      %v371 = vld [vmem:[%s321 + $0xc9] sm:$0xff]
      %v372 = vld [vmem:[%s321 + $0xd9] sm:$0xff]
      %v373 = vld [vmem:[%s321 + $0xe1] sm:$0xff]
      %v374 = vld [vmem:[%s321 + $0xf1] sm:$0xff]
      %v375 = vld [vmem:[%s321 + $0xf9] sm:$0xff]
      %v376 = vld [vmem:[%s321 + $0x109] sm:$0xff]
      %v377 = vld [vmem:[%s321 + $0x111] sm:$0xff]
      %v378 = vld [vmem:[%s321 + $0x121] sm:$0xff]
      %v379 = vld [vmem:[%s321 + $0x129] sm:$0xff]
      %v380 = vld [vmem:[%s321 + $0x139] sm:$0xff]
      %v381 = vld [vmem:[%s321 + $0x141] sm:$0xff]
      %v382 = vld [vmem:[%s321 + $0x151] sm:$0xff]
      %v383 = vld [vmem:[%s321 + $0x159] sm:$0xff]
      %v384 = vld [vmem:[%s321 + $0x169] sm:$0xff]
      %v385 = vld [vmem:[%s321 + $0x171] sm:$0xff]
      %v386 = vld [vmem:[%s321 + $0x2] sm:$0xff]
      %v387 = vld [vmem:[%s321 + $0xa] sm:$0xff]
      %v388 = vld [vmem:[%s321 + $0x1a] sm:$0xff]
      %v389 = vld [vmem:[%s321 + $0x22] sm:$0xff]
      %v390 = vld [vmem:[%s321 + $0x32] sm:$0xff]
      %v391 = vld [vmem:[%s321 + $0x3a] sm:$0xff]
      %v392 = vld [vmem:[%s321 + $0x4a] sm:$0xff]
      %v393 = vld [vmem:[%s321 + $0x52] sm:$0xff]
      %v394 = vld [vmem:[%s321 + $0x62] sm:$0xff]
      %v395 = vld [vmem:[%s321 + $0x6a] sm:$0xff]
      %v396 = vld [vmem:[%s321 + $0x7a] sm:$0xff]
      %v397 = vld [vmem:[%s321 + $0x82] sm:$0xff]
      %v398 = vld [vmem:[%s321 + $0x92] sm:$0xff]
      %v399 = vld [vmem:[%s321 + $0x9a] sm:$0xff]
      %v400 = vld [vmem:[%s321 + $0xaa] sm:$0xff]
      %v401 = vld [vmem:[%s321 + $0xb2] sm:$0xff]
      %v402 = vld [vmem:[%s321 + $0xc2] sm:$0xff]
      %v403 = vld [vmem:[%s321 + $0xca] sm:$0xff]
      %v404 = vld [vmem:[%s321 + $0xda] sm:$0xff]
      %v405 = vld [vmem:[%s321 + $0xe2] sm:$0xff]
      %v406 = vld [vmem:[%s321 + $0xf2] sm:$0xff]
      %v407 = vld [vmem:[%s321 + $0xfa] sm:$0xff]
      %v408 = vld [vmem:[%s321 + $0x10a] sm:$0xff]
      %v409 = vld [vmem:[%s321 + $0x112] sm:$0xff]
      %v410 = vld [vmem:[%s321 + $0x122] sm:$0xff]
      %v411 = vld [vmem:[%s321 + $0x12a] sm:$0xff]
      %v412 = vld [vmem:[%s321 + $0x13a] sm:$0xff]
      %v413 = vld [vmem:[%s321 + $0x142] sm:$0xff]
      %v414 = vld [vmem:[%s321 + $0x152] sm:$0xff]
      %v415 = vld [vmem:[%s321 + $0x15a] sm:$0xff]
      %v416 = vld [vmem:[%s321 + $0x16a] sm:$0xff]
      %v417 = vld [vmem:[%s321 + $0x172] sm:$0xff]
      %s418 = scalar_lea.vmem %s219, 48
      %v419 = vld [vmem:[%s418] sm:$0xff]
      %v420 = vld [vmem:[%s418 + $0x8] sm:$0xff]
      %v421 = vld [vmem:[%s418 + $0x18] sm:$0xff]
      %v422 = vld [vmem:[%s418 + $0x20] sm:$0xff]
      %v423 = vld [vmem:[%s418 + $0x30] sm:$0xff]
      %v424 = vld [vmem:[%s418 + $0x38] sm:$0xff]
      %v425 = vld [vmem:[%s418 + $0x48] sm:$0xff]
      %v426 = vld [vmem:[%s418 + $0x50] sm:$0xff]
      %v427 = vld [vmem:[%s418 + $0x60] sm:$0xff]
      %v428 = vld [vmem:[%s418 + $0x68] sm:$0xff]
      %v429 = vld [vmem:[%s418 + $0x78] sm:$0xff]
      %v430 = vld [vmem:[%s418 + $0x80] sm:$0xff]
      %v431 = vld [vmem:[%s418 + $0x90] sm:$0xff]
      %v432 = vld [vmem:[%s418 + $0x98] sm:$0xff]
      %v433 = vld [vmem:[%s418 + $0xa8] sm:$0xff]
      %v434 = vld [vmem:[%s418 + $0xb0] sm:$0xff]
      %v435 = vld [vmem:[%s418 + $0xc0] sm:$0xff]
      %v436 = vld [vmem:[%s418 + $0xc8] sm:$0xff]
      %v437 = vld [vmem:[%s418 + $0xd8] sm:$0xff]
      %v438 = vld [vmem:[%s418 + $0xe0] sm:$0xff]
      %v439 = vld [vmem:[%s418 + $0xf0] sm:$0xff]
      %v440 = vld [vmem:[%s418 + $0xf8] sm:$0xff]
      %v441 = vld [vmem:[%s418 + $0x108] sm:$0xff]
      %v442 = vld [vmem:[%s418 + $0x110] sm:$0xff]
      %v443 = vld [vmem:[%s418 + $0x120] sm:$0xff]
      %v444 = vld [vmem:[%s418 + $0x128] sm:$0xff]
      %v445 = vld [vmem:[%s418 + $0x138] sm:$0xff]
      %v446 = vld [vmem:[%s418 + $0x140] sm:$0xff]
      %v447 = vld [vmem:[%s418 + $0x150] sm:$0xff]
      %v448 = vld [vmem:[%s418 + $0x158] sm:$0xff]
      %v449 = vld [vmem:[%s418 + $0x168] sm:$0xff]
      %v450 = vld [vmem:[%s418 + $0x170] sm:$0xff]
      %v451 = vld [vmem:[%s418 + $0x1] sm:$0xff]
      %v452 = vld [vmem:[%s418 + $0x9] sm:$0xff]
      %v453 = vld [vmem:[%s418 + $0x19] sm:$0xff]
      %v454 = vld [vmem:[%s418 + $0x21] sm:$0xff]
      %v455 = vld [vmem:[%s418 + $0x31] sm:$0xff]
      %v456 = vld [vmem:[%s418 + $0x39] sm:$0xff]
      %v457 = vld [vmem:[%s418 + $0x49] sm:$0xff]
      %v458 = vld [vmem:[%s418 + $0x51] sm:$0xff]
      %v459 = vld [vmem:[%s418 + $0x61] sm:$0xff]
      %v460 = vld [vmem:[%s418 + $0x69] sm:$0xff]
      %v461 = vld [vmem:[%s418 + $0x79] sm:$0xff]
      %v462 = vld [vmem:[%s418 + $0x81] sm:$0xff]
      %v463 = vld [vmem:[%s418 + $0x91] sm:$0xff]
      %v464 = vld [vmem:[%s418 + $0x99] sm:$0xff]
      %v465 = vld [vmem:[%s418 + $0xa9] sm:$0xff]
      %v466 = vld [vmem:[%s418 + $0xb1] sm:$0xff]
      %v467 = vld [vmem:[%s418 + $0xc1] sm:$0xff]
      %v468 = vld [vmem:[%s418 + $0xc9] sm:$0xff]
      %v469 = vld [vmem:[%s418 + $0xd9] sm:$0xff]
      %v470 = vld [vmem:[%s418 + $0xe1] sm:$0xff]
      %v471 = vld [vmem:[%s418 + $0xf1] sm:$0xff]
      %v472 = vld [vmem:[%s418 + $0xf9] sm:$0xff]
      %v473 = vld [vmem:[%s418 + $0x109] sm:$0xff]
      %v474 = vld [vmem:[%s418 + $0x111] sm:$0xff]
      %v475 = vld [vmem:[%s418 + $0x121] sm:$0xff]
      %v476 = vld [vmem:[%s418 + $0x129] sm:$0xff]
      %v477 = vld [vmem:[%s418 + $0x139] sm:$0xff]
      %v478 = vld [vmem:[%s418 + $0x141] sm:$0xff]
      %v479 = vld [vmem:[%s418 + $0x151] sm:$0xff]
      %v480 = vld [vmem:[%s418 + $0x159] sm:$0xff]
      %v481 = vld [vmem:[%s418 + $0x169] sm:$0xff]
      %v482 = vld [vmem:[%s418 + $0x171] sm:$0xff]
      %v483 = vld [vmem:[%s418 + $0x2] sm:$0xff]
      %v484 = vld [vmem:[%s418 + $0xa] sm:$0xff]
      %v485 = vld [vmem:[%s418 + $0x1a] sm:$0xff]
      %v486 = vld [vmem:[%s418 + $0x22] sm:$0xff]
      %v487 = vld [vmem:[%s418 + $0x32] sm:$0xff]
      %v488 = vld [vmem:[%s418 + $0x3a] sm:$0xff]
      %v489 = vld [vmem:[%s418 + $0x4a] sm:$0xff]
      %v490 = vld [vmem:[%s418 + $0x52] sm:$0xff]
      %v491 = vld [vmem:[%s418 + $0x62] sm:$0xff]
      %v492 = vld [vmem:[%s418 + $0x6a] sm:$0xff]
      %v493 = vld [vmem:[%s418 + $0x7a] sm:$0xff]
      %v494 = vld [vmem:[%s418 + $0x82] sm:$0xff]
      %v495 = vld [vmem:[%s418 + $0x92] sm:$0xff]
      %v496 = vld [vmem:[%s418 + $0x9a] sm:$0xff]
      %v497 = vld [vmem:[%s418 + $0xaa] sm:$0xff]
      %v498 = vld [vmem:[%s418 + $0xb2] sm:$0xff]
      %v499 = vld [vmem:[%s418 + $0xc2] sm:$0xff]
      %v500 = vld [vmem:[%s418 + $0xca] sm:$0xff]
      %v501 = vld [vmem:[%s418 + $0xda] sm:$0xff]
      %v502 = vld [vmem:[%s418 + $0xe2] sm:$0xff]
      %v503 = vld [vmem:[%s418 + $0xf2] sm:$0xff]
      %v504 = vld [vmem:[%s418 + $0xfa] sm:$0xff]
      %v505 = vld [vmem:[%s418 + $0x10a] sm:$0xff]
      %v506 = vld [vmem:[%s418 + $0x112] sm:$0xff]
      %v507 = vld [vmem:[%s418 + $0x122] sm:$0xff]
      %v508 = vld [vmem:[%s418 + $0x12a] sm:$0xff]
      %v509 = vld [vmem:[%s418 + $0x13a] sm:$0xff]
      %v510 = vld [vmem:[%s418 + $0x142] sm:$0xff]
      %v511 = vld [vmem:[%s418 + $0x152] sm:$0xff]
      %v512 = vld [vmem:[%s418 + $0x15a] sm:$0xff]
      %v513 = vld [vmem:[%s418 + $0x16a] sm:$0xff]
      %v514 = vld [vmem:[%s418 + $0x172] sm:$0xff]
      %v515 = vld [vmem:[%s1] sm:$0xff]
      %v516 = vld [vmem:[%s1 + $0x8] sm:$0xff]
      %v517 = vld [vmem:[%s1 + $0x10] sm:$0xff]
      %v518 = vld [vmem:[%s1 + $0x18] sm:$0xff]
      %v519 = vld [vmem:[%s1 + $0x20] sm:$0xff]
      %v520 = vld [vmem:[%s1 + $0x28] sm:$0xff]
      %v521 = vld [vmem:[%s1 + $0x30] sm:$0xff]
      %v522 = vld [vmem:[%s1 + $0x38] sm:$0xff]
      %v523 = vld [vmem:[%s1 + $0x40] sm:$0xff]
      %v524 = vld [vmem:[%s1 + $0x48] sm:$0xff]
      %v525 = vld [vmem:[%s1 + $0x50] sm:$0xff]
      %v526 = vld [vmem:[%s1 + $0x58] sm:$0xff]
      %v527 = vld [vmem:[%s1 + $0x60] sm:$0xff]
      %v528 = vld [vmem:[%s1 + $0x68] sm:$0xff]
      %v529 = vld [vmem:[%s1 + $0x70] sm:$0xff]
      %v530 = vld [vmem:[%s1 + $0x78] sm:$0xff]
      %v531 = vld [vmem:[%s1 + $0x80] sm:$0xff]
      %v532 = vld [vmem:[%s1 + $0x88] sm:$0xff]
      %v533 = vld [vmem:[%s1 + $0x90] sm:$0xff]
      %v534 = vld [vmem:[%s1 + $0x98] sm:$0xff]
      %v535 = vld [vmem:[%s1 + $0xa0] sm:$0xff]
      %v536 = vld [vmem:[%s1 + $0xa8] sm:$0xff]
      %v537 = vld [vmem:[%s1 + $0xb0] sm:$0xff]
      %v538 = vld [vmem:[%s1 + $0xb8] sm:$0xff]
      %v539 = vld [vmem:[%s1 + $0xc0] sm:$0xff]
      %v540 = vld [vmem:[%s1 + $0xc8] sm:$0xff]
      %v541 = vld [vmem:[%s1 + $0xd0] sm:$0xff]
      %v542 = vld [vmem:[%s1 + $0xd8] sm:$0xff]
      %v543 = vld [vmem:[%s1 + $0xe0] sm:$0xff]
      %v544 = vld [vmem:[%s1 + $0xe8] sm:$0xff]
      %v545 = vld [vmem:[%s1 + $0xf0] sm:$0xff]
      %v546 = vld [vmem:[%s1 + $0xf8] sm:$0xff]
      %v547 = vld [vmem:[%s1 + $0x100] sm:$0xff]
      %v548 = vld [vmem:[%s1 + $0x108] sm:$0xff]
      %v549 = vld [vmem:[%s1 + $0x110] sm:$0xff]
      %v550 = vld [vmem:[%s1 + $0x118] sm:$0xff]
      %v551 = vld [vmem:[%s1 + $0x120] sm:$0xff]
      %v552 = vld [vmem:[%s1 + $0x128] sm:$0xff]
      %v553 = vld [vmem:[%s1 + $0x130] sm:$0xff]
      %v554 = vld [vmem:[%s1 + $0x138] sm:$0xff]
      %v555 = vld [vmem:[%s1 + $0x140] sm:$0xff]
      %v556 = vld [vmem:[%s1 + $0x148] sm:$0xff]
      %v557 = vld [vmem:[%s1 + $0x150] sm:$0xff]
      %v558 = vld [vmem:[%s1 + $0x158] sm:$0xff]
      %v559 = vld [vmem:[%s1 + $0x160] sm:$0xff]
      %v560 = vld [vmem:[%s1 + $0x168] sm:$0xff]
      %v561 = vld [vmem:[%s1 + $0x170] sm:$0xff]
      %v562 = vld [vmem:[%s1 + $0x178] sm:$0xff]
      %v563 = vld [vmem:[%s1 + $0x180] sm:$0xff]
      %v564 = vld [vmem:[%s1 + $0x188] sm:$0xff]
      %v565 = vld [vmem:[%s1 + $0x190] sm:$0xff]
      %v566 = vld [vmem:[%s1 + $0x198] sm:$0xff]
      %v567 = vld [vmem:[%s1 + $0x1a0] sm:$0xff]
      %v568 = vld [vmem:[%s1 + $0x1a8] sm:$0xff]
      %v569 = vld [vmem:[%s1 + $0x1b0] sm:$0xff]
      %v570 = vld [vmem:[%s1 + $0x1b8] sm:$0xff]
      %v571 = vld [vmem:[%s1 + $0x1c0] sm:$0xff]
      %v572 = vld [vmem:[%s1 + $0x1c8] sm:$0xff]
      %v573 = vld [vmem:[%s1 + $0x1d0] sm:$0xff]
      %v574 = vld [vmem:[%s1 + $0x1d8] sm:$0xff]
      %v575 = vld [vmem:[%s1 + $0x1e0] sm:$0xff]
      %v576 = vld [vmem:[%s1 + $0x1e8] sm:$0xff]
      %v577 = vld [vmem:[%s1 + $0x1f0] sm:$0xff]
      %v578 = vld [vmem:[%s1 + $0x1f8] sm:$0xff]
      %v579 = vld [vmem:[%s1 + $0x200] sm:$0xff]
      %v580 = vld [vmem:[%s1 + $0x208] sm:$0xff]
      %v581 = vld [vmem:[%s1 + $0x210] sm:$0xff]
      %v582 = vld [vmem:[%s1 + $0x218] sm:$0xff]
      %v583 = vld [vmem:[%s1 + $0x220] sm:$0xff]
      %v584 = vld [vmem:[%s1 + $0x228] sm:$0xff]
      %v585 = vld [vmem:[%s1 + $0x230] sm:$0xff]
      %v586 = vld [vmem:[%s1 + $0x238] sm:$0xff]
      %v587 = vld [vmem:[%s1 + $0x240] sm:$0xff]
      %v588 = vld [vmem:[%s1 + $0x248] sm:$0xff]
      %v589 = vld [vmem:[%s1 + $0x250] sm:$0xff]
      %v590 = vld [vmem:[%s1 + $0x258] sm:$0xff]
      %v591 = vld [vmem:[%s1 + $0x260] sm:$0xff]
      %v592 = vld [vmem:[%s1 + $0x268] sm:$0xff]
      %v593 = vld [vmem:[%s1 + $0x270] sm:$0xff]
      %v594 = vld [vmem:[%s1 + $0x278] sm:$0xff]
      %v595 = vld [vmem:[%s1 + $0x280] sm:$0xff]
      %v596 = vld [vmem:[%s1 + $0x288] sm:$0xff]
      %v597 = vld [vmem:[%s1 + $0x290] sm:$0xff]
      %v598 = vld [vmem:[%s1 + $0x298] sm:$0xff]
      %v599 = vld [vmem:[%s1 + $0x2a0] sm:$0xff]
      %v600 = vld [vmem:[%s1 + $0x2a8] sm:$0xff]
      %v601 = vld [vmem:[%s1 + $0x2b0] sm:$0xff]
      %v602 = vld [vmem:[%s1 + $0x2b8] sm:$0xff]
      %v603 = vld [vmem:[%s1 + $0x2c0] sm:$0xff]
      %v604 = vld [vmem:[%s1 + $0x2c8] sm:$0xff]
      %v605 = vld [vmem:[%s1 + $0x2d0] sm:$0xff]
      %v606 = vld [vmem:[%s1 + $0x2d8] sm:$0xff]
      %v607 = vld [vmem:[%s1 + $0x2e0] sm:$0xff]
      %v608 = vld [vmem:[%s1 + $0x2e8] sm:$0xff]
      %v609 = vld [vmem:[%s1 + $0x2f0] sm:$0xff]
      %v610 = vld [vmem:[%s1 + $0x2f8] sm:$0xff]
      %v611 = vld [vmem:[%s1 + $0x300] sm:$0xff]
      %v612 = vld [vmem:[%s1 + $0x308] sm:$0xff]
      %v613 = vld [vmem:[%s1 + $0x310] sm:$0xff]
      %v614 = vld [vmem:[%s1 + $0x318] sm:$0xff]
      %v615 = vld [vmem:[%s1 + $0x320] sm:$0xff]
      %v616 = vld [vmem:[%s1 + $0x328] sm:$0xff]
      %v617 = vld [vmem:[%s1 + $0x330] sm:$0xff]
      %v618 = vld [vmem:[%s1 + $0x338] sm:$0xff]
      %v619 = vld [vmem:[%s1 + $0x340] sm:$0xff]
      %v620 = vld [vmem:[%s1 + $0x348] sm:$0xff]
      %v621 = vld [vmem:[%s1 + $0x350] sm:$0xff]
      %v622 = vld [vmem:[%s1 + $0x358] sm:$0xff]
      %v623 = vld [vmem:[%s1 + $0x360] sm:$0xff]
      %v624 = vld [vmem:[%s1 + $0x368] sm:$0xff]
      %v625 = vld [vmem:[%s1 + $0x370] sm:$0xff]
      %v626 = vld [vmem:[%s1 + $0x378] sm:$0xff]
      %v627 = vld [vmem:[%s1 + $0x380] sm:$0xff]
      %v628 = vld [vmem:[%s1 + $0x388] sm:$0xff]
      %v629 = vld [vmem:[%s1 + $0x390] sm:$0xff]
      %v630 = vld [vmem:[%s1 + $0x398] sm:$0xff]
      %v631 = vld [vmem:[%s1 + $0x3a0] sm:$0xff]
      %v632 = vld [vmem:[%s1 + $0x3a8] sm:$0xff]
      %v633 = vld [vmem:[%s1 + $0x3b0] sm:$0xff]
      %v634 = vld [vmem:[%s1 + $0x3b8] sm:$0xff]
      %v635 = vld [vmem:[%s1 + $0x3c0] sm:$0xff]
      %v636 = vld [vmem:[%s1 + $0x3c8] sm:$0xff]
      %v637 = vld [vmem:[%s1 + $0x3d0] sm:$0xff]
      %v638 = vld [vmem:[%s1 + $0x3d8] sm:$0xff]
      %v639 = vld [vmem:[%s1 + $0x3e0] sm:$0xff]
      %v640 = vld [vmem:[%s1 + $0x3e8] sm:$0xff]
      %v641 = vld [vmem:[%s1 + $0x3f0] sm:$0xff]
      %v642 = vld [vmem:[%s1 + $0x3f8] sm:$0xff]
      %v643 = vld [vmem:[%s1 + $0x400] sm:$0xff]
      %v644 = vld [vmem:[%s1 + $0x408] sm:$0xff]
      %v645 = vld [vmem:[%s1 + $0x410] sm:$0xff]
      %v646 = vld [vmem:[%s1 + $0x418] sm:$0xff]
      %v647 = vld [vmem:[%s1 + $0x420] sm:$0xff]
      %v648 = vld [vmem:[%s1 + $0x428] sm:$0xff]
      %v649 = vld [vmem:[%s1 + $0x430] sm:$0xff]
      %v650 = vld [vmem:[%s1 + $0x438] sm:$0xff]
      %v651 = vld [vmem:[%s1 + $0x440] sm:$0xff]
      %v652 = vld [vmem:[%s1 + $0x448] sm:$0xff]
      %v653 = vld [vmem:[%s1 + $0x450] sm:$0xff]
      %v654 = vld [vmem:[%s1 + $0x458] sm:$0xff]
      %v655 = vld [vmem:[%s1 + $0x460] sm:$0xff]
      %v656 = vld [vmem:[%s1 + $0x468] sm:$0xff]
      %v657 = vld [vmem:[%s1 + $0x470] sm:$0xff]
      %v658 = vld [vmem:[%s1 + $0x478] sm:$0xff]
      %v659 = vld [vmem:[%s2] sm:$0x1]
      %v661 = vlaneseq
      %v662 = vshrl.u32 %v661, 7
      %v663 = vsub.s32 0, %v662
      %v664 = vrot.slane %v659, %v663
      %666 = vmatprep.subr.mxu0 0.0
      %667 = vmatpush1.msra.mxu0 %v515
      %668 = vmatprep.subr.mxu0 0.0
      %669 = vmatpush1.msra.mxu0 %v516
      %670 = vmatprep.subr.mxu0 0.0
      %671 = vmatpush1.msra.mxu0 %v517
      %672 = vmatprep.subr.mxu0 0.0
      %673 = vmatpush1.msra.mxu0 %v518
      %674 = vmatprep.subr.mxu0 0.0
      %675 = vmatpush1.msra.mxu0 %v519
      %676 = vmatprep.subr.mxu0 0.0
      %677 = vmatpush1.msra.mxu0 %v520
      %678 = vmatprep.subr.mxu0 0.0
      %679 = vmatpush1.msra.mxu0 %v521
      %680 = vmatprep.subr.mxu0 0.0
      %681 = vmatpush1.msra.mxu0 %v522
      %682 = vmatprep.subr.mxu0 0.0
      %683 = vmatpush1.msra.mxu0 %v523
      %684 = vmatprep.subr.mxu0 0.0
      %685 = vmatpush1.msra.mxu0 %v524
      %686 = vmatprep.subr.mxu0 0.0
      %687 = vmatpush1.msra.mxu0 %v525
      %688 = vmatprep.subr.mxu0 0.0
      %689 = vmatpush1.msra.mxu0 %v526
      %690 = vmatprep.subr.mxu0 0.0
      %691 = vmatpush1.msra.mxu0 %v527
      %692 = vmatprep.subr.mxu0 0.0
      %693 = vmatpush1.msra.mxu0 %v528
      %694 = vmatprep.subr.mxu0 0.0
      %695 = vmatpush1.msra.mxu0 %v529
      %696 = vmatprep.subr.mxu0 0.0
      %697 = vmatpush1.msra.mxu0 %v530
      %698 = vmatprep.subr.mxu0 0.0
      %699 = vmatpush1.msra.mxu0 %v531
      %700 = vmatprep.subr.mxu0 0.0
      %701 = vmatpush1.msra.mxu0 %v532
      %702 = vmatprep.subr.mxu0 0.0
      %703 = vmatpush1.msra.mxu0 %v533
      %704 = vmatprep.subr.mxu0 0.0
      %705 = vmatpush1.msra.mxu0 %v534
      %706 = vmatprep.subr.mxu0 0.0
      %707 = vmatpush1.msra.mxu0 %v535
      %708 = vmatprep.subr.mxu0 0.0
      %709 = vmatpush1.msra.mxu0 %v536
      %710 = vmatprep.subr.mxu0 0.0
      %711 = vmatpush1.msra.mxu0 %v537
      %712 = vmatprep.subr.mxu0 0.0
      %713 = vmatpush1.msra.mxu0 %v538
      %714 = vmatprep.subr.mxu0 0.0
      %715 = vmatpush1.msra.mxu0 %v539
      %716 = vmatprep.subr.mxu0 0.0
      %717 = vmatpush1.msra.mxu0 %v540
      %718 = vmatprep.subr.mxu0 0.0
      %719 = vmatpush1.msra.mxu0 %v541
      %720 = vmatprep.subr.mxu0 0.0
      %721 = vmatpush1.msra.mxu0 %v542
      %722 = vmatprep.subr.mxu0 0.0
      %723 = vmatpush1.msra.mxu0 %v543
      %724 = vmatprep.subr.mxu0 0.0
      %725 = vmatpush1.msra.mxu0 %v544
      %726 = vmatprep.subr.mxu0 0.0
      %727 = vmatpush1.msra.mxu0 %v545
      %728 = vmatprep.subr.mxu0 0.0
      %729 = vmatpush1.msra.mxu0 %v546
      %730 = vmatprep.mubr.f32.mxu0 %v257
      %731 = vmatmul.mubr.f32.gmra.mrb[0].mxu0 %v225
      %v732 = vpop.f32.mrb[0].mxu0
      %v733 = vadd.f32 %v664, %v732
      %v734 = vpop.f32.mrb[0].mxu0
      %735 = vmatprep.mubr.f32.mxu0 %v258
      %736 = vmatmul.mubr.f32.gmra.mrb[0].mxu0 %v226
      %v737 = vpop.f32.mrb[0].mxu0
      %v738 = vadd.f32 %v664, %v737
      %v739 = vpop.f32.mrb[0].mxu0
      %740 = vmatprep.mubr.f32.mxu0 %v259
      %741 = vmatmul.mubr.f32.gmra.mrb[0].mxu0 %v227
      %v742 = vpop.f32.mrb[0].mxu0
      %v743 = vadd.f32 %v664, %v742
      %v744 = vpop.f32.mrb[0].mxu0
      %745 = vmatprep.mubr.f32.mxu0 %v260
      %746 = vmatmul.mubr.f32.gmra.mrb[0].mxu0 %v228
      %v747 = vpop.f32.mrb[0].mxu0
      %v748 = vadd.f32 %v664, %v747
      %v749 = vpop.f32.mrb[0].mxu0
      %750 = vmatprep.mubr.f32.mxu0 %v261
      %751 = vmatmul.mubr.f32.gmra.mrb[0].mxu0 %v229
      %v752 = vpop.f32.mrb[0].mxu0
      %v753 = vadd.f32 %v664, %v752
      %v754 = vpop.f32.mrb[0].mxu0
      %755 = vmatprep.mubr.f32.mxu0 %v262
      %756 = vmatmul.mubr.f32.gmra.mrb[0].mxu0 %v230
      %v757 = vpop.f32.mrb[0].mxu0
      %v758 = vadd.f32 %v664, %v757
      %v759 = vpop.f32.mrb[0].mxu0
      %760 = vmatprep.mubr.f32.mxu0 %v263
      %761 = vmatmul.mubr.f32.gmra.mrb[0].mxu0 %v231
      %v762 = vpop.f32.mrb[0].mxu0
      %v763 = vadd.f32 %v664, %v762
      %v764 = vpop.f32.mrb[0].mxu0
      %765 = vmatprep.mubr.f32.mxu0 %v264
      %766 = vmatmul.mubr.f32.gmra.mrb[0].mxu0 %v232
      %v767 = vpop.f32.mrb[0].mxu0
      %v768 = vadd.f32 %v664, %v767
      %v769 = vpop.f32.mrb[0].mxu0
      %770 = vmatprep.mubr.f32.mxu0 %v265
      %771 = vmatmul.mubr.f32.gmra.mrb[0].mxu0 %v233
      %v772 = vpop.f32.mrb[0].mxu0
      %v773 = vadd.f32 %v664, %v772
      %v774 = vpop.f32.mrb[0].mxu0
      %775 = vmatprep.mubr.f32.mxu0 %v266
      %776 = vmatmul.mubr.f32.gmra.mrb[0].mxu0 %v234
      %v777 = vpop.f32.mrb[0].mxu0
      %v778 = vadd.f32 %v664, %v777
      %v779 = vpop.f32.mrb[0].mxu0
      %780 = vmatprep.mubr.f32.mxu0 %v267
      %781 = vmatmul.mubr.f32.gmra.mrb[0].mxu0 %v235
      %v782 = vpop.f32.mrb[0].mxu0
      %v783 = vadd.f32 %v664, %v782
      %v784 = vpop.f32.mrb[0].mxu0
      %785 = vmatprep.mubr.f32.mxu0 %v268
      %786 = vmatmul.mubr.f32.gmra.mrb[0].mxu0 %v236
      %v787 = vpop.f32.mrb[0].mxu0
      %v788 = vadd.f32 %v664, %v787
      %v789 = vpop.f32.mrb[0].mxu0
      %790 = vmatprep.mubr.f32.mxu0 %v269
      %791 = vmatmul.mubr.f32.gmra.mrb[0].mxu0 %v237
      %v792 = vpop.f32.mrb[0].mxu0
      %v793 = vadd.f32 %v664, %v792
      %v794 = vpop.f32.mrb[0].mxu0
      %795 = vmatprep.mubr.f32.mxu0 %v270
      %796 = vmatmul.mubr.f32.gmra.mrb[0].mxu0 %v238
      %v797 = vpop.f32.mrb[0].mxu0
      %v798 = vadd.f32 %v664, %v797
      %v799 = vpop.f32.mrb[0].mxu0
      %800 = vmatprep.mubr.f32.mxu0 %v271
      %801 = vmatmul.mubr.f32.gmra.mrb[0].mxu0 %v239
      %v802 = vpop.f32.mrb[0].mxu0
      %v803 = vadd.f32 %v664, %v802
      %v804 = vpop.f32.mrb[0].mxu0
      %805 = vmatprep.mubr.f32.mxu0 %v272
      %806 = vmatmul.mubr.f32.gmra.mrb[0].mxu0 %v240
      %v807 = vpop.f32.mrb[0].mxu0
      %v808 = vadd.f32 %v664, %v807
      %v809 = vpop.f32.mrb[0].mxu0
      %810 = vmatprep.mubr.f32.mxu0 %v273
      %811 = vmatmul.mubr.f32.gmra.mrb[0].mxu0 %v241
      %v812 = vpop.f32.mrb[0].mxu0
      %v813 = vadd.f32 %v664, %v812
      %v814 = vpop.f32.mrb[0].mxu0
      %815 = vmatprep.mubr.f32.mxu0 %v274
      %816 = vmatmul.mubr.f32.gmra.mrb[0].mxu0 %v242
      %v817 = vpop.f32.mrb[0].mxu0
      %v818 = vadd.f32 %v664, %v817
      %v819 = vpop.f32.mrb[0].mxu0
      %820 = vmatprep.mubr.f32.mxu0 %v275
      %821 = vmatmul.mubr.f32.gmra.mrb[0].mxu0 %v243
      %v822 = vpop.f32.mrb[0].mxu0
      %v823 = vadd.f32 %v664, %v822
      %v824 = vpop.f32.mrb[0].mxu0
      %825 = vmatprep.mubr.f32.mxu0 %v276
      %826 = vmatmul.mubr.f32.gmra.mrb[0].mxu0 %v244
      %v827 = vpop.f32.mrb[0].mxu0
      %v828 = vadd.f32 %v664, %v827
      %v829 = vpop.f32.mrb[0].mxu0
      %830 = vmatprep.mubr.f32.mxu0 %v277
      %831 = vmatmul.mubr.f32.gmra.mrb[0].mxu0 %v245
      %v832 = vpop.f32.mrb[0].mxu0
      %v833 = vadd.f32 %v664, %v832
      %v834 = vpop.f32.mrb[0].mxu0
      %835 = vmatprep.mubr.f32.mxu0 %v278
      %836 = vmatmul.mubr.f32.gmra.mrb[0].mxu0 %v246
      %v837 = vpop.f32.mrb[0].mxu0
      %v838 = vadd.f32 %v664, %v837
      %v839 = vpop.f32.mrb[0].mxu0
      %840 = vmatprep.mubr.f32.mxu0 %v279
      %841 = vmatmul.mubr.f32.gmra.mrb[0].mxu0 %v247
      %v842 = vpop.f32.mrb[0].mxu0
      %v843 = vadd.f32 %v664, %v842
      %v844 = vpop.f32.mrb[0].mxu0
      %845 = vmatprep.mubr.f32.mxu0 %v280
      %846 = vmatmul.mubr.f32.gmra.mrb[0].mxu0 %v248
      %v847 = vpop.f32.mrb[0].mxu0
      %v848 = vadd.f32 %v664, %v847
      %v849 = vpop.f32.mrb[0].mxu0
      %850 = vmatprep.mubr.f32.mxu0 %v281
      %851 = vmatmul.mubr.f32.gmra.mrb[0].mxu0 %v249
      %v852 = vpop.f32.mrb[0].mxu0
      %v853 = vadd.f32 %v664, %v852
      %v854 = vpop.f32.mrb[0].mxu0
      %855 = vmatprep.mubr.f32.mxu0 %v282
      %856 = vmatmul.mubr.f32.gmra.mrb[0].mxu0 %v250
      %v857 = vpop.f32.mrb[0].mxu0
      %v858 = vadd.f32 %v664, %v857
      %v859 = vpop.f32.mrb[0].mxu0
      %860 = vmatprep.mubr.f32.mxu0 %v283
      %861 = vmatmul.mubr.f32.gmra.mrb[0].mxu0 %v251
      %v862 = vpop.f32.mrb[0].mxu0
      %v863 = vadd.f32 %v664, %v862
      %v864 = vpop.f32.mrb[0].mxu0
      %865 = vmatprep.mubr.f32.mxu0 %v284
      %866 = vmatmul.mubr.f32.gmra.mrb[0].mxu0 %v252
      %v867 = vpop.f32.mrb[0].mxu0
      %v868 = vadd.f32 %v664, %v867
      %v869 = vpop.f32.mrb[0].mxu0
      %870 = vmatprep.mubr.f32.mxu0 %v285
      %871 = vmatmul.mubr.f32.gmra.mrb[0].mxu0 %v253
      %v872 = vpop.f32.mrb[0].mxu0
      %v873 = vadd.f32 %v664, %v872
      %v874 = vpop.f32.mrb[0].mxu0
      %875 = vmatprep.mubr.f32.mxu0 %v286
      %876 = vmatmul.mubr.f32.gmra.mrb[0].mxu0 %v254
      %v877 = vpop.f32.mrb[0].mxu0
      %v878 = vadd.f32 %v664, %v877
      %v879 = vpop.f32.mrb[0].mxu0
      %880 = vmatprep.mubr.f32.mxu0 %v287
      %881 = vmatmul.mubr.f32.gmra.mrb[0].mxu0 %v255
      %v882 = vpop.f32.mrb[0].mxu0
      %v883 = vadd.f32 %v664, %v882
      %v884 = vpop.f32.mrb[0].mxu0
      %885 = vmatprep.mubr.f32.mxu0 %v288
      %886 = vmatmul.mubr.f32.gmra.mrb[0].mxu0 %v256
      %v887 = vpop.f32.mrb[0].mxu0
      %v888 = vadd.f32 %v664, %v887
      %v889 = vpop.f32.mrb[0].mxu0
      %890 = vdwg.mxu0
      %891 = vmatprep.subr.mxu0 0.0
      %892 = vmatpush1.msra.mxu0 %v547
      %893 = vmatprep.subr.mxu0 0.0
      %894 = vmatpush1.msra.mxu0 %v548
      %895 = vmatprep.subr.mxu0 0.0
      %896 = vmatpush1.msra.mxu0 %v549
      %897 = vmatprep.subr.mxu0 0.0
      %898 = vmatpush1.msra.mxu0 %v550
      %899 = vmatprep.subr.mxu0 0.0
      %900 = vmatpush1.msra.mxu0 %v551
      %901 = vmatprep.subr.mxu0 0.0
      %902 = vmatpush1.msra.mxu0 %v552
      %903 = vmatprep.subr.mxu0 0.0
      %904 = vmatpush1.msra.mxu0 %v553
      %905 = vmatprep.subr.mxu0 0.0
      %906 = vmatpush1.msra.mxu0 %v554
      %907 = vmatprep.subr.mxu0 0.0
      %908 = vmatpush1.msra.mxu0 %v555
      %909 = vmatprep.subr.mxu0 0.0
      %910 = vmatpush1.msra.mxu0 %v556
      %911 = vmatprep.subr.mxu0 0.0
      %912 = vmatpush1.msra.mxu0 %v557
      %913 = vmatprep.subr.mxu0 0.0
      %914 = vmatpush1.msra.mxu0 %v558
      %915 = vmatprep.subr.mxu0 0.0
      %916 = vmatpush1.msra.mxu0 %v559
      %917 = vmatprep.subr.mxu0 0.0
      %918 = vmatpush1.msra.mxu0 %v560
      %919 = vmatprep.subr.mxu0 0.0
      %920 = vmatpush1.msra.mxu0 %v561
      %921 = vmatprep.subr.mxu0 0.0
      %922 = vmatpush1.msra.mxu0 %v562
      %923 = vmatprep.subr.mxu0 0.0
      %924 = vmatpush1.msra.mxu0 %v563
      %925 = vmatprep.subr.mxu0 0.0
      %926 = vmatpush1.msra.mxu0 %v564
      %927 = vmatprep.subr.mxu0 0.0
      %928 = vmatpush1.msra.mxu0 %v565
      %929 = vmatprep.subr.mxu0 0.0
      %930 = vmatpush1.msra.mxu0 %v566
      %931 = vmatprep.subr.mxu0 0.0
      %932 = vmatpush1.msra.mxu0 %v567
      %933 = vmatprep.subr.mxu0 0.0
      %934 = vmatpush1.msra.mxu0 %v568
      %935 = vmatprep.subr.mxu0 0.0
      %936 = vmatpush1.msra.mxu0 %v569
      %937 = vmatprep.subr.mxu0 0.0
      %938 = vmatpush1.msra.mxu0 %v570
      %939 = vmatprep.subr.mxu0 0.0
      %940 = vmatpush1.msra.mxu0 %v571
      %941 = vmatprep.subr.mxu0 0.0
      %942 = vmatpush1.msra.mxu0 %v572
      %943 = vmatprep.subr.mxu0 0.0
      %944 = vmatpush1.msra.mxu0 %v573
      %945 = vmatprep.subr.mxu0 0.0
      %946 = vmatpush1.msra.mxu0 %v574
      %947 = vmatprep.subr.mxu0 0.0
      %948 = vmatpush1.msra.mxu0 %v575
      %949 = vmatprep.subr.mxu0 0.0
      %950 = vmatpush1.msra.mxu0 %v576
      %951 = vmatprep.subr.mxu0 0.0
      %952 = vmatpush1.msra.mxu0 %v577
      %953 = vmatprep.subr.mxu0 0.0
      %954 = vmatpush1.msra.mxu0 %v578
      %955 = vmatprep.mubr.f32.mxu0 %v322
      %956 = vmatmul.mubr.f32.gmra.mrb[0].mxu0 %v289
      %v957 = vpop.f32.mrb[0].mxu0
      %v958 = vadd.f32 %v733, %v957
      %v959 = vpop.f32.mrb[0].mxu0
      %960 = vmatprep.mubr.f32.mxu0 %v323
      %961 = vmatmul.mubr.f32.gmra.mrb[0].mxu0 %v290
      %v962 = vpop.f32.mrb[0].mxu0
      %v963 = vadd.f32 %v738, %v962
      %v964 = vpop.f32.mrb[0].mxu0
      %965 = vmatprep.mubr.f32.mxu0 %v324
      %966 = vmatmul.mubr.f32.gmra.mrb[0].mxu0 %v291
      %v967 = vpop.f32.mrb[0].mxu0
      %v968 = vadd.f32 %v743, %v967
      %v969 = vpop.f32.mrb[0].mxu0
      %970 = vmatprep.mubr.f32.mxu0 %v325
      %971 = vmatmul.mubr.f32.gmra.mrb[0].mxu0 %v292
      %v972 = vpop.f32.mrb[0].mxu0
      %v973 = vadd.f32 %v748, %v972
      %v974 = vpop.f32.mrb[0].mxu0
      %975 = vmatprep.mubr.f32.mxu0 %v326
      %976 = vmatmul.mubr.f32.gmra.mrb[0].mxu0 %v293
      %v977 = vpop.f32.mrb[0].mxu0
      %v978 = vadd.f32 %v753, %v977
      %v979 = vpop.f32.mrb[0].mxu0
      %980 = vmatprep.mubr.f32.mxu0 %v327
      %981 = vmatmul.mubr.f32.gmra.mrb[0].mxu0 %v294
      %v982 = vpop.f32.mrb[0].mxu0
      %v983 = vadd.f32 %v758, %v982
      %v984 = vpop.f32.mrb[0].mxu0
      %985 = vmatprep.mubr.f32.mxu0 %v328
      %986 = vmatmul.mubr.f32.gmra.mrb[0].mxu0 %v295
      %v987 = vpop.f32.mrb[0].mxu0
      %v988 = vadd.f32 %v763, %v987
      %v989 = vpop.f32.mrb[0].mxu0
      %990 = vmatprep.mubr.f32.mxu0 %v329
      %991 = vmatmul.mubr.f32.gmra.mrb[0].mxu0 %v296
      %v992 = vpop.f32.mrb[0].mxu0
      %v993 = vadd.f32 %v768, %v992
      %v994 = vpop.f32.mrb[0].mxu0
      %995 = vmatprep.mubr.f32.mxu0 %v330
      %996 = vmatmul.mubr.f32.gmra.mrb[0].mxu0 %v297
      %v997 = vpop.f32.mrb[0].mxu0
      %v998 = vadd.f32 %v773, %v997
      %v999 = vpop.f32.mrb[0].mxu0
      %1000 = vmatprep.mubr.f32.mxu0 %v331
      %1001 = vmatmul.mubr.f32.gmra.mrb[0].mxu0 %v298
      %v1002 = vpop.f32.mrb[0].mxu0
      %v1003 = vadd.f32 %v778, %v1002
      %v1004 = vpop.f32.mrb[0].mxu0
      %1005 = vmatprep.mubr.f32.mxu0 %v332
      %1006 = vmatmul.mubr.f32.gmra.mrb[0].mxu0 %v299
      %v1007 = vpop.f32.mrb[0].mxu0
      %v1008 = vadd.f32 %v783, %v1007
      %v1009 = vpop.f32.mrb[0].mxu0
      %1010 = vmatprep.mubr.f32.mxu0 %v333
      %1011 = vmatmul.mubr.f32.gmra.mrb[0].mxu0 %v300
      %v1012 = vpop.f32.mrb[0].mxu0
      %v1013 = vadd.f32 %v788, %v1012
      %v1014 = vpop.f32.mrb[0].mxu0
      %1015 = vmatprep.mubr.f32.mxu0 %v334
      %1016 = vmatmul.mubr.f32.gmra.mrb[0].mxu0 %v301
      %v1017 = vpop.f32.mrb[0].mxu0
      %v1018 = vadd.f32 %v793, %v1017
      %v1019 = vpop.f32.mrb[0].mxu0
      %1020 = vmatprep.mubr.f32.mxu0 %v335
      %1021 = vmatmul.mubr.f32.gmra.mrb[0].mxu0 %v302
      %v1022 = vpop.f32.mrb[0].mxu0
      %v1023 = vadd.f32 %v798, %v1022
      %v1024 = vpop.f32.mrb[0].mxu0
      %1025 = vmatprep.mubr.f32.mxu0 %v336
      %1026 = vmatmul.mubr.f32.gmra.mrb[0].mxu0 %v303
      %v1027 = vpop.f32.mrb[0].mxu0
      %v1028 = vadd.f32 %v803, %v1027
      %v1029 = vpop.f32.mrb[0].mxu0
      %1030 = vmatprep.mubr.f32.mxu0 %v337
      %1031 = vmatmul.mubr.f32.gmra.mrb[0].mxu0 %v304
      %v1032 = vpop.f32.mrb[0].mxu0
      %v1033 = vadd.f32 %v808, %v1032
      %v1034 = vpop.f32.mrb[0].mxu0
      %1035 = vmatprep.mubr.f32.mxu0 %v338
      %1036 = vmatmul.mubr.f32.gmra.mrb[0].mxu0 %v305
      %v1037 = vpop.f32.mrb[0].mxu0
      %v1038 = vadd.f32 %v813, %v1037
      %v1039 = vpop.f32.mrb[0].mxu0
      %1040 = vmatprep.mubr.f32.mxu0 %v339
      %1041 = vmatmul.mubr.f32.gmra.mrb[0].mxu0 %v306
      %v1042 = vpop.f32.mrb[0].mxu0
      %v1043 = vadd.f32 %v818, %v1042
      %v1044 = vpop.f32.mrb[0].mxu0
      %1045 = vmatprep.mubr.f32.mxu0 %v340
      %1046 = vmatmul.mubr.f32.gmra.mrb[0].mxu0 %v307
      %v1047 = vpop.f32.mrb[0].mxu0
      %v1048 = vadd.f32 %v823, %v1047
      %v1049 = vpop.f32.mrb[0].mxu0
      %1050 = vmatprep.mubr.f32.mxu0 %v341
      %1051 = vmatmul.mubr.f32.gmra.mrb[0].mxu0 %v308
      %v1052 = vpop.f32.mrb[0].mxu0
      %v1053 = vadd.f32 %v828, %v1052
      %v1054 = vpop.f32.mrb[0].mxu0
      %1055 = vmatprep.mubr.f32.mxu0 %v342
      %1056 = vmatmul.mubr.f32.gmra.mrb[0].mxu0 %v309
      %v1057 = vpop.f32.mrb[0].mxu0
      %v1058 = vadd.f32 %v833, %v1057
      %v1059 = vpop.f32.mrb[0].mxu0
      %1060 = vmatprep.mubr.f32.mxu0 %v343
      %1061 = vmatmul.mubr.f32.gmra.mrb[0].mxu0 %v310
      %v1062 = vpop.f32.mrb[0].mxu0
      %v1063 = vadd.f32 %v838, %v1062
      %v1064 = vpop.f32.mrb[0].mxu0
      %1065 = vmatprep.mubr.f32.mxu0 %v344
      %1066 = vmatmul.mubr.f32.gmra.mrb[0].mxu0 %v311
      %v1067 = vpop.f32.mrb[0].mxu0
      %v1068 = vadd.f32 %v843, %v1067
      %v1069 = vpop.f32.mrb[0].mxu0
      %1070 = vmatprep.mubr.f32.mxu0 %v345
      %1071 = vmatmul.mubr.f32.gmra.mrb[0].mxu0 %v312
      %v1072 = vpop.f32.mrb[0].mxu0
      %v1073 = vadd.f32 %v848, %v1072
      %v1074 = vpop.f32.mrb[0].mxu0
      %1075 = vmatprep.mubr.f32.mxu0 %v346
      %1076 = vmatmul.mubr.f32.gmra.mrb[0].mxu0 %v313
      %v1077 = vpop.f32.mrb[0].mxu0
      %v1078 = vadd.f32 %v853, %v1077
      %v1079 = vpop.f32.mrb[0].mxu0
      %1080 = vmatprep.mubr.f32.mxu0 %v347
      %1081 = vmatmul.mubr.f32.gmra.mrb[0].mxu0 %v314
      %v1082 = vpop.f32.mrb[0].mxu0
      %v1083 = vadd.f32 %v858, %v1082
      %v1084 = vpop.f32.mrb[0].mxu0
      %1085 = vmatprep.mubr.f32.mxu0 %v348
      %1086 = vmatmul.mubr.f32.gmra.mrb[0].mxu0 %v315
      %v1087 = vpop.f32.mrb[0].mxu0
      %v1088 = vadd.f32 %v863, %v1087
      %v1089 = vpop.f32.mrb[0].mxu0
      %1090 = vmatprep.mubr.f32.mxu0 %v349
      %1091 = vmatmul.mubr.f32.gmra.mrb[0].mxu0 %v316
      %v1092 = vpop.f32.mrb[0].mxu0
      %v1093 = vadd.f32 %v868, %v1092
      %v1094 = vpop.f32.mrb[0].mxu0
      %1095 = vmatprep.mubr.f32.mxu0 %v350
      %1096 = vmatmul.mubr.f32.gmra.mrb[0].mxu0 %v317
      %v1097 = vpop.f32.mrb[0].mxu0
      %v1098 = vadd.f32 %v873, %v1097
      %v1099 = vpop.f32.mrb[0].mxu0
      %1100 = vmatprep.mubr.f32.mxu0 %v351
      %1101 = vmatmul.mubr.f32.gmra.mrb[0].mxu0 %v318
      %v1102 = vpop.f32.mrb[0].mxu0
      %v1103 = vadd.f32 %v878, %v1102
      %v1104 = vpop.f32.mrb[0].mxu0
      %1105 = vmatprep.mubr.f32.mxu0 %v352
      %1106 = vmatmul.mubr.f32.gmra.mrb[0].mxu0 %v319
      %v1107 = vpop.f32.mrb[0].mxu0
      %v1108 = vadd.f32 %v883, %v1107
      %v1109 = vpop.f32.mrb[0].mxu0
      %1110 = vmatprep.mubr.f32.mxu0 %v353
      %1111 = vmatmul.mubr.f32.gmra.mrb[0].mxu0 %v320
      %v1112 = vpop.f32.mrb[0].mxu0
      %v1113 = vadd.f32 %v888, %v1112
      %v1114 = vpop.f32.mrb[0].mxu0
      %1115 = vdwg.mxu0
      %1116 = vmatprep.subr.mxu0 0.0
      %1117 = vmatpush1.msra.mxu0 %v579
      %1118 = vmatprep.subr.mxu0 0.0
      %1119 = vmatpush1.msra.mxu0 %v580
      %1120 = vmatprep.subr.mxu0 0.0
      %1121 = vmatpush1.msra.mxu0 %v581
      %1122 = vmatprep.subr.mxu0 0.0
      %1123 = vmatpush1.msra.mxu0 %v582
      %1124 = vmatprep.subr.mxu0 0.0
      %1125 = vmatpush1.msra.mxu0 %v583
      %1126 = vmatprep.subr.mxu0 0.0
      %1127 = vmatpush1.msra.mxu0 %v584
      %1128 = vmatprep.subr.mxu0 0.0
      %1129 = vmatpush1.msra.mxu0 %v585
      %1130 = vmatprep.subr.mxu0 0.0
      %1131 = vmatpush1.msra.mxu0 %v586
      %1132 = vmatprep.subr.mxu0 0.0
      %1133 = vmatpush1.msra.mxu0 %v587
      %1134 = vmatprep.subr.mxu0 0.0
      %1135 = vmatpush1.msra.mxu0 %v588
      %1136 = vmatprep.subr.mxu0 0.0
      %1137 = vmatpush1.msra.mxu0 %v589
      %1138 = vmatprep.subr.mxu0 0.0
      %1139 = vmatpush1.msra.mxu0 %v590
      %1140 = vmatprep.subr.mxu0 0.0
      %1141 = vmatpush1.msra.mxu0 %v591
      %1142 = vmatprep.subr.mxu0 0.0
      %1143 = vmatpush1.msra.mxu0 %v592
      %1144 = vmatprep.subr.mxu0 0.0
      %1145 = vmatpush1.msra.mxu0 %v593
      %1146 = vmatprep.subr.mxu0 0.0
      %1147 = vmatpush1.msra.mxu0 %v594
      %1148 = vmatprep.subr.mxu0 0.0
      %1149 = vmatpush1.msra.mxu0 %v595
      %1150 = vmatprep.subr.mxu0 0.0
      %1151 = vmatpush1.msra.mxu0 %v596
      %1152 = vmatprep.subr.mxu0 0.0
      %1153 = vmatpush1.msra.mxu0 %v597
      %1154 = vmatprep.subr.mxu0 0.0
      %1155 = vmatpush1.msra.mxu0 %v598
      %1156 = vmatprep.subr.mxu0 0.0
      %1157 = vmatpush1.msra.mxu0 %v599
      %1158 = vmatprep.subr.mxu0 0.0
      %1159 = vmatpush1.msra.mxu0 %v600
      %1160 = vmatprep.subr.mxu0 0.0
      %1161 = vmatpush1.msra.mxu0 %v601
      %1162 = vmatprep.subr.mxu0 0.0
      %1163 = vmatpush1.msra.mxu0 %v602
      %1164 = vmatprep.subr.mxu0 0.0
      %1165 = vmatpush1.msra.mxu0 %v603
      %1166 = vmatprep.subr.mxu0 0.0
      %1167 = vmatpush1.msra.mxu0 %v604
      %1168 = vmatprep.subr.mxu0 0.0
      %1169 = vmatpush1.msra.mxu0 %v605
      %1170 = vmatprep.subr.mxu0 0.0
      %1171 = vmatpush1.msra.mxu0 %v606
      %1172 = vmatprep.subr.mxu0 0.0
      %1173 = vmatpush1.msra.mxu0 %v607
      %1174 = vmatprep.subr.mxu0 0.0
      %1175 = vmatpush1.msra.mxu0 %v608
      %1176 = vmatprep.subr.mxu0 0.0
      %1177 = vmatpush1.msra.mxu0 %v609
      %1178 = vmatprep.subr.mxu0 0.0
      %1179 = vmatpush1.msra.mxu0 %v610
      %1180 = vmatprep.mubr.f32.mxu0 %v386
      %1181 = vmatmul.mubr.f32.gmra.mrb[0].mxu0 %v354
      %v1182 = vpop.f32.mrb[0].mxu0
      %v1183 = vadd.f32 %v958, %v1182
      %v1184 = vpop.f32.mrb[0].mxu0
      %1185 = vmatprep.mubr.f32.mxu0 %v387
      %1186 = vmatmul.mubr.f32.gmra.mrb[0].mxu0 %v355
      %v1187 = vpop.f32.mrb[0].mxu0
      %v1188 = vadd.f32 %v963, %v1187
      %v1189 = vpop.f32.mrb[0].mxu0
      %1190 = vmatprep.mubr.f32.mxu0 %v388
      %1191 = vmatmul.mubr.f32.gmra.mrb[0].mxu0 %v356
      %v1192 = vpop.f32.mrb[0].mxu0
      %v1193 = vadd.f32 %v968, %v1192
      %v1194 = vpop.f32.mrb[0].mxu0
      %1195 = vmatprep.mubr.f32.mxu0 %v389
      %1196 = vmatmul.mubr.f32.gmra.mrb[0].mxu0 %v357
      %v1197 = vpop.f32.mrb[0].mxu0
      %v1198 = vadd.f32 %v973, %v1197
      %v1199 = vpop.f32.mrb[0].mxu0
      %1200 = vmatprep.mubr.f32.mxu0 %v390
      %1201 = vmatmul.mubr.f32.gmra.mrb[0].mxu0 %v358
      %v1202 = vpop.f32.mrb[0].mxu0
      %v1203 = vadd.f32 %v978, %v1202
      %v1204 = vpop.f32.mrb[0].mxu0
      %1205 = vmatprep.mubr.f32.mxu0 %v391
      %1206 = vmatmul.mubr.f32.gmra.mrb[0].mxu0 %v359
      %v1207 = vpop.f32.mrb[0].mxu0
      %v1208 = vadd.f32 %v983, %v1207
      %v1209 = vpop.f32.mrb[0].mxu0
      %1210 = vmatprep.mubr.f32.mxu0 %v392
      %1211 = vmatmul.mubr.f32.gmra.mrb[0].mxu0 %v360
      %v1212 = vpop.f32.mrb[0].mxu0
      %v1213 = vadd.f32 %v988, %v1212
      %v1214 = vpop.f32.mrb[0].mxu0
      %1215 = vmatprep.mubr.f32.mxu0 %v393
      %1216 = vmatmul.mubr.f32.gmra.mrb[0].mxu0 %v361
      %v1217 = vpop.f32.mrb[0].mxu0
      %v1218 = vadd.f32 %v993, %v1217
      %v1219 = vpop.f32.mrb[0].mxu0
      %1220 = vmatprep.mubr.f32.mxu0 %v394
      %1221 = vmatmul.mubr.f32.gmra.mrb[0].mxu0 %v362
      %v1222 = vpop.f32.mrb[0].mxu0
      %v1223 = vadd.f32 %v998, %v1222
      %v1224 = vpop.f32.mrb[0].mxu0
      %1225 = vmatprep.mubr.f32.mxu0 %v395
      %1226 = vmatmul.mubr.f32.gmra.mrb[0].mxu0 %v363
      %v1227 = vpop.f32.mrb[0].mxu0
      %v1228 = vadd.f32 %v1003, %v1227
      %v1229 = vpop.f32.mrb[0].mxu0
      %1230 = vmatprep.mubr.f32.mxu0 %v396
      %1231 = vmatmul.mubr.f32.gmra.mrb[0].mxu0 %v364
      %v1232 = vpop.f32.mrb[0].mxu0
      %v1233 = vadd.f32 %v1008, %v1232
      %v1234 = vpop.f32.mrb[0].mxu0
      %1235 = vmatprep.mubr.f32.mxu0 %v397
      %1236 = vmatmul.mubr.f32.gmra.mrb[0].mxu0 %v365
      %v1237 = vpop.f32.mrb[0].mxu0
      %v1238 = vadd.f32 %v1013, %v1237
      %v1239 = vpop.f32.mrb[0].mxu0
      %1240 = vmatprep.mubr.f32.mxu0 %v398
      %1241 = vmatmul.mubr.f32.gmra.mrb[0].mxu0 %v366
      %v1242 = vpop.f32.mrb[0].mxu0
      %v1243 = vadd.f32 %v1018, %v1242
      %v1244 = vpop.f32.mrb[0].mxu0
      %1245 = vmatprep.mubr.f32.mxu0 %v399
      %1246 = vmatmul.mubr.f32.gmra.mrb[0].mxu0 %v367
      %v1247 = vpop.f32.mrb[0].mxu0
      %v1248 = vadd.f32 %v1023, %v1247
      %v1249 = vpop.f32.mrb[0].mxu0
      %1250 = vmatprep.mubr.f32.mxu0 %v400
      %1251 = vmatmul.mubr.f32.gmra.mrb[0].mxu0 %v368
      %v1252 = vpop.f32.mrb[0].mxu0
      %v1253 = vadd.f32 %v1028, %v1252
      %v1254 = vpop.f32.mrb[0].mxu0
      %1255 = vmatprep.mubr.f32.mxu0 %v401
      %1256 = vmatmul.mubr.f32.gmra.mrb[0].mxu0 %v369
      %v1257 = vpop.f32.mrb[0].mxu0
      %v1258 = vadd.f32 %v1033, %v1257
      %v1259 = vpop.f32.mrb[0].mxu0
      %1260 = vmatprep.mubr.f32.mxu0 %v402
      %1261 = vmatmul.mubr.f32.gmra.mrb[0].mxu0 %v370
      %v1262 = vpop.f32.mrb[0].mxu0
      %v1263 = vadd.f32 %v1038, %v1262
      %v1264 = vpop.f32.mrb[0].mxu0
      %1265 = vmatprep.mubr.f32.mxu0 %v403
      %1266 = vmatmul.mubr.f32.gmra.mrb[0].mxu0 %v371
      %v1267 = vpop.f32.mrb[0].mxu0
      %v1268 = vadd.f32 %v1043, %v1267
      %v1269 = vpop.f32.mrb[0].mxu0
      %1270 = vmatprep.mubr.f32.mxu0 %v404
      %1271 = vmatmul.mubr.f32.gmra.mrb[0].mxu0 %v372
      %v1272 = vpop.f32.mrb[0].mxu0
      %v1273 = vadd.f32 %v1048, %v1272
      %v1274 = vpop.f32.mrb[0].mxu0
      %1275 = vmatprep.mubr.f32.mxu0 %v405
      %1276 = vmatmul.mubr.f32.gmra.mrb[0].mxu0 %v373
      %v1277 = vpop.f32.mrb[0].mxu0
      %v1278 = vadd.f32 %v1053, %v1277
      %v1279 = vpop.f32.mrb[0].mxu0
      %1280 = vmatprep.mubr.f32.mxu0 %v406
      %1281 = vmatmul.mubr.f32.gmra.mrb[0].mxu0 %v374
      %v1282 = vpop.f32.mrb[0].mxu0
      %v1283 = vadd.f32 %v1058, %v1282
      %v1284 = vpop.f32.mrb[0].mxu0
      %1285 = vmatprep.mubr.f32.mxu0 %v407
      %1286 = vmatmul.mubr.f32.gmra.mrb[0].mxu0 %v375
      %v1287 = vpop.f32.mrb[0].mxu0
      %v1288 = vadd.f32 %v1063, %v1287
      %v1289 = vpop.f32.mrb[0].mxu0
      %1290 = vmatprep.mubr.f32.mxu0 %v408
      %1291 = vmatmul.mubr.f32.gmra.mrb[0].mxu0 %v376
      %v1292 = vpop.f32.mrb[0].mxu0
      %v1293 = vadd.f32 %v1068, %v1292
      %v1294 = vpop.f32.mrb[0].mxu0
      %1295 = vmatprep.mubr.f32.mxu0 %v409
      %1296 = vmatmul.mubr.f32.gmra.mrb[0].mxu0 %v377
      %v1297 = vpop.f32.mrb[0].mxu0
      %v1298 = vadd.f32 %v1073, %v1297
      %v1299 = vpop.f32.mrb[0].mxu0
      %1300 = vmatprep.mubr.f32.mxu0 %v410
      %1301 = vmatmul.mubr.f32.gmra.mrb[0].mxu0 %v378
      %v1302 = vpop.f32.mrb[0].mxu0
      %v1303 = vadd.f32 %v1078, %v1302
      %v1304 = vpop.f32.mrb[0].mxu0
      %1305 = vmatprep.mubr.f32.mxu0 %v411
      %1306 = vmatmul.mubr.f32.gmra.mrb[0].mxu0 %v379
      %v1307 = vpop.f32.mrb[0].mxu0
      %v1308 = vadd.f32 %v1083, %v1307
      %v1309 = vpop.f32.mrb[0].mxu0
      %1310 = vmatprep.mubr.f32.mxu0 %v412
      %1311 = vmatmul.mubr.f32.gmra.mrb[0].mxu0 %v380
      %v1312 = vpop.f32.mrb[0].mxu0
      %v1313 = vadd.f32 %v1088, %v1312
      %v1314 = vpop.f32.mrb[0].mxu0
      %1315 = vmatprep.mubr.f32.mxu0 %v413
      %1316 = vmatmul.mubr.f32.gmra.mrb[0].mxu0 %v381
      %v1317 = vpop.f32.mrb[0].mxu0
      %v1318 = vadd.f32 %v1093, %v1317
      %v1319 = vpop.f32.mrb[0].mxu0
      %1320 = vmatprep.mubr.f32.mxu0 %v414
      %1321 = vmatmul.mubr.f32.gmra.mrb[0].mxu0 %v382
      %v1322 = vpop.f32.mrb[0].mxu0
      %v1323 = vadd.f32 %v1098, %v1322
      %v1324 = vpop.f32.mrb[0].mxu0
      %1325 = vmatprep.mubr.f32.mxu0 %v415
      %1326 = vmatmul.mubr.f32.gmra.mrb[0].mxu0 %v383
      %v1327 = vpop.f32.mrb[0].mxu0
      %v1328 = vadd.f32 %v1103, %v1327
      %v1329 = vpop.f32.mrb[0].mxu0
      %1330 = vmatprep.mubr.f32.mxu0 %v416
      %1331 = vmatmul.mubr.f32.gmra.mrb[0].mxu0 %v384
      %v1332 = vpop.f32.mrb[0].mxu0
      %v1333 = vadd.f32 %v1108, %v1332
      %v1334 = vpop.f32.mrb[0].mxu0
      %1335 = vmatprep.mubr.f32.mxu0 %v417
      %1336 = vmatmul.mubr.f32.gmra.mrb[0].mxu0 %v385
      %v1337 = vpop.f32.mrb[0].mxu0
      %v1338 = vadd.f32 %v1113, %v1337
      %v1339 = vpop.f32.mrb[0].mxu0
      %1340 = vdwg.mxu0
      %1341 = vmatprep.subr.mxu0 0.0
      %1342 = vmatpush1.msra.mxu0 %v611
      %1343 = vmatprep.subr.mxu0 0.0
      %1344 = vmatpush1.msra.mxu0 %v612
      %1345 = vmatprep.subr.mxu0 0.0
      %1346 = vmatpush1.msra.mxu0 %v613
      %1347 = vmatprep.subr.mxu0 0.0
      %1348 = vmatpush1.msra.mxu0 %v614
      %1349 = vmatprep.subr.mxu0 0.0
      %1350 = vmatpush1.msra.mxu0 %v615
      %1351 = vmatprep.subr.mxu0 0.0
      %1352 = vmatpush1.msra.mxu0 %v616
      %1353 = vmatprep.subr.mxu0 0.0
      %1354 = vmatpush1.msra.mxu0 %v617
      %1355 = vmatprep.subr.mxu0 0.0
      %1356 = vmatpush1.msra.mxu0 %v618
      %1357 = vmatprep.subr.mxu0 0.0
      %1358 = vmatpush1.msra.mxu0 %v619
      %1359 = vmatprep.subr.mxu0 0.0
      %1360 = vmatpush1.msra.mxu0 %v620
      %1361 = vmatprep.subr.mxu0 0.0
      %1362 = vmatpush1.msra.mxu0 %v621
      %1363 = vmatprep.subr.mxu0 0.0
      %1364 = vmatpush1.msra.mxu0 %v622
      %1365 = vmatprep.subr.mxu0 0.0
      %1366 = vmatpush1.msra.mxu0 %v623
      %1367 = vmatprep.subr.mxu0 0.0
      %1368 = vmatpush1.msra.mxu0 %v624
      %1369 = vmatprep.subr.mxu0 0.0
      %1370 = vmatpush1.msra.mxu0 %v625
      %1371 = vmatprep.subr.mxu0 0.0
      %1372 = vmatpush1.msra.mxu0 %v626
      %1373 = vmatprep.subr.mxu0 0.0
      %1374 = vmatpush1.msra.mxu0 %v627
      %1375 = vmatprep.subr.mxu0 0.0
      %1376 = vmatpush1.msra.mxu0 %v628
      %1377 = vmatprep.subr.mxu0 0.0
      %1378 = vmatpush1.msra.mxu0 %v629
      %1379 = vmatprep.subr.mxu0 0.0
      %1380 = vmatpush1.msra.mxu0 %v630
      %1381 = vmatprep.subr.mxu0 0.0
      %1382 = vmatpush1.msra.mxu0 %v631
      %1383 = vmatprep.subr.mxu0 0.0
      %1384 = vmatpush1.msra.mxu0 %v632
      %1385 = vmatprep.subr.mxu0 0.0
      %1386 = vmatpush1.msra.mxu0 %v633
      %1387 = vmatprep.subr.mxu0 0.0
      %1388 = vmatpush1.msra.mxu0 %v634
      %1389 = vmatprep.subr.mxu0 0.0
      %1390 = vmatpush1.msra.mxu0 %v635
      %1391 = vmatprep.subr.mxu0 0.0
      %1392 = vmatpush1.msra.mxu0 %v636
      %1393 = vmatprep.subr.mxu0 0.0
      %1394 = vmatpush1.msra.mxu0 %v637
      %1395 = vmatprep.subr.mxu0 0.0
      %1396 = vmatpush1.msra.mxu0 %v638
      %1397 = vmatprep.subr.mxu0 0.0
      %1398 = vmatpush1.msra.mxu0 %v639
      %1399 = vmatprep.subr.mxu0 0.0
      %1400 = vmatpush1.msra.mxu0 %v640
      %1401 = vmatprep.subr.mxu0 0.0
      %1402 = vmatpush1.msra.mxu0 %v641
      %1403 = vmatprep.subr.mxu0 0.0
      %1404 = vmatpush1.msra.mxu0 %v642
      %1405 = vmatprep.mubr.f32.mxu0 %v451
      %1406 = vmatmul.mubr.f32.gmra.mrb[0].mxu0 %v419
      %v1407 = vpop.f32.mrb[0].mxu0
      %v1408 = vadd.f32 %v1183, %v1407
      %v1409 = vpop.f32.mrb[0].mxu0
      %1410 = vmatprep.mubr.f32.mxu0 %v452
      %1411 = vmatmul.mubr.f32.gmra.mrb[0].mxu0 %v420
      %v1412 = vpop.f32.mrb[0].mxu0
      %v1413 = vadd.f32 %v1188, %v1412
      %v1414 = vpop.f32.mrb[0].mxu0
      %1415 = vmatprep.mubr.f32.mxu0 %v453
      %1416 = vmatmul.mubr.f32.gmra.mrb[0].mxu0 %v421
      %v1417 = vpop.f32.mrb[0].mxu0
      %v1418 = vadd.f32 %v1193, %v1417
      %v1419 = vpop.f32.mrb[0].mxu0
      %1420 = vmatprep.mubr.f32.mxu0 %v454
      %1421 = vmatmul.mubr.f32.gmra.mrb[0].mxu0 %v422
      %v1422 = vpop.f32.mrb[0].mxu0
      %v1423 = vadd.f32 %v1198, %v1422
      %v1424 = vpop.f32.mrb[0].mxu0
      %1425 = vmatprep.mubr.f32.mxu0 %v455
      %1426 = vmatmul.mubr.f32.gmra.mrb[0].mxu0 %v423
      %v1427 = vpop.f32.mrb[0].mxu0
      %v1428 = vadd.f32 %v1203, %v1427
      %v1429 = vpop.f32.mrb[0].mxu0
      %1430 = vmatprep.mubr.f32.mxu0 %v456
      %1431 = vmatmul.mubr.f32.gmra.mrb[0].mxu0 %v424
      %v1432 = vpop.f32.mrb[0].mxu0
      %v1433 = vadd.f32 %v1208, %v1432
      %v1434 = vpop.f32.mrb[0].mxu0
      %1435 = vmatprep.mubr.f32.mxu0 %v457
      %1436 = vmatmul.mubr.f32.gmra.mrb[0].mxu0 %v425
      %v1437 = vpop.f32.mrb[0].mxu0
      %v1438 = vadd.f32 %v1213, %v1437
      %v1439 = vpop.f32.mrb[0].mxu0
      %1440 = vmatprep.mubr.f32.mxu0 %v458
      %1441 = vmatmul.mubr.f32.gmra.mrb[0].mxu0 %v426
      %v1442 = vpop.f32.mrb[0].mxu0
      %v1443 = vadd.f32 %v1218, %v1442
      %v1444 = vpop.f32.mrb[0].mxu0
      %1445 = vmatprep.mubr.f32.mxu0 %v459
      %1446 = vmatmul.mubr.f32.gmra.mrb[0].mxu0 %v427
      %v1447 = vpop.f32.mrb[0].mxu0
      %v1448 = vadd.f32 %v1223, %v1447
      %v1449 = vpop.f32.mrb[0].mxu0
      %1450 = vmatprep.mubr.f32.mxu0 %v460
      %1451 = vmatmul.mubr.f32.gmra.mrb[0].mxu0 %v428
      %v1452 = vpop.f32.mrb[0].mxu0
      %v1453 = vadd.f32 %v1228, %v1452
      %v1454 = vpop.f32.mrb[0].mxu0
      %1455 = vmatprep.mubr.f32.mxu0 %v461
      %1456 = vmatmul.mubr.f32.gmra.mrb[0].mxu0 %v429
      %v1457 = vpop.f32.mrb[0].mxu0
      %v1458 = vadd.f32 %v1233, %v1457
      %v1459 = vpop.f32.mrb[0].mxu0
      %1460 = vmatprep.mubr.f32.mxu0 %v462
      %1461 = vmatmul.mubr.f32.gmra.mrb[0].mxu0 %v430
      %v1462 = vpop.f32.mrb[0].mxu0
      %v1463 = vadd.f32 %v1238, %v1462
      %v1464 = vpop.f32.mrb[0].mxu0
      %1465 = vmatprep.mubr.f32.mxu0 %v463
      %1466 = vmatmul.mubr.f32.gmra.mrb[0].mxu0 %v431
      %v1467 = vpop.f32.mrb[0].mxu0
      %v1468 = vadd.f32 %v1243, %v1467
      %v1469 = vpop.f32.mrb[0].mxu0
      %1470 = vmatprep.mubr.f32.mxu0 %v464
      %1471 = vmatmul.mubr.f32.gmra.mrb[0].mxu0 %v432
      %v1472 = vpop.f32.mrb[0].mxu0
      %v1473 = vadd.f32 %v1248, %v1472
      %v1474 = vpop.f32.mrb[0].mxu0
      %1475 = vmatprep.mubr.f32.mxu0 %v465
      %1476 = vmatmul.mubr.f32.gmra.mrb[0].mxu0 %v433
      %v1477 = vpop.f32.mrb[0].mxu0
      %v1478 = vadd.f32 %v1253, %v1477
      %v1479 = vpop.f32.mrb[0].mxu0
      %1480 = vmatprep.mubr.f32.mxu0 %v466
      %1481 = vmatmul.mubr.f32.gmra.mrb[0].mxu0 %v434
      %v1482 = vpop.f32.mrb[0].mxu0
      %v1483 = vadd.f32 %v1258, %v1482
      %v1484 = vpop.f32.mrb[0].mxu0
      %1485 = vmatprep.mubr.f32.mxu0 %v467
      %1486 = vmatmul.mubr.f32.gmra.mrb[0].mxu0 %v435
      %v1487 = vpop.f32.mrb[0].mxu0
      %v1488 = vadd.f32 %v1263, %v1487
      %v1489 = vpop.f32.mrb[0].mxu0
      %1490 = vmatprep.mubr.f32.mxu0 %v468
      %1491 = vmatmul.mubr.f32.gmra.mrb[0].mxu0 %v436
      %v1492 = vpop.f32.mrb[0].mxu0
      %v1493 = vadd.f32 %v1268, %v1492
      %v1494 = vpop.f32.mrb[0].mxu0
      %1495 = vmatprep.mubr.f32.mxu0 %v469
      %1496 = vmatmul.mubr.f32.gmra.mrb[0].mxu0 %v437
      %v1497 = vpop.f32.mrb[0].mxu0
      %v1498 = vadd.f32 %v1273, %v1497
      %v1499 = vpop.f32.mrb[0].mxu0
      %1500 = vmatprep.mubr.f32.mxu0 %v470
      %1501 = vmatmul.mubr.f32.gmra.mrb[0].mxu0 %v438
      %v1502 = vpop.f32.mrb[0].mxu0
      %v1503 = vadd.f32 %v1278, %v1502
      %v1504 = vpop.f32.mrb[0].mxu0
      %1505 = vmatprep.mubr.f32.mxu0 %v471
      %1506 = vmatmul.mubr.f32.gmra.mrb[0].mxu0 %v439
      %v1507 = vpop.f32.mrb[0].mxu0
      %v1508 = vadd.f32 %v1283, %v1507
      %v1509 = vpop.f32.mrb[0].mxu0
      %1510 = vmatprep.mubr.f32.mxu0 %v472
      %1511 = vmatmul.mubr.f32.gmra.mrb[0].mxu0 %v440
      %v1512 = vpop.f32.mrb[0].mxu0
      %v1513 = vadd.f32 %v1288, %v1512
      %v1514 = vpop.f32.mrb[0].mxu0
      %1515 = vmatprep.mubr.f32.mxu0 %v473
      %1516 = vmatmul.mubr.f32.gmra.mrb[0].mxu0 %v441
      %v1517 = vpop.f32.mrb[0].mxu0
      %v1518 = vadd.f32 %v1293, %v1517
      %v1519 = vpop.f32.mrb[0].mxu0
      %1520 = vmatprep.mubr.f32.mxu0 %v474
      %1521 = vmatmul.mubr.f32.gmra.mrb[0].mxu0 %v442
      %v1522 = vpop.f32.mrb[0].mxu0
      %v1523 = vadd.f32 %v1298, %v1522
      %v1524 = vpop.f32.mrb[0].mxu0
      %1525 = vmatprep.mubr.f32.mxu0 %v475
      %1526 = vmatmul.mubr.f32.gmra.mrb[0].mxu0 %v443
      %v1527 = vpop.f32.mrb[0].mxu0
      %v1528 = vadd.f32 %v1303, %v1527
      %v1529 = vpop.f32.mrb[0].mxu0
      %1530 = vmatprep.mubr.f32.mxu0 %v476
      %1531 = vmatmul.mubr.f32.gmra.mrb[0].mxu0 %v444
      %v1532 = vpop.f32.mrb[0].mxu0
      %v1533 = vadd.f32 %v1308, %v1532
      %v1534 = vpop.f32.mrb[0].mxu0
      %1535 = vmatprep.mubr.f32.mxu0 %v477
      %1536 = vmatmul.mubr.f32.gmra.mrb[0].mxu0 %v445
      %v1537 = vpop.f32.mrb[0].mxu0
      %v1538 = vadd.f32 %v1313, %v1537
      %v1539 = vpop.f32.mrb[0].mxu0
      %1540 = vmatprep.mubr.f32.mxu0 %v478
      %1541 = vmatmul.mubr.f32.gmra.mrb[0].mxu0 %v446
      %v1542 = vpop.f32.mrb[0].mxu0
      %v1543 = vadd.f32 %v1318, %v1542
      %v1544 = vpop.f32.mrb[0].mxu0
      %1545 = vmatprep.mubr.f32.mxu0 %v479
      %1546 = vmatmul.mubr.f32.gmra.mrb[0].mxu0 %v447
      %v1547 = vpop.f32.mrb[0].mxu0
      %v1548 = vadd.f32 %v1323, %v1547
      %v1549 = vpop.f32.mrb[0].mxu0
      %1550 = vmatprep.mubr.f32.mxu0 %v480
      %1551 = vmatmul.mubr.f32.gmra.mrb[0].mxu0 %v448
      %v1552 = vpop.f32.mrb[0].mxu0
      %v1553 = vadd.f32 %v1328, %v1552
      %v1554 = vpop.f32.mrb[0].mxu0
      %1555 = vmatprep.mubr.f32.mxu0 %v481
      %1556 = vmatmul.mubr.f32.gmra.mrb[0].mxu0 %v449
      %v1557 = vpop.f32.mrb[0].mxu0
      %v1558 = vadd.f32 %v1333, %v1557
      %v1559 = vpop.f32.mrb[0].mxu0
      %1560 = vmatprep.mubr.f32.mxu0 %v482
      %1561 = vmatmul.mubr.f32.gmra.mrb[0].mxu0 %v450
      %v1562 = vpop.f32.mrb[0].mxu0
      %v1563 = vadd.f32 %v1338, %v1562
      %v1564 = vpop.f32.mrb[0].mxu0
      %1565 = vdwg.mxu0
      %1566 = vmatprep.subr.mxu0 0.0
      %1567 = vmatpush1.msra.mxu0 %v643
      %1568 = vmatprep.subr.mxu0 0.0
      %1569 = vmatpush1.msra.mxu0 %v644
      %1570 = vmatprep.subr.mxu0 0.0
      %1571 = vmatpush1.msra.mxu0 %v645
      %1572 = vmatprep.subr.mxu0 0.0
      %1573 = vmatpush1.msra.mxu0 %v646
      %1574 = vmatprep.subr.mxu0 0.0
      %1575 = vmatpush1.msra.mxu0 %v647
      %1576 = vmatprep.subr.mxu0 0.0
      %1577 = vmatpush1.msra.mxu0 %v648
      %1578 = vmatprep.subr.mxu0 0.0
      %1579 = vmatpush1.msra.mxu0 %v649
      %1580 = vmatprep.subr.mxu0 0.0
      %1581 = vmatpush1.msra.mxu0 %v650
      %1582 = vmatprep.subr.mxu0 0.0
      %1583 = vmatpush1.msra.mxu0 %v651
      %1584 = vmatprep.subr.mxu0 0.0
      %1585 = vmatpush1.msra.mxu0 %v652
      %1586 = vmatprep.subr.mxu0 0.0
      %1587 = vmatpush1.msra.mxu0 %v653
      %1588 = vmatprep.subr.mxu0 0.0
      %1589 = vmatpush1.msra.mxu0 %v654
      %1590 = vmatprep.subr.mxu0 0.0
      %1591 = vmatpush1.msra.mxu0 %v655
      %1592 = vmatprep.subr.mxu0 0.0
      %1593 = vmatpush1.msra.mxu0 %v656
      %1594 = vmatprep.subr.mxu0 0.0
      %1595 = vmatpush1.msra.mxu0 %v657
      %1596 = vmatprep.subr.mxu0 0.0
      %1597 = vmatpush1.msra.mxu0 %v658
      %1598 = vmatprep.subr.mxu0 0.0
      %1599 = vmatpush1.msra.mxu0 0.0
      %1600 = vmatprep.subr.mxu0 0.0
      %1601 = vmatpush1.msra.mxu0 0.0
      %1602 = vmatprep.subr.mxu0 0.0
      %1603 = vmatpush1.msra.mxu0 0.0
      %1604 = vmatprep.subr.mxu0 0.0
      %1605 = vmatpush1.msra.mxu0 0.0
      %1606 = vmatprep.subr.mxu0 0.0
      %1607 = vmatpush1.msra.mxu0 0.0
      %1608 = vmatprep.subr.mxu0 0.0
      %1609 = vmatpush1.msra.mxu0 0.0
      %1610 = vmatprep.subr.mxu0 0.0
      %1611 = vmatpush1.msra.mxu0 0.0
      %1612 = vmatprep.subr.mxu0 0.0
      %1613 = vmatpush1.msra.mxu0 0.0
      %1614 = vmatprep.subr.mxu0 0.0
      %1615 = vmatpush1.msra.mxu0 0.0
      %1616 = vmatprep.subr.mxu0 0.0
      %1617 = vmatpush1.msra.mxu0 0.0
      %1618 = vmatprep.subr.mxu0 0.0
      %1619 = vmatpush1.msra.mxu0 0.0
      %1620 = vmatprep.subr.mxu0 0.0
      %1621 = vmatpush1.msra.mxu0 0.0
      %1622 = vmatprep.subr.mxu0 0.0
      %1623 = vmatpush1.msra.mxu0 0.0
      %1624 = vmatprep.subr.mxu0 0.0
      %1625 = vmatpush1.msra.mxu0 0.0
      %1626 = vmatprep.subr.mxu0 0.0
      %1627 = vmatpush1.msra.mxu0 0.0
      %1628 = vmatprep.subr.mxu0 0.0
      %1629 = vmatpush1.msra.mxu0 0.0
      %1630 = vmatprep.mubr.f32.mxu0 0.0
      %1631 = vmatmul.mubr.f32.gmra.mrb[0].mxu0 %v483
      %v1632 = vpop.f32.mrb[0].mxu0
      %v1633 = vadd.f32 %v1408, %v1632
      %v1634 = vpop.f32.mrb[0].mxu0
      %1635 = vmatprep.mubr.f32.mxu0 0.0
      %1636 = vmatmul.mubr.f32.gmra.mrb[0].mxu0 %v484
      %v1637 = vpop.f32.mrb[0].mxu0
      %v1638 = vadd.f32 %v1413, %v1637
      %v1639 = vpop.f32.mrb[0].mxu0
      %1640 = vmatprep.mubr.f32.mxu0 0.0
      %1641 = vmatmul.mubr.f32.gmra.mrb[0].mxu0 %v485
      %v1642 = vpop.f32.mrb[0].mxu0
      %v1643 = vadd.f32 %v1418, %v1642
      %v1644 = vpop.f32.mrb[0].mxu0
      %1645 = vmatprep.mubr.f32.mxu0 0.0
      %1646 = vmatmul.mubr.f32.gmra.mrb[0].mxu0 %v486
      %v1647 = vpop.f32.mrb[0].mxu0
      %v1648 = vadd.f32 %v1423, %v1647
      %v1649 = vpop.f32.mrb[0].mxu0
      %1650 = vmatprep.mubr.f32.mxu0 0.0
      %1651 = vmatmul.mubr.f32.gmra.mrb[0].mxu0 %v487
      %v1652 = vpop.f32.mrb[0].mxu0
      %v1653 = vadd.f32 %v1428, %v1652
      %v1654 = vpop.f32.mrb[0].mxu0
      %1655 = vmatprep.mubr.f32.mxu0 0.0
      %1656 = vmatmul.mubr.f32.gmra.mrb[0].mxu0 %v488
      %v1657 = vpop.f32.mrb[0].mxu0
      %v1658 = vadd.f32 %v1433, %v1657
      %v1659 = vpop.f32.mrb[0].mxu0
      %1660 = vmatprep.mubr.f32.mxu0 0.0
      %1661 = vmatmul.mubr.f32.gmra.mrb[0].mxu0 %v489
      %v1662 = vpop.f32.mrb[0].mxu0
      %v1663 = vadd.f32 %v1438, %v1662
      %v1664 = vpop.f32.mrb[0].mxu0
      %1665 = vmatprep.mubr.f32.mxu0 0.0
      %1666 = vmatmul.mubr.f32.gmra.mrb[0].mxu0 %v490
      %v1667 = vpop.f32.mrb[0].mxu0
      %v1668 = vadd.f32 %v1443, %v1667
      %v1669 = vpop.f32.mrb[0].mxu0
      %1670 = vmatprep.mubr.f32.mxu0 0.0
      %1671 = vmatmul.mubr.f32.gmra.mrb[0].mxu0 %v491
      %v1672 = vpop.f32.mrb[0].mxu0
      %v1673 = vadd.f32 %v1448, %v1672
      %v1674 = vpop.f32.mrb[0].mxu0
      %1675 = vmatprep.mubr.f32.mxu0 0.0
      %1676 = vmatmul.mubr.f32.gmra.mrb[0].mxu0 %v492
      %v1677 = vpop.f32.mrb[0].mxu0
      %v1678 = vadd.f32 %v1453, %v1677
      %v1679 = vpop.f32.mrb[0].mxu0
      %1680 = vmatprep.mubr.f32.mxu0 0.0
      %1681 = vmatmul.mubr.f32.gmra.mrb[0].mxu0 %v493
      %v1682 = vpop.f32.mrb[0].mxu0
      %v1683 = vadd.f32 %v1458, %v1682
      %v1684 = vpop.f32.mrb[0].mxu0
      %1685 = vmatprep.mubr.f32.mxu0 0.0
      %1686 = vmatmul.mubr.f32.gmra.mrb[0].mxu0 %v494
      %v1687 = vpop.f32.mrb[0].mxu0
      %v1688 = vadd.f32 %v1463, %v1687
      %v1689 = vpop.f32.mrb[0].mxu0
      %1690 = vmatprep.mubr.f32.mxu0 0.0
      %1691 = vmatmul.mubr.f32.gmra.mrb[0].mxu0 %v495
      %v1692 = vpop.f32.mrb[0].mxu0
      %v1693 = vadd.f32 %v1468, %v1692
      %v1694 = vpop.f32.mrb[0].mxu0
      %1695 = vmatprep.mubr.f32.mxu0 0.0
      %1696 = vmatmul.mubr.f32.gmra.mrb[0].mxu0 %v496
      %v1697 = vpop.f32.mrb[0].mxu0
      %v1698 = vadd.f32 %v1473, %v1697
      %v1699 = vpop.f32.mrb[0].mxu0
      %1700 = vmatprep.mubr.f32.mxu0 0.0
      %1701 = vmatmul.mubr.f32.gmra.mrb[0].mxu0 %v497
      %v1702 = vpop.f32.mrb[0].mxu0
      %v1703 = vadd.f32 %v1478, %v1702
      %v1704 = vpop.f32.mrb[0].mxu0
      %1705 = vmatprep.mubr.f32.mxu0 0.0
      %1706 = vmatmul.mubr.f32.gmra.mrb[0].mxu0 %v498
      %v1707 = vpop.f32.mrb[0].mxu0
      %v1708 = vadd.f32 %v1483, %v1707
      %v1709 = vpop.f32.mrb[0].mxu0
      %1710 = vmatprep.mubr.f32.mxu0 0.0
      %1711 = vmatmul.mubr.f32.gmra.mrb[0].mxu0 %v499
      %v1712 = vpop.f32.mrb[0].mxu0
      %v1713 = vadd.f32 %v1488, %v1712
      %v1714 = vpop.f32.mrb[0].mxu0
      %1715 = vmatprep.mubr.f32.mxu0 0.0
      %1716 = vmatmul.mubr.f32.gmra.mrb[0].mxu0 %v500
      %v1717 = vpop.f32.mrb[0].mxu0
      %v1718 = vadd.f32 %v1493, %v1717
      %v1719 = vpop.f32.mrb[0].mxu0
      %1720 = vmatprep.mubr.f32.mxu0 0.0
      %1721 = vmatmul.mubr.f32.gmra.mrb[0].mxu0 %v501
      %v1722 = vpop.f32.mrb[0].mxu0
      %v1723 = vadd.f32 %v1498, %v1722
      %v1724 = vpop.f32.mrb[0].mxu0
      %1725 = vmatprep.mubr.f32.mxu0 0.0
      %1726 = vmatmul.mubr.f32.gmra.mrb[0].mxu0 %v502
      %v1727 = vpop.f32.mrb[0].mxu0
      %v1728 = vadd.f32 %v1503, %v1727
      %v1729 = vpop.f32.mrb[0].mxu0
      %1730 = vmatprep.mubr.f32.mxu0 0.0
      %1731 = vmatmul.mubr.f32.gmra.mrb[0].mxu0 %v503
      %v1732 = vpop.f32.mrb[0].mxu0
      %v1733 = vadd.f32 %v1508, %v1732
      %v1734 = vpop.f32.mrb[0].mxu0
      %1735 = vmatprep.mubr.f32.mxu0 0.0
      %1736 = vmatmul.mubr.f32.gmra.mrb[0].mxu0 %v504
      %v1737 = vpop.f32.mrb[0].mxu0
      %v1738 = vadd.f32 %v1513, %v1737
      %v1739 = vpop.f32.mrb[0].mxu0
      %1740 = vmatprep.mubr.f32.mxu0 0.0
      %1741 = vmatmul.mubr.f32.gmra.mrb[0].mxu0 %v505
      %v1742 = vpop.f32.mrb[0].mxu0
      %v1743 = vadd.f32 %v1518, %v1742
      %v1744 = vpop.f32.mrb[0].mxu0
      %1745 = vmatprep.mubr.f32.mxu0 0.0
      %1746 = vmatmul.mubr.f32.gmra.mrb[0].mxu0 %v506
      %v1747 = vpop.f32.mrb[0].mxu0
      %v1748 = vadd.f32 %v1523, %v1747
      %v1749 = vpop.f32.mrb[0].mxu0
      %1750 = vmatprep.mubr.f32.mxu0 0.0
      %1751 = vmatmul.mubr.f32.gmra.mrb[0].mxu0 %v507
      %v1752 = vpop.f32.mrb[0].mxu0
      %v1753 = vadd.f32 %v1528, %v1752
      %v1754 = vpop.f32.mrb[0].mxu0
      %1755 = vmatprep.mubr.f32.mxu0 0.0
      %1756 = vmatmul.mubr.f32.gmra.mrb[0].mxu0 %v508
      %v1757 = vpop.f32.mrb[0].mxu0
      %v1758 = vadd.f32 %v1533, %v1757
      %v1759 = vpop.f32.mrb[0].mxu0
      %1760 = vmatprep.mubr.f32.mxu0 0.0
      %1761 = vmatmul.mubr.f32.gmra.mrb[0].mxu0 %v509
      %v1762 = vpop.f32.mrb[0].mxu0
      %v1763 = vadd.f32 %v1538, %v1762
      %v1764 = vpop.f32.mrb[0].mxu0
      %1765 = vmatprep.mubr.f32.mxu0 0.0
      %1766 = vmatmul.mubr.f32.gmra.mrb[0].mxu0 %v510
      %v1767 = vpop.f32.mrb[0].mxu0
      %v1768 = vadd.f32 %v1543, %v1767
      %v1769 = vpop.f32.mrb[0].mxu0
      %1770 = vmatprep.mubr.f32.mxu0 0.0
      %1771 = vmatmul.mubr.f32.gmra.mrb[0].mxu0 %v511
      %v1772 = vpop.f32.mrb[0].mxu0
      %v1773 = vadd.f32 %v1548, %v1772
      %v1774 = vpop.f32.mrb[0].mxu0
      %1775 = vmatprep.mubr.f32.mxu0 0.0
      %1776 = vmatmul.mubr.f32.gmra.mrb[0].mxu0 %v512
      %v1777 = vpop.f32.mrb[0].mxu0
      %v1778 = vadd.f32 %v1553, %v1777
      %v1779 = vpop.f32.mrb[0].mxu0
      %1780 = vmatprep.mubr.f32.mxu0 0.0
      %1781 = vmatmul.mubr.f32.gmra.mrb[0].mxu0 %v513
      %v1782 = vpop.f32.mrb[0].mxu0
      %v1783 = vadd.f32 %v1558, %v1782
      %v1784 = vpop.f32.mrb[0].mxu0
      %1785 = vmatprep.mubr.f32.mxu0 0.0
      %1786 = vmatmul.mubr.f32.gmra.mrb[0].mxu0 %v514
      %v1787 = vpop.f32.mrb[0].mxu0
      %v1788 = vadd.f32 %v1563, %v1787
      %v1789 = vpop.f32.mrb[0].mxu0
      %1790 = vdwg.mxu0
      %v1791 = vmax.f32 %v1633, 0.0
      %v1792 = vmax.f32 %v1638, 0.0
      %v1793 = vmax.f32 %v1643, 0.0
      %v1794 = vmax.f32 %v1648, 0.0
      %v1795 = vmax.f32 %v1653, 0.0
      %v1796 = vmax.f32 %v1658, 0.0
      %v1797 = vmax.f32 %v1663, 0.0
      %v1798 = vmax.f32 %v1668, 0.0
      %v1799 = vmax.f32 %v1673, 0.0
      %v1800 = vmax.f32 %v1678, 0.0
      %v1801 = vmax.f32 %v1683, 0.0
      %v1802 = vmax.f32 %v1688, 0.0
      %v1803 = vmax.f32 %v1693, 0.0
      %v1804 = vmax.f32 %v1698, 0.0
      %v1805 = vmax.f32 %v1703, 0.0
      %v1806 = vmax.f32 %v1708, 0.0
      %v1807 = vmax.f32 %v1713, 0.0
      %v1808 = vmax.f32 %v1718, 0.0
      %v1809 = vmax.f32 %v1723, 0.0
      %v1810 = vmax.f32 %v1728, 0.0
      %v1811 = vmax.f32 %v1733, 0.0
      %v1812 = vmax.f32 %v1738, 0.0
      %v1813 = vmax.f32 %v1743, 0.0
      %v1814 = vmax.f32 %v1748, 0.0
      %v1815 = vmax.f32 %v1753, 0.0
      %v1816 = vmax.f32 %v1758, 0.0
      %v1817 = vmax.f32 %v1763, 0.0
      %v1818 = vmax.f32 %v1768, 0.0
      %v1819 = vmax.f32 %v1773, 0.0
      %v1820 = vmax.f32 %v1778, 0.0
      %v1821 = vmax.f32 %v1783, 0.0
      %v1822 = vmax.f32 %v1788, 0.0
      %vm1856 = vcmask 1040384
      %v1857 = vrot.slane 0.0, 7
      %v1858 = vsel %vm1856, %v1857, %v1857
      %v1859 = vrot.slane %v1791, 7
      %v1860 = vrot.slane %v1792, 7
      %v1861 = vsel %vm1856, %v1859, %v1860
      %v1862 = vrot.slane %v1793, 7
      %v1863 = vrot.slane %v1794, 7
      %v1864 = vsel %vm1856, %v1862, %v1863
      %v1865 = vrot.slane %v1795, 7
      %v1866 = vrot.slane %v1796, 7
      %v1867 = vsel %vm1856, %v1865, %v1866
      %v1868 = vrot.slane %v1797, 7
      %v1869 = vrot.slane %v1798, 7
      %v1870 = vsel %vm1856, %v1868, %v1869
      %v1871 = vrot.slane %v1799, 7
      %v1872 = vrot.slane %v1800, 7
      %v1873 = vsel %vm1856, %v1871, %v1872
      %v1874 = vrot.slane %v1801, 7
      %v1875 = vrot.slane %v1802, 7
      %v1876 = vsel %vm1856, %v1874, %v1875
      %v1877 = vrot.slane %v1803, 7
      %v1878 = vrot.slane %v1804, 7
      %v1879 = vsel %vm1856, %v1877, %v1878
      %v1880 = vrot.slane %v1805, 7
      %v1881 = vrot.slane %v1806, 7
      %v1882 = vsel %vm1856, %v1880, %v1881
      %v1883 = vrot.slane %v1807, 7
      %v1884 = vrot.slane %v1808, 7
      %v1885 = vsel %vm1856, %v1883, %v1884
      %v1886 = vrot.slane %v1809, 7
      %v1887 = vrot.slane %v1810, 7
      %v1888 = vsel %vm1856, %v1886, %v1887
      %v1889 = vrot.slane %v1811, 7
      %v1890 = vrot.slane %v1812, 7
      %v1891 = vsel %vm1856, %v1889, %v1890
      %v1892 = vrot.slane %v1813, 7
      %v1893 = vrot.slane %v1814, 7
      %v1894 = vsel %vm1856, %v1892, %v1893
      %v1895 = vrot.slane %v1815, 7
      %v1896 = vrot.slane %v1816, 7
      %v1897 = vsel %vm1856, %v1895, %v1896
      %v1898 = vrot.slane %v1817, 7
      %v1899 = vrot.slane %v1818, 7
      %v1900 = vsel %vm1856, %v1898, %v1899
      %v1901 = vrot.slane %v1819, 7
      %v1902 = vrot.slane %v1820, 7
      %v1903 = vsel %vm1856, %v1901, %v1902
      %v1904 = vrot.slane %v1821, 7
      %v1905 = vrot.slane %v1822, 7
      %v1906 = vsel %vm1856, %v1904, %v1905
      %v1957 = vsel %vm1856, 0.0, %v1857
      %v1958 = vsel %vm1856, 0.0, %v1859
      %v1959 = vsel %vm1856, 0.0, %v1862
      %v1960 = vsel %vm1856, 0.0, %v1865
      %v1961 = vsel %vm1856, 0.0, %v1868
      %v1962 = vsel %vm1856, 0.0, %v1871
      %v1963 = vsel %vm1856, 0.0, %v1874
      %v1964 = vsel %vm1856, 0.0, %v1877
      %v1965 = vsel %vm1856, 0.0, %v1880
      %v1966 = vsel %vm1856, 0.0, %v1883
      %v1967 = vsel %vm1856, 0.0, %v1886
      %v1968 = vsel %vm1856, 0.0, %v1889
      %v1969 = vsel %vm1856, 0.0, %v1892
      %v1970 = vsel %vm1856, 0.0, %v1895
      %v1971 = vsel %vm1856, 0.0, %v1898
      %v1972 = vsel %vm1856, 0.0, %v1901
      %v1973 = vsel %vm1856, 0.0, %v1904
      %v1974 = vsel %vm1856, %v1857, 0.0
      %v1975 = vsel %vm1856, %v1860, 0.0
      %v1976 = vsel %vm1856, %v1863, 0.0
      %v1977 = vsel %vm1856, %v1866, 0.0
      %v1978 = vsel %vm1856, %v1869, 0.0
      %v1979 = vsel %vm1856, %v1872, 0.0
      %v1980 = vsel %vm1856, %v1875, 0.0
      %v1981 = vsel %vm1856, %v1878, 0.0
      %v1982 = vsel %vm1856, %v1881, 0.0
      %v1983 = vsel %vm1856, %v1884, 0.0
      %v1984 = vsel %vm1856, %v1887, 0.0
      %v1985 = vsel %vm1856, %v1890, 0.0
      %v1986 = vsel %vm1856, %v1893, 0.0
      %v1987 = vsel %vm1856, %v1896, 0.0
      %v1988 = vsel %vm1856, %v1899, 0.0
      %v1989 = vsel %vm1856, %v1902, 0.0
      %v1990 = vsel %vm1856, %v1905, 0.0
      %vm2023 = vcmask 1046528
      %v2024 = vrot.slane %v1957, 1
      %v2025 = vrot.slane %v1858, 1
      %v2026 = vsel %vm2023, %v2024, %v2025
      %v2027 = vrot.slane %v1974, 1
      %v2028 = vsel %vm2023, %v2025, %v2027
      %v2029 = vrot.slane %v1958, 1
      %v2030 = vrot.slane %v1861, 1
      %v2031 = vsel %vm2023, %v2029, %v2030
      %v2032 = vrot.slane %v1975, 1
      %v2033 = vsel %vm2023, %v2030, %v2032
      %v2034 = vrot.slane %v1959, 1
      %v2035 = vrot.slane %v1864, 1
      %v2036 = vsel %vm2023, %v2034, %v2035
      %v2037 = vrot.slane %v1976, 1
      %v2038 = vsel %vm2023, %v2035, %v2037
      %v2039 = vrot.slane %v1960, 1
      %v2040 = vrot.slane %v1867, 1
      %v2041 = vsel %vm2023, %v2039, %v2040
      %v2042 = vrot.slane %v1977, 1
      %v2043 = vsel %vm2023, %v2040, %v2042
      %v2044 = vrot.slane %v1961, 1
      %v2045 = vrot.slane %v1870, 1
      %v2046 = vsel %vm2023, %v2044, %v2045
      %v2047 = vrot.slane %v1978, 1
      %v2048 = vsel %vm2023, %v2045, %v2047
      %v2049 = vrot.slane %v1962, 1
      %v2050 = vrot.slane %v1873, 1
      %v2051 = vsel %vm2023, %v2049, %v2050
      %v2052 = vrot.slane %v1979, 1
      %v2053 = vsel %vm2023, %v2050, %v2052
      %v2054 = vrot.slane %v1963, 1
      %v2055 = vrot.slane %v1876, 1
      %v2056 = vsel %vm2023, %v2054, %v2055
      %v2057 = vrot.slane %v1980, 1
      %v2058 = vsel %vm2023, %v2055, %v2057
      %v2059 = vrot.slane %v1964, 1
      %v2060 = vrot.slane %v1879, 1
      %v2061 = vsel %vm2023, %v2059, %v2060
      %v2062 = vrot.slane %v1981, 1
      %v2063 = vsel %vm2023, %v2060, %v2062
      %v2064 = vrot.slane %v1965, 1
      %v2065 = vrot.slane %v1882, 1
      %v2066 = vsel %vm2023, %v2064, %v2065
      %v2067 = vrot.slane %v1982, 1
      %v2068 = vsel %vm2023, %v2065, %v2067
      %v2069 = vrot.slane %v1966, 1
      %v2070 = vrot.slane %v1885, 1
      %v2071 = vsel %vm2023, %v2069, %v2070
      %v2072 = vrot.slane %v1983, 1
      %v2073 = vsel %vm2023, %v2070, %v2072
      %v2074 = vrot.slane %v1967, 1
      %v2075 = vrot.slane %v1888, 1
      %v2076 = vsel %vm2023, %v2074, %v2075
      %v2077 = vrot.slane %v1984, 1
      %v2078 = vsel %vm2023, %v2075, %v2077
      %v2079 = vrot.slane %v1968, 1
      %v2080 = vrot.slane %v1891, 1
      %v2081 = vsel %vm2023, %v2079, %v2080
      %v2082 = vrot.slane %v1985, 1
      %v2083 = vsel %vm2023, %v2080, %v2082
      %v2084 = vrot.slane %v1969, 1
      %v2085 = vrot.slane %v1894, 1
      %v2086 = vsel %vm2023, %v2084, %v2085
      %v2087 = vrot.slane %v1986, 1
      %v2088 = vsel %vm2023, %v2085, %v2087
      %v2089 = vrot.slane %v1970, 1
      %v2090 = vrot.slane %v1897, 1
      %v2091 = vsel %vm2023, %v2089, %v2090
      %v2092 = vrot.slane %v1987, 1
      %v2093 = vsel %vm2023, %v2090, %v2092
      %v2094 = vrot.slane %v1971, 1
      %v2095 = vrot.slane %v1900, 1
      %v2096 = vsel %vm2023, %v2094, %v2095
      %v2097 = vrot.slane %v1988, 1
      %v2098 = vsel %vm2023, %v2095, %v2097
      %v2099 = vrot.slane %v1972, 1
      %v2100 = vrot.slane %v1903, 1
      %v2101 = vsel %vm2023, %v2099, %v2100
      %v2102 = vrot.slane %v1989, 1
      %v2103 = vsel %vm2023, %v2100, %v2102
      %vm2136 = vcmask 1045504
      %v2137 = vrot.slane %v1957, 2
      %v2138 = vrot.slane %v1858, 2
      %v2139 = vsel %vm2136, %v2137, %v2138
      %v2140 = vrot.slane %v1974, 2
      %v2141 = vsel %vm2136, %v2138, %v2140
      %v2142 = vrot.slane %v1958, 2
      %v2143 = vrot.slane %v1861, 2
      %v2144 = vsel %vm2136, %v2142, %v2143
      %v2145 = vrot.slane %v1975, 2
      %v2146 = vsel %vm2136, %v2143, %v2145
      %v2147 = vrot.slane %v1959, 2
      %v2148 = vrot.slane %v1864, 2
      %v2149 = vsel %vm2136, %v2147, %v2148
      %v2150 = vrot.slane %v1976, 2
      %v2151 = vsel %vm2136, %v2148, %v2150
      %v2152 = vrot.slane %v1960, 2
      %v2153 = vrot.slane %v1867, 2
      %v2154 = vsel %vm2136, %v2152, %v2153
      %v2155 = vrot.slane %v1977, 2
      %v2156 = vsel %vm2136, %v2153, %v2155
      %v2157 = vrot.slane %v1961, 2
      %v2158 = vrot.slane %v1870, 2
      %v2159 = vsel %vm2136, %v2157, %v2158
      %v2160 = vrot.slane %v1978, 2
      %v2161 = vsel %vm2136, %v2158, %v2160
      %v2162 = vrot.slane %v1962, 2
      %v2163 = vrot.slane %v1873, 2
      %v2164 = vsel %vm2136, %v2162, %v2163
      %v2165 = vrot.slane %v1979, 2
      %v2166 = vsel %vm2136, %v2163, %v2165
      %v2167 = vrot.slane %v1963, 2
      %v2168 = vrot.slane %v1876, 2
      %v2169 = vsel %vm2136, %v2167, %v2168
      %v2170 = vrot.slane %v1980, 2
      %v2171 = vsel %vm2136, %v2168, %v2170
      %v2172 = vrot.slane %v1964, 2
      %v2173 = vrot.slane %v1879, 2
      %v2174 = vsel %vm2136, %v2172, %v2173
      %v2175 = vrot.slane %v1981, 2
      %v2176 = vsel %vm2136, %v2173, %v2175
      %v2177 = vrot.slane %v1965, 2
      %v2178 = vrot.slane %v1882, 2
      %v2179 = vsel %vm2136, %v2177, %v2178
      %v2180 = vrot.slane %v1982, 2
      %v2181 = vsel %vm2136, %v2178, %v2180
      %v2182 = vrot.slane %v1966, 2
      %v2183 = vrot.slane %v1885, 2
      %v2184 = vsel %vm2136, %v2182, %v2183
      %v2185 = vrot.slane %v1983, 2
      %v2186 = vsel %vm2136, %v2183, %v2185
      %v2187 = vrot.slane %v1967, 2
      %v2188 = vrot.slane %v1888, 2
      %v2189 = vsel %vm2136, %v2187, %v2188
      %v2190 = vrot.slane %v1984, 2
      %v2191 = vsel %vm2136, %v2188, %v2190
      %v2192 = vrot.slane %v1968, 2
      %v2193 = vrot.slane %v1891, 2
      %v2194 = vsel %vm2136, %v2192, %v2193
      %v2195 = vrot.slane %v1985, 2
      %v2196 = vsel %vm2136, %v2193, %v2195
      %v2197 = vrot.slane %v1969, 2
      %v2198 = vrot.slane %v1894, 2
      %v2199 = vsel %vm2136, %v2197, %v2198
      %v2200 = vrot.slane %v1986, 2
      %v2201 = vsel %vm2136, %v2198, %v2200
      %v2202 = vrot.slane %v1970, 2
      %v2203 = vrot.slane %v1897, 2
      %v2204 = vsel %vm2136, %v2202, %v2203
      %v2205 = vrot.slane %v1987, 2
      %v2206 = vsel %vm2136, %v2203, %v2205
      %v2207 = vrot.slane %v1971, 2
      %v2208 = vrot.slane %v1900, 2
      %v2209 = vsel %vm2136, %v2207, %v2208
      %v2210 = vrot.slane %v1988, 2
      %v2211 = vsel %vm2136, %v2208, %v2210
      %v2212 = vrot.slane %v1972, 2
      %v2213 = vrot.slane %v1903, 2
      %v2214 = vsel %vm2136, %v2212, %v2213
      %v2215 = vrot.slane %v1989, 2
      %v2216 = vsel %vm2136, %v2213, %v2215
      %v2251 = vrot.slane %v1973, 1
      %v2252 = vrot.slane %v1906, 1
      %v2253 = vsel %vm2023, %v2251, %v2252
      %v2254 = vrot.slane %v1990, 1
      %v2255 = vsel %vm2023, %v2252, %v2254
      %v2258 = vrot.slane %v1973, 2
      %v2259 = vrot.slane %v1906, 2
      %v2260 = vsel %vm2136, %v2258, %v2259
      %v2261 = vrot.slane %v1990, 2
      %v2262 = vsel %vm2136, %v2259, %v2261
      %v2265 = vld [vmem:[%s3] sm:$0xff]
      %v2266 = vld [vmem:[%s3 + $0x8] sm:$0xff]
      %v2267 = vld [vmem:[%s3 + $0x10] sm:$0xff]
      %v2268 = vld [vmem:[%s3 + $0x18] sm:$0xff]
      %v2269 = vld [vmem:[%s3 + $0x20] sm:$0xff]
      %v2270 = vld [vmem:[%s3 + $0x28] sm:$0xff]
      %v2271 = vld [vmem:[%s3 + $0x30] sm:$0xff]
      %v2272 = vld [vmem:[%s3 + $0x38] sm:$0xff]
      %v2273 = vld [vmem:[%s3 + $0x40] sm:$0xff]
      %v2274 = vld [vmem:[%s3 + $0x48] sm:$0xff]
      %v2275 = vld [vmem:[%s3 + $0x50] sm:$0xff]
      %v2276 = vld [vmem:[%s3 + $0x58] sm:$0xff]
      %v2277 = vld [vmem:[%s3 + $0x60] sm:$0xff]
      %v2278 = vld [vmem:[%s3 + $0x68] sm:$0xff]
      %v2279 = vld [vmem:[%s3 + $0x70] sm:$0xff]
      %v2280 = vld [vmem:[%s3 + $0x78] sm:$0xff]
      %v2281 = vld [vmem:[%s3 + $0x80] sm:$0xff]
      %v2282 = vld [vmem:[%s3 + $0x88] sm:$0xff]
      %v2283 = vld [vmem:[%s3 + $0x90] sm:$0xff]
      %v2284 = vld [vmem:[%s3 + $0x98] sm:$0xff]
      %v2285 = vld [vmem:[%s3 + $0xa0] sm:$0xff]
      %v2286 = vld [vmem:[%s3 + $0xa8] sm:$0xff]
      %v2287 = vld [vmem:[%s3 + $0xb0] sm:$0xff]
      %v2288 = vld [vmem:[%s3 + $0xb8] sm:$0xff]
      %v2289 = vld [vmem:[%s3 + $0xc0] sm:$0xff]
      %v2290 = vld [vmem:[%s3 + $0xc8] sm:$0xff]
      %v2291 = vld [vmem:[%s3 + $0xd0] sm:$0xff]
      %v2292 = vld [vmem:[%s3 + $0xd8] sm:$0xff]
      %v2293 = vld [vmem:[%s3 + $0xe0] sm:$0xff]
      %v2294 = vld [vmem:[%s3 + $0xe8] sm:$0xff]
      %v2295 = vld [vmem:[%s3 + $0xf0] sm:$0xff]
      %v2296 = vld [vmem:[%s3 + $0xf8] sm:$0xff]
      %v2297 = vld [vmem:[%s3 + $0x100] sm:$0xff]
      %v2298 = vld [vmem:[%s3 + $0x108] sm:$0xff]
      %v2299 = vld [vmem:[%s3 + $0x110] sm:$0xff]
      %v2300 = vld [vmem:[%s3 + $0x118] sm:$0xff]
      %v2301 = vld [vmem:[%s3 + $0x120] sm:$0xff]
      %v2302 = vld [vmem:[%s3 + $0x128] sm:$0xff]
      %v2303 = vld [vmem:[%s3 + $0x130] sm:$0xff]
      %v2304 = vld [vmem:[%s3 + $0x138] sm:$0xff]
      %v2305 = vld [vmem:[%s3 + $0x140] sm:$0xff]
      %v2306 = vld [vmem:[%s3 + $0x148] sm:$0xff]
      %v2307 = vld [vmem:[%s3 + $0x150] sm:$0xff]
      %v2308 = vld [vmem:[%s3 + $0x158] sm:$0xff]
      %v2309 = vld [vmem:[%s3 + $0x160] sm:$0xff]
      %v2310 = vld [vmem:[%s3 + $0x168] sm:$0xff]
      %v2311 = vld [vmem:[%s3 + $0x170] sm:$0xff]
      %v2312 = vld [vmem:[%s3 + $0x178] sm:$0xff]
      %v2313 = vld [vmem:[%s3 + $0x180] sm:$0xff]
      %v2314 = vld [vmem:[%s3 + $0x188] sm:$0xff]
      %v2315 = vld [vmem:[%s3 + $0x190] sm:$0xff]
      %v2316 = vld [vmem:[%s3 + $0x198] sm:$0xff]
      %v2317 = vld [vmem:[%s3 + $0x1a0] sm:$0xff]
      %v2318 = vld [vmem:[%s3 + $0x1a8] sm:$0xff]
      %v2319 = vld [vmem:[%s3 + $0x1b0] sm:$0xff]
      %v2320 = vld [vmem:[%s3 + $0x1b8] sm:$0xff]
      %v2321 = vld [vmem:[%s3 + $0x1c0] sm:$0xff]
      %v2322 = vld [vmem:[%s3 + $0x1c8] sm:$0xff]
      %v2323 = vld [vmem:[%s3 + $0x1d0] sm:$0xff]
      %v2324 = vld [vmem:[%s3 + $0x1d8] sm:$0xff]
      %v2325 = vld [vmem:[%s3 + $0x1e0] sm:$0xff]
      %v2326 = vld [vmem:[%s3 + $0x1e8] sm:$0xff]
      %v2327 = vld [vmem:[%s3 + $0x1f0] sm:$0xff]
      %v2328 = vld [vmem:[%s3 + $0x1f8] sm:$0xff]
      %v2329 = vld [vmem:[%s3 + $0x200] sm:$0xff]
      %v2330 = vld [vmem:[%s3 + $0x208] sm:$0xff]
      %v2331 = vld [vmem:[%s3 + $0x210] sm:$0xff]
      %v2332 = vld [vmem:[%s3 + $0x218] sm:$0xff]
      %v2333 = vld [vmem:[%s3 + $0x220] sm:$0xff]
      %v2334 = vld [vmem:[%s3 + $0x228] sm:$0xff]
      %v2335 = vld [vmem:[%s3 + $0x230] sm:$0xff]
      %v2336 = vld [vmem:[%s3 + $0x238] sm:$0xff]
      %v2337 = vld [vmem:[%s3 + $0x240] sm:$0xff]
      %v2338 = vld [vmem:[%s3 + $0x248] sm:$0xff]
      %v2339 = vld [vmem:[%s3 + $0x250] sm:$0xff]
      %v2340 = vld [vmem:[%s3 + $0x258] sm:$0xff]
      %v2341 = vld [vmem:[%s3 + $0x260] sm:$0xff]
      %v2342 = vld [vmem:[%s3 + $0x268] sm:$0xff]
      %v2343 = vld [vmem:[%s3 + $0x270] sm:$0xff]
      %v2344 = vld [vmem:[%s3 + $0x278] sm:$0xff]
      %v2345 = vld [vmem:[%s3 + $0x280] sm:$0xff]
      %v2346 = vld [vmem:[%s3 + $0x288] sm:$0xff]
      %v2347 = vld [vmem:[%s3 + $0x290] sm:$0xff]
      %v2348 = vld [vmem:[%s3 + $0x298] sm:$0xff]
      %v2349 = vld [vmem:[%s3 + $0x2a0] sm:$0xff]
      %v2350 = vld [vmem:[%s3 + $0x2a8] sm:$0xff]
      %v2351 = vld [vmem:[%s3 + $0x2b0] sm:$0xff]
      %v2352 = vld [vmem:[%s3 + $0x2b8] sm:$0xff]
      %v2353 = vld [vmem:[%s3 + $0x2c0] sm:$0xff]
      %v2354 = vld [vmem:[%s3 + $0x2c8] sm:$0xff]
      %v2355 = vld [vmem:[%s3 + $0x2d0] sm:$0xff]
      %v2356 = vld [vmem:[%s3 + $0x2d8] sm:$0xff]
      %v2357 = vld [vmem:[%s3 + $0x2e0] sm:$0xff]
      %v2358 = vld [vmem:[%s3 + $0x2e8] sm:$0xff]
      %v2359 = vld [vmem:[%s3 + $0x2f0] sm:$0xff]
      %v2360 = vld [vmem:[%s3 + $0x2f8] sm:$0xff]
      %v2361 = vld [vmem:[%s3 + $0x300] sm:$0xff]
      %v2362 = vld [vmem:[%s3 + $0x308] sm:$0xff]
      %v2363 = vld [vmem:[%s3 + $0x310] sm:$0xff]
      %v2364 = vld [vmem:[%s3 + $0x318] sm:$0xff]
      %v2365 = vld [vmem:[%s3 + $0x320] sm:$0xff]
      %v2366 = vld [vmem:[%s3 + $0x328] sm:$0xff]
      %v2367 = vld [vmem:[%s3 + $0x330] sm:$0xff]
      %v2368 = vld [vmem:[%s3 + $0x338] sm:$0xff]
      %v2369 = vld [vmem:[%s3 + $0x340] sm:$0xff]
      %v2370 = vld [vmem:[%s3 + $0x348] sm:$0xff]
      %v2371 = vld [vmem:[%s3 + $0x350] sm:$0xff]
      %v2372 = vld [vmem:[%s3 + $0x358] sm:$0xff]
      %v2373 = vld [vmem:[%s3 + $0x360] sm:$0xff]
      %v2374 = vld [vmem:[%s3 + $0x368] sm:$0xff]
      %v2375 = vld [vmem:[%s3 + $0x370] sm:$0xff]
      %v2376 = vld [vmem:[%s3 + $0x378] sm:$0xff]
      %v2377 = vld [vmem:[%s3 + $0x380] sm:$0xff]
      %v2378 = vld [vmem:[%s3 + $0x388] sm:$0xff]
      %v2379 = vld [vmem:[%s3 + $0x390] sm:$0xff]
      %v2380 = vld [vmem:[%s3 + $0x398] sm:$0xff]
      %v2381 = vld [vmem:[%s3 + $0x3a0] sm:$0xff]
      %v2382 = vld [vmem:[%s3 + $0x3a8] sm:$0xff]
      %v2383 = vld [vmem:[%s3 + $0x3b0] sm:$0xff]
      %v2384 = vld [vmem:[%s3 + $0x3b8] sm:$0xff]
      %v2385 = vld [vmem:[%s3 + $0x3c0] sm:$0xff]
      %v2386 = vld [vmem:[%s3 + $0x3c8] sm:$0xff]
      %v2387 = vld [vmem:[%s3 + $0x3d0] sm:$0xff]
      %v2388 = vld [vmem:[%s3 + $0x3d8] sm:$0xff]
      %v2389 = vld [vmem:[%s3 + $0x3e0] sm:$0xff]
      %v2390 = vld [vmem:[%s3 + $0x3e8] sm:$0xff]
      %v2391 = vld [vmem:[%s3 + $0x3f0] sm:$0xff]
      %v2392 = vld [vmem:[%s3 + $0x3f8] sm:$0xff]
      %v2393 = vld [vmem:[%s3 + $0x400] sm:$0xff]
      %v2394 = vld [vmem:[%s3 + $0x408] sm:$0xff]
      %v2395 = vld [vmem:[%s3 + $0x410] sm:$0xff]
      %v2396 = vld [vmem:[%s3 + $0x418] sm:$0xff]
      %v2397 = vld [vmem:[%s3 + $0x420] sm:$0xff]
      %v2398 = vld [vmem:[%s3 + $0x428] sm:$0xff]
      %v2399 = vld [vmem:[%s3 + $0x430] sm:$0xff]
      %v2400 = vld [vmem:[%s3 + $0x438] sm:$0xff]
      %v2401 = vld [vmem:[%s3 + $0x440] sm:$0xff]
      %v2402 = vld [vmem:[%s3 + $0x448] sm:$0xff]
      %v2403 = vld [vmem:[%s3 + $0x450] sm:$0xff]
      %v2404 = vld [vmem:[%s3 + $0x458] sm:$0xff]
      %v2405 = vld [vmem:[%s3 + $0x460] sm:$0xff]
      %v2406 = vld [vmem:[%s3 + $0x468] sm:$0xff]
      %v2407 = vld [vmem:[%s3 + $0x470] sm:$0xff]
      %v2408 = vld [vmem:[%s3 + $0x478] sm:$0xff]
      %v2409 = vld [vmem:[%s4] sm:$0x1]
      %v2411 = vlaneseq
      %v2412 = vshrl.u32 %v2411, 7
      %v2413 = vsub.s32 0, %v2412
      %v2414 = vrot.slane %v2409, %v2413
      %2416 = vmatprep.subr.mxu0 0.0
      %2417 = vmatpush1.msra.mxu0 %v2265
      %2418 = vmatprep.subr.mxu0 0.0
      %2419 = vmatpush1.msra.mxu0 %v2266
      %2420 = vmatprep.subr.mxu0 0.0
      %2421 = vmatpush1.msra.mxu0 %v2267
      %2422 = vmatprep.subr.mxu0 0.0
      %2423 = vmatpush1.msra.mxu0 %v2268
      %2424 = vmatprep.subr.mxu0 0.0
      %2425 = vmatpush1.msra.mxu0 %v2269
      %2426 = vmatprep.subr.mxu0 0.0
      %2427 = vmatpush1.msra.mxu0 %v2270
      %2428 = vmatprep.subr.mxu0 0.0
      %2429 = vmatpush1.msra.mxu0 %v2271
      %2430 = vmatprep.subr.mxu0 0.0
      %2431 = vmatpush1.msra.mxu0 %v2272
      %2432 = vmatprep.subr.mxu0 0.0
      %2433 = vmatpush1.msra.mxu0 %v2273
      %2434 = vmatprep.subr.mxu0 0.0
      %2435 = vmatpush1.msra.mxu0 %v2274
      %2436 = vmatprep.subr.mxu0 0.0
      %2437 = vmatpush1.msra.mxu0 %v2275
      %2438 = vmatprep.subr.mxu0 0.0
      %2439 = vmatpush1.msra.mxu0 %v2276
      %2440 = vmatprep.subr.mxu0 0.0
      %2441 = vmatpush1.msra.mxu0 %v2277
      %2442 = vmatprep.subr.mxu0 0.0
      %2443 = vmatpush1.msra.mxu0 %v2278
      %2444 = vmatprep.subr.mxu0 0.0
      %2445 = vmatpush1.msra.mxu0 %v2279
      %2446 = vmatprep.subr.mxu0 0.0
      %2447 = vmatpush1.msra.mxu0 %v2280
      %2448 = vmatprep.subr.mxu0 0.0
      %2449 = vmatpush1.msra.mxu0 %v2281
      %2450 = vmatprep.subr.mxu0 0.0
      %2451 = vmatpush1.msra.mxu0 %v2282
      %2452 = vmatprep.subr.mxu0 0.0
      %2453 = vmatpush1.msra.mxu0 %v2283
      %2454 = vmatprep.subr.mxu0 0.0
      %2455 = vmatpush1.msra.mxu0 %v2284
      %2456 = vmatprep.subr.mxu0 0.0
      %2457 = vmatpush1.msra.mxu0 %v2285
      %2458 = vmatprep.subr.mxu0 0.0
      %2459 = vmatpush1.msra.mxu0 %v2286
      %2460 = vmatprep.subr.mxu0 0.0
      %2461 = vmatpush1.msra.mxu0 %v2287
      %2462 = vmatprep.subr.mxu0 0.0
      %2463 = vmatpush1.msra.mxu0 %v2288
      %2464 = vmatprep.subr.mxu0 0.0
      %2465 = vmatpush1.msra.mxu0 %v2289
      %2466 = vmatprep.subr.mxu0 0.0
      %2467 = vmatpush1.msra.mxu0 %v2290
      %2468 = vmatprep.subr.mxu0 0.0
      %2469 = vmatpush1.msra.mxu0 %v2291
      %2470 = vmatprep.subr.mxu0 0.0
      %2471 = vmatpush1.msra.mxu0 %v2292
      %2472 = vmatprep.subr.mxu0 0.0
      %2473 = vmatpush1.msra.mxu0 %v2293
      %2474 = vmatprep.subr.mxu0 0.0
      %2475 = vmatpush1.msra.mxu0 %v2294
      %2476 = vmatprep.subr.mxu0 0.0
      %2477 = vmatpush1.msra.mxu0 %v2295
      %2478 = vmatprep.subr.mxu0 0.0
      %2479 = vmatpush1.msra.mxu0 %v2296
      %2480 = vmatprep.mubr.f32.mxu0 %v2026
      %2481 = vmatmul.mubr.f32.gmra.mrb[0].mxu0 %v1957
      %v2482 = vpop.f32.mrb[0].mxu0
      %v2483 = vadd.f32 %v2414, %v2482
      %v2484 = vpop.f32.mrb[0].mxu0
      %2485 = vmatprep.mubr.f32.mxu0 %v2028
      %2486 = vmatmul.mubr.f32.gmra.mrb[0].mxu0 %v1858
      %v2487 = vpop.f32.mrb[0].mxu0
      %v2488 = vadd.f32 %v2414, %v2487
      %v2489 = vpop.f32.mrb[0].mxu0
      %2490 = vmatprep.mubr.f32.mxu0 %v2031
      %2491 = vmatmul.mubr.f32.gmra.mrb[0].mxu0 %v1958
      %v2492 = vpop.f32.mrb[0].mxu0
      %v2493 = vadd.f32 %v2414, %v2492
      %v2494 = vpop.f32.mrb[0].mxu0
      %2495 = vmatprep.mubr.f32.mxu0 %v2033
      %2496 = vmatmul.mubr.f32.gmra.mrb[0].mxu0 %v1861
      %v2497 = vpop.f32.mrb[0].mxu0
      %v2498 = vadd.f32 %v2414, %v2497
      %v2499 = vpop.f32.mrb[0].mxu0
      %2500 = vmatprep.mubr.f32.mxu0 %v2036
      %2501 = vmatmul.mubr.f32.gmra.mrb[0].mxu0 %v1959
      %v2502 = vpop.f32.mrb[0].mxu0
      %v2503 = vadd.f32 %v2414, %v2502
      %v2504 = vpop.f32.mrb[0].mxu0
      %2505 = vmatprep.mubr.f32.mxu0 %v2038
      %2506 = vmatmul.mubr.f32.gmra.mrb[0].mxu0 %v1864
      %v2507 = vpop.f32.mrb[0].mxu0
      %v2508 = vadd.f32 %v2414, %v2507
      %v2509 = vpop.f32.mrb[0].mxu0
      %2510 = vmatprep.mubr.f32.mxu0 %v2041
      %2511 = vmatmul.mubr.f32.gmra.mrb[0].mxu0 %v1960
      %v2512 = vpop.f32.mrb[0].mxu0
      %v2513 = vadd.f32 %v2414, %v2512
      %v2514 = vpop.f32.mrb[0].mxu0
      %2515 = vmatprep.mubr.f32.mxu0 %v2043
      %2516 = vmatmul.mubr.f32.gmra.mrb[0].mxu0 %v1867
      %v2517 = vpop.f32.mrb[0].mxu0
      %v2518 = vadd.f32 %v2414, %v2517
      %v2519 = vpop.f32.mrb[0].mxu0
      %2520 = vmatprep.mubr.f32.mxu0 %v2046
      %2521 = vmatmul.mubr.f32.gmra.mrb[0].mxu0 %v1961
      %v2522 = vpop.f32.mrb[0].mxu0
      %v2523 = vadd.f32 %v2414, %v2522
      %v2524 = vpop.f32.mrb[0].mxu0
      %2525 = vmatprep.mubr.f32.mxu0 %v2048
      %2526 = vmatmul.mubr.f32.gmra.mrb[0].mxu0 %v1870
      %v2527 = vpop.f32.mrb[0].mxu0
      %v2528 = vadd.f32 %v2414, %v2527
      %v2529 = vpop.f32.mrb[0].mxu0
      %2530 = vmatprep.mubr.f32.mxu0 %v2051
      %2531 = vmatmul.mubr.f32.gmra.mrb[0].mxu0 %v1962
      %v2532 = vpop.f32.mrb[0].mxu0
      %v2533 = vadd.f32 %v2414, %v2532
      %v2534 = vpop.f32.mrb[0].mxu0
      %2535 = vmatprep.mubr.f32.mxu0 %v2053
      %2536 = vmatmul.mubr.f32.gmra.mrb[0].mxu0 %v1873
      %v2537 = vpop.f32.mrb[0].mxu0
      %v2538 = vadd.f32 %v2414, %v2537
      %v2539 = vpop.f32.mrb[0].mxu0
      %2540 = vmatprep.mubr.f32.mxu0 %v2056
      %2541 = vmatmul.mubr.f32.gmra.mrb[0].mxu0 %v1963
      %v2542 = vpop.f32.mrb[0].mxu0
      %v2543 = vadd.f32 %v2414, %v2542
      %v2544 = vpop.f32.mrb[0].mxu0
      %2545 = vmatprep.mubr.f32.mxu0 %v2058
      %2546 = vmatmul.mubr.f32.gmra.mrb[0].mxu0 %v1876
      %v2547 = vpop.f32.mrb[0].mxu0
      %v2548 = vadd.f32 %v2414, %v2547
      %v2549 = vpop.f32.mrb[0].mxu0
      %2550 = vmatprep.mubr.f32.mxu0 %v2061
      %2551 = vmatmul.mubr.f32.gmra.mrb[0].mxu0 %v1964
      %v2552 = vpop.f32.mrb[0].mxu0
      %v2553 = vadd.f32 %v2414, %v2552
      %v2554 = vpop.f32.mrb[0].mxu0
      %2555 = vmatprep.mubr.f32.mxu0 %v2063
      %2556 = vmatmul.mubr.f32.gmra.mrb[0].mxu0 %v1879
      %v2557 = vpop.f32.mrb[0].mxu0
      %v2558 = vadd.f32 %v2414, %v2557
      %v2559 = vpop.f32.mrb[0].mxu0
      %2560 = vmatprep.mubr.f32.mxu0 %v2066
      %2561 = vmatmul.mubr.f32.gmra.mrb[0].mxu0 %v1965
      %v2562 = vpop.f32.mrb[0].mxu0
      %v2563 = vadd.f32 %v2414, %v2562
      %v2564 = vpop.f32.mrb[0].mxu0
      %2565 = vmatprep.mubr.f32.mxu0 %v2068
      %2566 = vmatmul.mubr.f32.gmra.mrb[0].mxu0 %v1882
      %v2567 = vpop.f32.mrb[0].mxu0
      %v2568 = vadd.f32 %v2414, %v2567
      %v2569 = vpop.f32.mrb[0].mxu0
      %2570 = vmatprep.mubr.f32.mxu0 %v2071
      %2571 = vmatmul.mubr.f32.gmra.mrb[0].mxu0 %v1966
      %v2572 = vpop.f32.mrb[0].mxu0
      %v2573 = vadd.f32 %v2414, %v2572
      %v2574 = vpop.f32.mrb[0].mxu0
      %2575 = vmatprep.mubr.f32.mxu0 %v2073
      %2576 = vmatmul.mubr.f32.gmra.mrb[0].mxu0 %v1885
      %v2577 = vpop.f32.mrb[0].mxu0
      %v2578 = vadd.f32 %v2414, %v2577
      %v2579 = vpop.f32.mrb[0].mxu0
      %2580 = vmatprep.mubr.f32.mxu0 %v2076
      %2581 = vmatmul.mubr.f32.gmra.mrb[0].mxu0 %v1967
      %v2582 = vpop.f32.mrb[0].mxu0
      %v2583 = vadd.f32 %v2414, %v2582
      %v2584 = vpop.f32.mrb[0].mxu0
      %2585 = vmatprep.mubr.f32.mxu0 %v2078
      %2586 = vmatmul.mubr.f32.gmra.mrb[0].mxu0 %v1888
      %v2587 = vpop.f32.mrb[0].mxu0
      %v2588 = vadd.f32 %v2414, %v2587
      %v2589 = vpop.f32.mrb[0].mxu0
      %2590 = vmatprep.mubr.f32.mxu0 %v2081
      %2591 = vmatmul.mubr.f32.gmra.mrb[0].mxu0 %v1968
      %v2592 = vpop.f32.mrb[0].mxu0
      %v2593 = vadd.f32 %v2414, %v2592
      %v2594 = vpop.f32.mrb[0].mxu0
      %2595 = vmatprep.mubr.f32.mxu0 %v2083
      %2596 = vmatmul.mubr.f32.gmra.mrb[0].mxu0 %v1891
      %v2597 = vpop.f32.mrb[0].mxu0
      %v2598 = vadd.f32 %v2414, %v2597
      %v2599 = vpop.f32.mrb[0].mxu0
      %2600 = vmatprep.mubr.f32.mxu0 %v2086
      %2601 = vmatmul.mubr.f32.gmra.mrb[0].mxu0 %v1969
      %v2602 = vpop.f32.mrb[0].mxu0
      %v2603 = vadd.f32 %v2414, %v2602
      %v2604 = vpop.f32.mrb[0].mxu0
      %2605 = vmatprep.mubr.f32.mxu0 %v2088
      %2606 = vmatmul.mubr.f32.gmra.mrb[0].mxu0 %v1894
      %v2607 = vpop.f32.mrb[0].mxu0
      %v2608 = vadd.f32 %v2414, %v2607
      %v2609 = vpop.f32.mrb[0].mxu0
      %2610 = vmatprep.mubr.f32.mxu0 %v2091
      %2611 = vmatmul.mubr.f32.gmra.mrb[0].mxu0 %v1970
      %v2612 = vpop.f32.mrb[0].mxu0
      %v2613 = vadd.f32 %v2414, %v2612
      %v2614 = vpop.f32.mrb[0].mxu0
      %2615 = vmatprep.mubr.f32.mxu0 %v2093
      %2616 = vmatmul.mubr.f32.gmra.mrb[0].mxu0 %v1897
      %v2617 = vpop.f32.mrb[0].mxu0
      %v2618 = vadd.f32 %v2414, %v2617
      %v2619 = vpop.f32.mrb[0].mxu0
      %2620 = vmatprep.mubr.f32.mxu0 %v2096
      %2621 = vmatmul.mubr.f32.gmra.mrb[0].mxu0 %v1971
      %v2622 = vpop.f32.mrb[0].mxu0
      %v2623 = vadd.f32 %v2414, %v2622
      %v2624 = vpop.f32.mrb[0].mxu0
      %2625 = vmatprep.mubr.f32.mxu0 %v2098
      %2626 = vmatmul.mubr.f32.gmra.mrb[0].mxu0 %v1900
      %v2627 = vpop.f32.mrb[0].mxu0
      %v2628 = vadd.f32 %v2414, %v2627
      %v2629 = vpop.f32.mrb[0].mxu0
      %2630 = vmatprep.mubr.f32.mxu0 %v2101
      %2631 = vmatmul.mubr.f32.gmra.mrb[0].mxu0 %v1972
      %v2632 = vpop.f32.mrb[0].mxu0
      %v2633 = vadd.f32 %v2414, %v2632
      %v2634 = vpop.f32.mrb[0].mxu0
      %2635 = vmatprep.mubr.f32.mxu0 %v2103
      %2636 = vmatmul.mubr.f32.gmra.mrb[0].mxu0 %v1903
      %v2637 = vpop.f32.mrb[0].mxu0
      %v2638 = vadd.f32 %v2414, %v2637
      %v2639 = vpop.f32.mrb[0].mxu0
      %2640 = vdwg.mxu0
      %2641 = vmatprep.subr.mxu0 0.0
      %2642 = vmatpush1.msra.mxu0 %v2297
      %2643 = vmatprep.subr.mxu0 0.0
      %2644 = vmatpush1.msra.mxu0 %v2298
      %2645 = vmatprep.subr.mxu0 0.0
      %2646 = vmatpush1.msra.mxu0 %v2299
      %2647 = vmatprep.subr.mxu0 0.0
      %2648 = vmatpush1.msra.mxu0 %v2300
      %2649 = vmatprep.subr.mxu0 0.0
      %2650 = vmatpush1.msra.mxu0 %v2301
      %2651 = vmatprep.subr.mxu0 0.0
      %2652 = vmatpush1.msra.mxu0 %v2302
      %2653 = vmatprep.subr.mxu0 0.0
      %2654 = vmatpush1.msra.mxu0 %v2303
      %2655 = vmatprep.subr.mxu0 0.0
      %2656 = vmatpush1.msra.mxu0 %v2304
      %2657 = vmatprep.subr.mxu0 0.0
      %2658 = vmatpush1.msra.mxu0 %v2305
      %2659 = vmatprep.subr.mxu0 0.0
      %2660 = vmatpush1.msra.mxu0 %v2306
      %2661 = vmatprep.subr.mxu0 0.0
      %2662 = vmatpush1.msra.mxu0 %v2307
      %2663 = vmatprep.subr.mxu0 0.0
      %2664 = vmatpush1.msra.mxu0 %v2308
      %2665 = vmatprep.subr.mxu0 0.0
      %2666 = vmatpush1.msra.mxu0 %v2309
      %2667 = vmatprep.subr.mxu0 0.0
      %2668 = vmatpush1.msra.mxu0 %v2310
      %2669 = vmatprep.subr.mxu0 0.0
      %2670 = vmatpush1.msra.mxu0 %v2311
      %2671 = vmatprep.subr.mxu0 0.0
      %2672 = vmatpush1.msra.mxu0 %v2312
      %2673 = vmatprep.subr.mxu0 0.0
      %2674 = vmatpush1.msra.mxu0 %v2313
      %2675 = vmatprep.subr.mxu0 0.0
      %2676 = vmatpush1.msra.mxu0 %v2314
      %2677 = vmatprep.subr.mxu0 0.0
      %2678 = vmatpush1.msra.mxu0 %v2315
      %2679 = vmatprep.subr.mxu0 0.0
      %2680 = vmatpush1.msra.mxu0 %v2316
      %2681 = vmatprep.subr.mxu0 0.0
      %2682 = vmatpush1.msra.mxu0 %v2317
      %2683 = vmatprep.subr.mxu0 0.0
      %2684 = vmatpush1.msra.mxu0 %v2318
      %2685 = vmatprep.subr.mxu0 0.0
      %2686 = vmatpush1.msra.mxu0 %v2319
      %2687 = vmatprep.subr.mxu0 0.0
      %2688 = vmatpush1.msra.mxu0 %v2320
      %2689 = vmatprep.subr.mxu0 0.0
      %2690 = vmatpush1.msra.mxu0 %v2321
      %2691 = vmatprep.subr.mxu0 0.0
      %2692 = vmatpush1.msra.mxu0 %v2322
      %2693 = vmatprep.subr.mxu0 0.0
      %2694 = vmatpush1.msra.mxu0 %v2323
      %2695 = vmatprep.subr.mxu0 0.0
      %2696 = vmatpush1.msra.mxu0 %v2324
      %2697 = vmatprep.subr.mxu0 0.0
      %2698 = vmatpush1.msra.mxu0 %v2325
      %2699 = vmatprep.subr.mxu0 0.0
      %2700 = vmatpush1.msra.mxu0 %v2326
      %2701 = vmatprep.subr.mxu0 0.0
      %2702 = vmatpush1.msra.mxu0 %v2327
      %2703 = vmatprep.subr.mxu0 0.0
      %2704 = vmatpush1.msra.mxu0 %v2328
      %2705 = vmatprep.mubr.f32.mxu0 %v1958
      %2706 = vmatmul.mubr.f32.gmra.mrb[0].mxu0 %v2139
      %v2707 = vpop.f32.mrb[0].mxu0
      %v2708 = vadd.f32 %v2483, %v2707
      %v2709 = vpop.f32.mrb[0].mxu0
      %2710 = vmatprep.mubr.f32.mxu0 %v1861
      %2711 = vmatmul.mubr.f32.gmra.mrb[0].mxu0 %v2141
      %v2712 = vpop.f32.mrb[0].mxu0
      %v2713 = vadd.f32 %v2488, %v2712
      %v2714 = vpop.f32.mrb[0].mxu0
      %2715 = vmatprep.mubr.f32.mxu0 %v1959
      %2716 = vmatmul.mubr.f32.gmra.mrb[0].mxu0 %v2144
      %v2717 = vpop.f32.mrb[0].mxu0
      %v2718 = vadd.f32 %v2493, %v2717
      %v2719 = vpop.f32.mrb[0].mxu0
      %2720 = vmatprep.mubr.f32.mxu0 %v1864
      %2721 = vmatmul.mubr.f32.gmra.mrb[0].mxu0 %v2146
      %v2722 = vpop.f32.mrb[0].mxu0
      %v2723 = vadd.f32 %v2498, %v2722
      %v2724 = vpop.f32.mrb[0].mxu0
      %2725 = vmatprep.mubr.f32.mxu0 %v1960
      %2726 = vmatmul.mubr.f32.gmra.mrb[0].mxu0 %v2149
      %v2727 = vpop.f32.mrb[0].mxu0
      %v2728 = vadd.f32 %v2503, %v2727
      %v2729 = vpop.f32.mrb[0].mxu0
      %2730 = vmatprep.mubr.f32.mxu0 %v1867
      %2731 = vmatmul.mubr.f32.gmra.mrb[0].mxu0 %v2151
      %v2732 = vpop.f32.mrb[0].mxu0
      %v2733 = vadd.f32 %v2508, %v2732
      %v2734 = vpop.f32.mrb[0].mxu0
      %2735 = vmatprep.mubr.f32.mxu0 %v1961
      %2736 = vmatmul.mubr.f32.gmra.mrb[0].mxu0 %v2154
      %v2737 = vpop.f32.mrb[0].mxu0
      %v2738 = vadd.f32 %v2513, %v2737
      %v2739 = vpop.f32.mrb[0].mxu0
      %2740 = vmatprep.mubr.f32.mxu0 %v1870
      %2741 = vmatmul.mubr.f32.gmra.mrb[0].mxu0 %v2156
      %v2742 = vpop.f32.mrb[0].mxu0
      %v2743 = vadd.f32 %v2518, %v2742
      %v2744 = vpop.f32.mrb[0].mxu0
      %2745 = vmatprep.mubr.f32.mxu0 %v1962
      %2746 = vmatmul.mubr.f32.gmra.mrb[0].mxu0 %v2159
      %v2747 = vpop.f32.mrb[0].mxu0
      %v2748 = vadd.f32 %v2523, %v2747
      %v2749 = vpop.f32.mrb[0].mxu0
      %2750 = vmatprep.mubr.f32.mxu0 %v1873
      %2751 = vmatmul.mubr.f32.gmra.mrb[0].mxu0 %v2161
      %v2752 = vpop.f32.mrb[0].mxu0
      %v2753 = vadd.f32 %v2528, %v2752
      %v2754 = vpop.f32.mrb[0].mxu0
      %2755 = vmatprep.mubr.f32.mxu0 %v1963
      %2756 = vmatmul.mubr.f32.gmra.mrb[0].mxu0 %v2164
      %v2757 = vpop.f32.mrb[0].mxu0
      %v2758 = vadd.f32 %v2533, %v2757
      %v2759 = vpop.f32.mrb[0].mxu0
      %2760 = vmatprep.mubr.f32.mxu0 %v1876
      %2761 = vmatmul.mubr.f32.gmra.mrb[0].mxu0 %v2166
      %v2762 = vpop.f32.mrb[0].mxu0
      %v2763 = vadd.f32 %v2538, %v2762
      %v2764 = vpop.f32.mrb[0].mxu0
      %2765 = vmatprep.mubr.f32.mxu0 %v1964
      %2766 = vmatmul.mubr.f32.gmra.mrb[0].mxu0 %v2169
      %v2767 = vpop.f32.mrb[0].mxu0
      %v2768 = vadd.f32 %v2543, %v2767
      %v2769 = vpop.f32.mrb[0].mxu0
      %2770 = vmatprep.mubr.f32.mxu0 %v1879
      %2771 = vmatmul.mubr.f32.gmra.mrb[0].mxu0 %v2171
      %v2772 = vpop.f32.mrb[0].mxu0
      %v2773 = vadd.f32 %v2548, %v2772
      %v2774 = vpop.f32.mrb[0].mxu0
      %2775 = vmatprep.mubr.f32.mxu0 %v1965
      %2776 = vmatmul.mubr.f32.gmra.mrb[0].mxu0 %v2174
      %v2777 = vpop.f32.mrb[0].mxu0
      %v2778 = vadd.f32 %v2553, %v2777
      %v2779 = vpop.f32.mrb[0].mxu0
      %2780 = vmatprep.mubr.f32.mxu0 %v1882
      %2781 = vmatmul.mubr.f32.gmra.mrb[0].mxu0 %v2176
      %v2782 = vpop.f32.mrb[0].mxu0
      %v2783 = vadd.f32 %v2558, %v2782
      %v2784 = vpop.f32.mrb[0].mxu0
      %2785 = vmatprep.mubr.f32.mxu0 %v1966
      %2786 = vmatmul.mubr.f32.gmra.mrb[0].mxu0 %v2179
      %v2787 = vpop.f32.mrb[0].mxu0
      %v2788 = vadd.f32 %v2563, %v2787
      %v2789 = vpop.f32.mrb[0].mxu0
      %2790 = vmatprep.mubr.f32.mxu0 %v1885
      %2791 = vmatmul.mubr.f32.gmra.mrb[0].mxu0 %v2181
      %v2792 = vpop.f32.mrb[0].mxu0
      %v2793 = vadd.f32 %v2568, %v2792
      %v2794 = vpop.f32.mrb[0].mxu0
      %2795 = vmatprep.mubr.f32.mxu0 %v1967
      %2796 = vmatmul.mubr.f32.gmra.mrb[0].mxu0 %v2184
      %v2797 = vpop.f32.mrb[0].mxu0
      %v2798 = vadd.f32 %v2573, %v2797
      %v2799 = vpop.f32.mrb[0].mxu0
      %2800 = vmatprep.mubr.f32.mxu0 %v1888
      %2801 = vmatmul.mubr.f32.gmra.mrb[0].mxu0 %v2186
      %v2802 = vpop.f32.mrb[0].mxu0
      %v2803 = vadd.f32 %v2578, %v2802
      %v2804 = vpop.f32.mrb[0].mxu0
      %2805 = vmatprep.mubr.f32.mxu0 %v1968
      %2806 = vmatmul.mubr.f32.gmra.mrb[0].mxu0 %v2189
      %v2807 = vpop.f32.mrb[0].mxu0
      %v2808 = vadd.f32 %v2583, %v2807
      %v2809 = vpop.f32.mrb[0].mxu0
      %2810 = vmatprep.mubr.f32.mxu0 %v1891
      %2811 = vmatmul.mubr.f32.gmra.mrb[0].mxu0 %v2191
      %v2812 = vpop.f32.mrb[0].mxu0
      %v2813 = vadd.f32 %v2588, %v2812
      %v2814 = vpop.f32.mrb[0].mxu0
      %2815 = vmatprep.mubr.f32.mxu0 %v1969
      %2816 = vmatmul.mubr.f32.gmra.mrb[0].mxu0 %v2194
      %v2817 = vpop.f32.mrb[0].mxu0
      %v2818 = vadd.f32 %v2593, %v2817
      %v2819 = vpop.f32.mrb[0].mxu0
      %2820 = vmatprep.mubr.f32.mxu0 %v1894
      %2821 = vmatmul.mubr.f32.gmra.mrb[0].mxu0 %v2196
      %v2822 = vpop.f32.mrb[0].mxu0
      %v2823 = vadd.f32 %v2598, %v2822
      %v2824 = vpop.f32.mrb[0].mxu0
      %2825 = vmatprep.mubr.f32.mxu0 %v1970
      %2826 = vmatmul.mubr.f32.gmra.mrb[0].mxu0 %v2199
      %v2827 = vpop.f32.mrb[0].mxu0
      %v2828 = vadd.f32 %v2603, %v2827
      %v2829 = vpop.f32.mrb[0].mxu0
      %2830 = vmatprep.mubr.f32.mxu0 %v1897
      %2831 = vmatmul.mubr.f32.gmra.mrb[0].mxu0 %v2201
      %v2832 = vpop.f32.mrb[0].mxu0
      %v2833 = vadd.f32 %v2608, %v2832
      %v2834 = vpop.f32.mrb[0].mxu0
      %2835 = vmatprep.mubr.f32.mxu0 %v1971
      %2836 = vmatmul.mubr.f32.gmra.mrb[0].mxu0 %v2204
      %v2837 = vpop.f32.mrb[0].mxu0
      %v2838 = vadd.f32 %v2613, %v2837
      %v2839 = vpop.f32.mrb[0].mxu0
      %2840 = vmatprep.mubr.f32.mxu0 %v1900
      %2841 = vmatmul.mubr.f32.gmra.mrb[0].mxu0 %v2206
      %v2842 = vpop.f32.mrb[0].mxu0
      %v2843 = vadd.f32 %v2618, %v2842
      %v2844 = vpop.f32.mrb[0].mxu0
      %2845 = vmatprep.mubr.f32.mxu0 %v1972
      %2846 = vmatmul.mubr.f32.gmra.mrb[0].mxu0 %v2209
      %v2847 = vpop.f32.mrb[0].mxu0
      %v2848 = vadd.f32 %v2623, %v2847
      %v2849 = vpop.f32.mrb[0].mxu0
      %2850 = vmatprep.mubr.f32.mxu0 %v1903
      %2851 = vmatmul.mubr.f32.gmra.mrb[0].mxu0 %v2211
      %v2852 = vpop.f32.mrb[0].mxu0
      %v2853 = vadd.f32 %v2628, %v2852
      %v2854 = vpop.f32.mrb[0].mxu0
      %2855 = vmatprep.mubr.f32.mxu0 %v1973
      %2856 = vmatmul.mubr.f32.gmra.mrb[0].mxu0 %v2214
      %v2857 = vpop.f32.mrb[0].mxu0
      %v2858 = vadd.f32 %v2633, %v2857
      %v2859 = vpop.f32.mrb[0].mxu0
      %2860 = vmatprep.mubr.f32.mxu0 %v1906
      %2861 = vmatmul.mubr.f32.gmra.mrb[0].mxu0 %v2216
      %v2862 = vpop.f32.mrb[0].mxu0
      %v2863 = vadd.f32 %v2638, %v2862
      %v2864 = vpop.f32.mrb[0].mxu0
      %2865 = vdwg.mxu0
      %2866 = vmatprep.subr.mxu0 0.0
      %2867 = vmatpush1.msra.mxu0 %v2329
      %2868 = vmatprep.subr.mxu0 0.0
      %2869 = vmatpush1.msra.mxu0 %v2330
      %2870 = vmatprep.subr.mxu0 0.0
      %2871 = vmatpush1.msra.mxu0 %v2331
      %2872 = vmatprep.subr.mxu0 0.0
      %2873 = vmatpush1.msra.mxu0 %v2332
      %2874 = vmatprep.subr.mxu0 0.0
      %2875 = vmatpush1.msra.mxu0 %v2333
      %2876 = vmatprep.subr.mxu0 0.0
      %2877 = vmatpush1.msra.mxu0 %v2334
      %2878 = vmatprep.subr.mxu0 0.0
      %2879 = vmatpush1.msra.mxu0 %v2335
      %2880 = vmatprep.subr.mxu0 0.0
      %2881 = vmatpush1.msra.mxu0 %v2336
      %2882 = vmatprep.subr.mxu0 0.0
      %2883 = vmatpush1.msra.mxu0 %v2337
      %2884 = vmatprep.subr.mxu0 0.0
      %2885 = vmatpush1.msra.mxu0 %v2338
      %2886 = vmatprep.subr.mxu0 0.0
      %2887 = vmatpush1.msra.mxu0 %v2339
      %2888 = vmatprep.subr.mxu0 0.0
      %2889 = vmatpush1.msra.mxu0 %v2340
      %2890 = vmatprep.subr.mxu0 0.0
      %2891 = vmatpush1.msra.mxu0 %v2341
      %2892 = vmatprep.subr.mxu0 0.0
      %2893 = vmatpush1.msra.mxu0 %v2342
      %2894 = vmatprep.subr.mxu0 0.0
      %2895 = vmatpush1.msra.mxu0 %v2343
      %2896 = vmatprep.subr.mxu0 0.0
      %2897 = vmatpush1.msra.mxu0 %v2344
      %2898 = vmatprep.subr.mxu0 0.0
      %2899 = vmatpush1.msra.mxu0 %v2345
      %2900 = vmatprep.subr.mxu0 0.0
      %2901 = vmatpush1.msra.mxu0 %v2346
      %2902 = vmatprep.subr.mxu0 0.0
      %2903 = vmatpush1.msra.mxu0 %v2347
      %2904 = vmatprep.subr.mxu0 0.0
      %2905 = vmatpush1.msra.mxu0 %v2348
      %2906 = vmatprep.subr.mxu0 0.0
      %2907 = vmatpush1.msra.mxu0 %v2349
      %2908 = vmatprep.subr.mxu0 0.0
      %2909 = vmatpush1.msra.mxu0 %v2350
      %2910 = vmatprep.subr.mxu0 0.0
      %2911 = vmatpush1.msra.mxu0 %v2351
      %2912 = vmatprep.subr.mxu0 0.0
      %2913 = vmatpush1.msra.mxu0 %v2352
      %2914 = vmatprep.subr.mxu0 0.0
      %2915 = vmatpush1.msra.mxu0 %v2353
      %2916 = vmatprep.subr.mxu0 0.0
      %2917 = vmatpush1.msra.mxu0 %v2354
      %2918 = vmatprep.subr.mxu0 0.0
      %2919 = vmatpush1.msra.mxu0 %v2355
      %2920 = vmatprep.subr.mxu0 0.0
      %2921 = vmatpush1.msra.mxu0 %v2356
      %2922 = vmatprep.subr.mxu0 0.0
      %2923 = vmatpush1.msra.mxu0 %v2357
      %2924 = vmatprep.subr.mxu0 0.0
      %2925 = vmatpush1.msra.mxu0 %v2358
      %2926 = vmatprep.subr.mxu0 0.0
      %2927 = vmatpush1.msra.mxu0 %v2359
      %2928 = vmatprep.subr.mxu0 0.0
      %2929 = vmatpush1.msra.mxu0 %v2360
      %2930 = vmatprep.mubr.f32.mxu0 %v2144
      %2931 = vmatmul.mubr.f32.gmra.mrb[0].mxu0 %v2031
      %v2932 = vpop.f32.mrb[0].mxu0
      %v2933 = vadd.f32 %v2708, %v2932
      %v2934 = vpop.f32.mrb[0].mxu0
      %2935 = vmatprep.mubr.f32.mxu0 %v2146
      %2936 = vmatmul.mubr.f32.gmra.mrb[0].mxu0 %v2033
      %v2937 = vpop.f32.mrb[0].mxu0
      %v2938 = vadd.f32 %v2713, %v2937
      %v2939 = vpop.f32.mrb[0].mxu0
      %2940 = vmatprep.mubr.f32.mxu0 %v2149
      %2941 = vmatmul.mubr.f32.gmra.mrb[0].mxu0 %v2036
      %v2942 = vpop.f32.mrb[0].mxu0
      %v2943 = vadd.f32 %v2718, %v2942
      %v2944 = vpop.f32.mrb[0].mxu0
      %2945 = vmatprep.mubr.f32.mxu0 %v2151
      %2946 = vmatmul.mubr.f32.gmra.mrb[0].mxu0 %v2038
      %v2947 = vpop.f32.mrb[0].mxu0
      %v2948 = vadd.f32 %v2723, %v2947
      %v2949 = vpop.f32.mrb[0].mxu0
      %2950 = vmatprep.mubr.f32.mxu0 %v2154
      %2951 = vmatmul.mubr.f32.gmra.mrb[0].mxu0 %v2041
      %v2952 = vpop.f32.mrb[0].mxu0
      %v2953 = vadd.f32 %v2728, %v2952
      %v2954 = vpop.f32.mrb[0].mxu0
      %2955 = vmatprep.mubr.f32.mxu0 %v2156
      %2956 = vmatmul.mubr.f32.gmra.mrb[0].mxu0 %v2043
      %v2957 = vpop.f32.mrb[0].mxu0
      %v2958 = vadd.f32 %v2733, %v2957
      %v2959 = vpop.f32.mrb[0].mxu0
      %2960 = vmatprep.mubr.f32.mxu0 %v2159
      %2961 = vmatmul.mubr.f32.gmra.mrb[0].mxu0 %v2046
      %v2962 = vpop.f32.mrb[0].mxu0
      %v2963 = vadd.f32 %v2738, %v2962
      %v2964 = vpop.f32.mrb[0].mxu0
      %2965 = vmatprep.mubr.f32.mxu0 %v2161
      %2966 = vmatmul.mubr.f32.gmra.mrb[0].mxu0 %v2048
      %v2967 = vpop.f32.mrb[0].mxu0
      %v2968 = vadd.f32 %v2743, %v2967
      %v2969 = vpop.f32.mrb[0].mxu0
      %2970 = vmatprep.mubr.f32.mxu0 %v2164
      %2971 = vmatmul.mubr.f32.gmra.mrb[0].mxu0 %v2051
      %v2972 = vpop.f32.mrb[0].mxu0
      %v2973 = vadd.f32 %v2748, %v2972
      %v2974 = vpop.f32.mrb[0].mxu0
      %2975 = vmatprep.mubr.f32.mxu0 %v2166
      %2976 = vmatmul.mubr.f32.gmra.mrb[0].mxu0 %v2053
      %v2977 = vpop.f32.mrb[0].mxu0
      %v2978 = vadd.f32 %v2753, %v2977
      %v2979 = vpop.f32.mrb[0].mxu0
      %2980 = vmatprep.mubr.f32.mxu0 %v2169
      %2981 = vmatmul.mubr.f32.gmra.mrb[0].mxu0 %v2056
      %v2982 = vpop.f32.mrb[0].mxu0
      %v2983 = vadd.f32 %v2758, %v2982
      %v2984 = vpop.f32.mrb[0].mxu0
      %2985 = vmatprep.mubr.f32.mxu0 %v2171
      %2986 = vmatmul.mubr.f32.gmra.mrb[0].mxu0 %v2058
      %v2987 = vpop.f32.mrb[0].mxu0
      %v2988 = vadd.f32 %v2763, %v2987
      %v2989 = vpop.f32.mrb[0].mxu0
      %2990 = vmatprep.mubr.f32.mxu0 %v2174
      %2991 = vmatmul.mubr.f32.gmra.mrb[0].mxu0 %v2061
      %v2992 = vpop.f32.mrb[0].mxu0
      %v2993 = vadd.f32 %v2768, %v2992
      %v2994 = vpop.f32.mrb[0].mxu0
      %2995 = vmatprep.mubr.f32.mxu0 %v2176
      %2996 = vmatmul.mubr.f32.gmra.mrb[0].mxu0 %v2063
      %v2997 = vpop.f32.mrb[0].mxu0
      %v2998 = vadd.f32 %v2773, %v2997
      %v2999 = vpop.f32.mrb[0].mxu0
      %3000 = vmatprep.mubr.f32.mxu0 %v2179
      %3001 = vmatmul.mubr.f32.gmra.mrb[0].mxu0 %v2066
      %v3002 = vpop.f32.mrb[0].mxu0
      %v3003 = vadd.f32 %v2778, %v3002
      %v3004 = vpop.f32.mrb[0].mxu0
      %3005 = vmatprep.mubr.f32.mxu0 %v2181
      %3006 = vmatmul.mubr.f32.gmra.mrb[0].mxu0 %v2068
      %v3007 = vpop.f32.mrb[0].mxu0
      %v3008 = vadd.f32 %v2783, %v3007
      %v3009 = vpop.f32.mrb[0].mxu0
      %3010 = vmatprep.mubr.f32.mxu0 %v2184
      %3011 = vmatmul.mubr.f32.gmra.mrb[0].mxu0 %v2071
      %v3012 = vpop.f32.mrb[0].mxu0
      %v3013 = vadd.f32 %v2788, %v3012
      %v3014 = vpop.f32.mrb[0].mxu0
      %3015 = vmatprep.mubr.f32.mxu0 %v2186
      %3016 = vmatmul.mubr.f32.gmra.mrb[0].mxu0 %v2073
      %v3017 = vpop.f32.mrb[0].mxu0
      %v3018 = vadd.f32 %v2793, %v3017
      %v3019 = vpop.f32.mrb[0].mxu0
      %3020 = vmatprep.mubr.f32.mxu0 %v2189
      %3021 = vmatmul.mubr.f32.gmra.mrb[0].mxu0 %v2076
      %v3022 = vpop.f32.mrb[0].mxu0
      %v3023 = vadd.f32 %v2798, %v3022
      %v3024 = vpop.f32.mrb[0].mxu0
      %3025 = vmatprep.mubr.f32.mxu0 %v2191
      %3026 = vmatmul.mubr.f32.gmra.mrb[0].mxu0 %v2078
      %v3027 = vpop.f32.mrb[0].mxu0
      %v3028 = vadd.f32 %v2803, %v3027
      %v3029 = vpop.f32.mrb[0].mxu0
      %3030 = vmatprep.mubr.f32.mxu0 %v2194
      %3031 = vmatmul.mubr.f32.gmra.mrb[0].mxu0 %v2081
      %v3032 = vpop.f32.mrb[0].mxu0
      %v3033 = vadd.f32 %v2808, %v3032
      %v3034 = vpop.f32.mrb[0].mxu0
      %3035 = vmatprep.mubr.f32.mxu0 %v2196
      %3036 = vmatmul.mubr.f32.gmra.mrb[0].mxu0 %v2083
      %v3037 = vpop.f32.mrb[0].mxu0
      %v3038 = vadd.f32 %v2813, %v3037
      %v3039 = vpop.f32.mrb[0].mxu0
      %3040 = vmatprep.mubr.f32.mxu0 %v2199
      %3041 = vmatmul.mubr.f32.gmra.mrb[0].mxu0 %v2086
      %v3042 = vpop.f32.mrb[0].mxu0
      %v3043 = vadd.f32 %v2818, %v3042
      %v3044 = vpop.f32.mrb[0].mxu0
      %3045 = vmatprep.mubr.f32.mxu0 %v2201
      %3046 = vmatmul.mubr.f32.gmra.mrb[0].mxu0 %v2088
      %v3047 = vpop.f32.mrb[0].mxu0
      %v3048 = vadd.f32 %v2823, %v3047
      %v3049 = vpop.f32.mrb[0].mxu0
      %3050 = vmatprep.mubr.f32.mxu0 %v2204
      %3051 = vmatmul.mubr.f32.gmra.mrb[0].mxu0 %v2091
      %v3052 = vpop.f32.mrb[0].mxu0
      %v3053 = vadd.f32 %v2828, %v3052
      %v3054 = vpop.f32.mrb[0].mxu0
      %3055 = vmatprep.mubr.f32.mxu0 %v2206
      %3056 = vmatmul.mubr.f32.gmra.mrb[0].mxu0 %v2093
      %v3057 = vpop.f32.mrb[0].mxu0
      %v3058 = vadd.f32 %v2833, %v3057
      %v3059 = vpop.f32.mrb[0].mxu0
      %3060 = vmatprep.mubr.f32.mxu0 %v2209
      %3061 = vmatmul.mubr.f32.gmra.mrb[0].mxu0 %v2096
      %v3062 = vpop.f32.mrb[0].mxu0
      %v3063 = vadd.f32 %v2838, %v3062
      %v3064 = vpop.f32.mrb[0].mxu0
      %3065 = vmatprep.mubr.f32.mxu0 %v2211
      %3066 = vmatmul.mubr.f32.gmra.mrb[0].mxu0 %v2098
      %v3067 = vpop.f32.mrb[0].mxu0
      %v3068 = vadd.f32 %v2843, %v3067
      %v3069 = vpop.f32.mrb[0].mxu0
      %3070 = vmatprep.mubr.f32.mxu0 %v2214
      %3071 = vmatmul.mubr.f32.gmra.mrb[0].mxu0 %v2101
      %v3072 = vpop.f32.mrb[0].mxu0
      %v3073 = vadd.f32 %v2848, %v3072
      %v3074 = vpop.f32.mrb[0].mxu0
      %3075 = vmatprep.mubr.f32.mxu0 %v2216
      %3076 = vmatmul.mubr.f32.gmra.mrb[0].mxu0 %v2103
      %v3077 = vpop.f32.mrb[0].mxu0
      %v3078 = vadd.f32 %v2853, %v3077
      %v3079 = vpop.f32.mrb[0].mxu0
      %3080 = vmatprep.mubr.f32.mxu0 %v2260
      %3081 = vmatmul.mubr.f32.gmra.mrb[0].mxu0 %v2253
      %v3082 = vpop.f32.mrb[0].mxu0
      %v3083 = vadd.f32 %v2858, %v3082
      %v3084 = vpop.f32.mrb[0].mxu0
      %3085 = vmatprep.mubr.f32.mxu0 %v2262
      %3086 = vmatmul.mubr.f32.gmra.mrb[0].mxu0 %v2255
      %v3087 = vpop.f32.mrb[0].mxu0
      %v3088 = vadd.f32 %v2863, %v3087
      %v3089 = vpop.f32.mrb[0].mxu0
      %3090 = vdwg.mxu0
      %3091 = vmatprep.subr.mxu0 0.0
      %3092 = vmatpush1.msra.mxu0 %v2361
      %3093 = vmatprep.subr.mxu0 0.0
      %3094 = vmatpush1.msra.mxu0 %v2362
      %3095 = vmatprep.subr.mxu0 0.0
      %3096 = vmatpush1.msra.mxu0 %v2363
      %3097 = vmatprep.subr.mxu0 0.0
      %3098 = vmatpush1.msra.mxu0 %v2364
      %3099 = vmatprep.subr.mxu0 0.0
      %3100 = vmatpush1.msra.mxu0 %v2365
      %3101 = vmatprep.subr.mxu0 0.0
      %3102 = vmatpush1.msra.mxu0 %v2366
      %3103 = vmatprep.subr.mxu0 0.0
      %3104 = vmatpush1.msra.mxu0 %v2367
      %3105 = vmatprep.subr.mxu0 0.0
      %3106 = vmatpush1.msra.mxu0 %v2368
      %3107 = vmatprep.subr.mxu0 0.0
      %3108 = vmatpush1.msra.mxu0 %v2369
      %3109 = vmatprep.subr.mxu0 0.0
      %3110 = vmatpush1.msra.mxu0 %v2370
      %3111 = vmatprep.subr.mxu0 0.0
      %3112 = vmatpush1.msra.mxu0 %v2371
      %3113 = vmatprep.subr.mxu0 0.0
      %3114 = vmatpush1.msra.mxu0 %v2372
      %3115 = vmatprep.subr.mxu0 0.0
      %3116 = vmatpush1.msra.mxu0 %v2373
      %3117 = vmatprep.subr.mxu0 0.0
      %3118 = vmatpush1.msra.mxu0 %v2374
      %3119 = vmatprep.subr.mxu0 0.0
      %3120 = vmatpush1.msra.mxu0 %v2375
      %3121 = vmatprep.subr.mxu0 0.0
      %3122 = vmatpush1.msra.mxu0 %v2376
      %3123 = vmatprep.subr.mxu0 0.0
      %3124 = vmatpush1.msra.mxu0 %v2377
      %3125 = vmatprep.subr.mxu0 0.0
      %3126 = vmatpush1.msra.mxu0 %v2378
      %3127 = vmatprep.subr.mxu0 0.0
      %3128 = vmatpush1.msra.mxu0 %v2379
      %3129 = vmatprep.subr.mxu0 0.0
      %3130 = vmatpush1.msra.mxu0 %v2380
      %3131 = vmatprep.subr.mxu0 0.0
      %3132 = vmatpush1.msra.mxu0 %v2381
      %3133 = vmatprep.subr.mxu0 0.0
      %3134 = vmatpush1.msra.mxu0 %v2382
      %3135 = vmatprep.subr.mxu0 0.0
      %3136 = vmatpush1.msra.mxu0 %v2383
      %3137 = vmatprep.subr.mxu0 0.0
      %3138 = vmatpush1.msra.mxu0 %v2384
      %3139 = vmatprep.subr.mxu0 0.0
      %3140 = vmatpush1.msra.mxu0 %v2385
      %3141 = vmatprep.subr.mxu0 0.0
      %3142 = vmatpush1.msra.mxu0 %v2386
      %3143 = vmatprep.subr.mxu0 0.0
      %3144 = vmatpush1.msra.mxu0 %v2387
      %3145 = vmatprep.subr.mxu0 0.0
      %3146 = vmatpush1.msra.mxu0 %v2388
      %3147 = vmatprep.subr.mxu0 0.0
      %3148 = vmatpush1.msra.mxu0 %v2389
      %3149 = vmatprep.subr.mxu0 0.0
      %3150 = vmatpush1.msra.mxu0 %v2390
      %3151 = vmatprep.subr.mxu0 0.0
      %3152 = vmatpush1.msra.mxu0 %v2391
      %3153 = vmatprep.subr.mxu0 0.0
      %3154 = vmatpush1.msra.mxu0 %v2392
      %3155 = vmatprep.mubr.f32.mxu0 %v2036
      %3156 = vmatmul.mubr.f32.gmra.mrb[0].mxu0 %v1959
      %v3157 = vpop.f32.mrb[0].mxu0
      %v3158 = vadd.f32 %v2933, %v3157
      %v3159 = vpop.f32.mrb[0].mxu0
      %3160 = vmatprep.mubr.f32.mxu0 %v2038
      %3161 = vmatmul.mubr.f32.gmra.mrb[0].mxu0 %v1864
      %v3162 = vpop.f32.mrb[0].mxu0
      %v3163 = vadd.f32 %v2938, %v3162
      %v3164 = vpop.f32.mrb[0].mxu0
      %3165 = vmatprep.mubr.f32.mxu0 %v2041
      %3166 = vmatmul.mubr.f32.gmra.mrb[0].mxu0 %v1960
      %v3167 = vpop.f32.mrb[0].mxu0
      %v3168 = vadd.f32 %v2943, %v3167
      %v3169 = vpop.f32.mrb[0].mxu0
      %3170 = vmatprep.mubr.f32.mxu0 %v2043
      %3171 = vmatmul.mubr.f32.gmra.mrb[0].mxu0 %v1867
      %v3172 = vpop.f32.mrb[0].mxu0
      %v3173 = vadd.f32 %v2948, %v3172
      %v3174 = vpop.f32.mrb[0].mxu0
      %3175 = vmatprep.mubr.f32.mxu0 %v2046
      %3176 = vmatmul.mubr.f32.gmra.mrb[0].mxu0 %v1961
      %v3177 = vpop.f32.mrb[0].mxu0
      %v3178 = vadd.f32 %v2953, %v3177
      %v3179 = vpop.f32.mrb[0].mxu0
      %3180 = vmatprep.mubr.f32.mxu0 %v2048
      %3181 = vmatmul.mubr.f32.gmra.mrb[0].mxu0 %v1870
      %v3182 = vpop.f32.mrb[0].mxu0
      %v3183 = vadd.f32 %v2958, %v3182
      %v3184 = vpop.f32.mrb[0].mxu0
      %3185 = vmatprep.mubr.f32.mxu0 %v2051
      %3186 = vmatmul.mubr.f32.gmra.mrb[0].mxu0 %v1962
      %v3187 = vpop.f32.mrb[0].mxu0
      %v3188 = vadd.f32 %v2963, %v3187
      %v3189 = vpop.f32.mrb[0].mxu0
      %3190 = vmatprep.mubr.f32.mxu0 %v2053
      %3191 = vmatmul.mubr.f32.gmra.mrb[0].mxu0 %v1873
      %v3192 = vpop.f32.mrb[0].mxu0
      %v3193 = vadd.f32 %v2968, %v3192
      %v3194 = vpop.f32.mrb[0].mxu0
      %3195 = vmatprep.mubr.f32.mxu0 %v2056
      %3196 = vmatmul.mubr.f32.gmra.mrb[0].mxu0 %v1963
      %v3197 = vpop.f32.mrb[0].mxu0
      %v3198 = vadd.f32 %v2973, %v3197
      %v3199 = vpop.f32.mrb[0].mxu0
      %3200 = vmatprep.mubr.f32.mxu0 %v2058
      %3201 = vmatmul.mubr.f32.gmra.mrb[0].mxu0 %v1876
      %v3202 = vpop.f32.mrb[0].mxu0
      %v3203 = vadd.f32 %v2978, %v3202
      %v3204 = vpop.f32.mrb[0].mxu0
      %3205 = vmatprep.mubr.f32.mxu0 %v2061
      %3206 = vmatmul.mubr.f32.gmra.mrb[0].mxu0 %v1964
      %v3207 = vpop.f32.mrb[0].mxu0
      %v3208 = vadd.f32 %v2983, %v3207
      %v3209 = vpop.f32.mrb[0].mxu0
      %3210 = vmatprep.mubr.f32.mxu0 %v2063
      %3211 = vmatmul.mubr.f32.gmra.mrb[0].mxu0 %v1879
      %v3212 = vpop.f32.mrb[0].mxu0
      %v3213 = vadd.f32 %v2988, %v3212
      %v3214 = vpop.f32.mrb[0].mxu0
      %3215 = vmatprep.mubr.f32.mxu0 %v2066
      %3216 = vmatmul.mubr.f32.gmra.mrb[0].mxu0 %v1965
      %v3217 = vpop.f32.mrb[0].mxu0
      %v3218 = vadd.f32 %v2993, %v3217
      %v3219 = vpop.f32.mrb[0].mxu0
      %3220 = vmatprep.mubr.f32.mxu0 %v2068
      %3221 = vmatmul.mubr.f32.gmra.mrb[0].mxu0 %v1882
      %v3222 = vpop.f32.mrb[0].mxu0
      %v3223 = vadd.f32 %v2998, %v3222
      %v3224 = vpop.f32.mrb[0].mxu0
      %3225 = vmatprep.mubr.f32.mxu0 %v2071
      %3226 = vmatmul.mubr.f32.gmra.mrb[0].mxu0 %v1966
      %v3227 = vpop.f32.mrb[0].mxu0
      %v3228 = vadd.f32 %v3003, %v3227
      %v3229 = vpop.f32.mrb[0].mxu0
      %3230 = vmatprep.mubr.f32.mxu0 %v2073
      %3231 = vmatmul.mubr.f32.gmra.mrb[0].mxu0 %v1885
      %v3232 = vpop.f32.mrb[0].mxu0
      %v3233 = vadd.f32 %v3008, %v3232
      %v3234 = vpop.f32.mrb[0].mxu0
      %3235 = vmatprep.mubr.f32.mxu0 %v2076
      %3236 = vmatmul.mubr.f32.gmra.mrb[0].mxu0 %v1967
      %v3237 = vpop.f32.mrb[0].mxu0
      %v3238 = vadd.f32 %v3013, %v3237
      %v3239 = vpop.f32.mrb[0].mxu0
      %3240 = vmatprep.mubr.f32.mxu0 %v2078
      %3241 = vmatmul.mubr.f32.gmra.mrb[0].mxu0 %v1888
      %v3242 = vpop.f32.mrb[0].mxu0
      %v3243 = vadd.f32 %v3018, %v3242
      %v3244 = vpop.f32.mrb[0].mxu0
      %3245 = vmatprep.mubr.f32.mxu0 %v2081
      %3246 = vmatmul.mubr.f32.gmra.mrb[0].mxu0 %v1968
      %v3247 = vpop.f32.mrb[0].mxu0
      %v3248 = vadd.f32 %v3023, %v3247
      %v3249 = vpop.f32.mrb[0].mxu0
      %3250 = vmatprep.mubr.f32.mxu0 %v2083
      %3251 = vmatmul.mubr.f32.gmra.mrb[0].mxu0 %v1891
      %v3252 = vpop.f32.mrb[0].mxu0
      %v3253 = vadd.f32 %v3028, %v3252
      %v3254 = vpop.f32.mrb[0].mxu0
      %3255 = vmatprep.mubr.f32.mxu0 %v2086
      %3256 = vmatmul.mubr.f32.gmra.mrb[0].mxu0 %v1969
      %v3257 = vpop.f32.mrb[0].mxu0
      %v3258 = vadd.f32 %v3033, %v3257
      %v3259 = vpop.f32.mrb[0].mxu0
      %3260 = vmatprep.mubr.f32.mxu0 %v2088
      %3261 = vmatmul.mubr.f32.gmra.mrb[0].mxu0 %v1894
      %v3262 = vpop.f32.mrb[0].mxu0
      %v3263 = vadd.f32 %v3038, %v3262
      %v3264 = vpop.f32.mrb[0].mxu0
      %3265 = vmatprep.mubr.f32.mxu0 %v2091
      %3266 = vmatmul.mubr.f32.gmra.mrb[0].mxu0 %v1970
      %v3267 = vpop.f32.mrb[0].mxu0
      %v3268 = vadd.f32 %v3043, %v3267
      %v3269 = vpop.f32.mrb[0].mxu0
      %3270 = vmatprep.mubr.f32.mxu0 %v2093
      %3271 = vmatmul.mubr.f32.gmra.mrb[0].mxu0 %v1897
      %v3272 = vpop.f32.mrb[0].mxu0
      %v3273 = vadd.f32 %v3048, %v3272
      %v3274 = vpop.f32.mrb[0].mxu0
      %3275 = vmatprep.mubr.f32.mxu0 %v2096
      %3276 = vmatmul.mubr.f32.gmra.mrb[0].mxu0 %v1971
      %v3277 = vpop.f32.mrb[0].mxu0
      %v3278 = vadd.f32 %v3053, %v3277
      %v3279 = vpop.f32.mrb[0].mxu0
      %3280 = vmatprep.mubr.f32.mxu0 %v2098
      %3281 = vmatmul.mubr.f32.gmra.mrb[0].mxu0 %v1900
      %v3282 = vpop.f32.mrb[0].mxu0
      %v3283 = vadd.f32 %v3058, %v3282
      %v3284 = vpop.f32.mrb[0].mxu0
      %3285 = vmatprep.mubr.f32.mxu0 %v2101
      %3286 = vmatmul.mubr.f32.gmra.mrb[0].mxu0 %v1972
      %v3287 = vpop.f32.mrb[0].mxu0
      %v3288 = vadd.f32 %v3063, %v3287
      %v3289 = vpop.f32.mrb[0].mxu0
      %3290 = vmatprep.mubr.f32.mxu0 %v2103
      %3291 = vmatmul.mubr.f32.gmra.mrb[0].mxu0 %v1903
      %v3292 = vpop.f32.mrb[0].mxu0
      %v3293 = vadd.f32 %v3068, %v3292
      %v3294 = vpop.f32.mrb[0].mxu0
      %3295 = vmatprep.mubr.f32.mxu0 %v2253
      %3296 = vmatmul.mubr.f32.gmra.mrb[0].mxu0 %v1973
      %v3297 = vpop.f32.mrb[0].mxu0
      %v3298 = vadd.f32 %v3073, %v3297
      %v3299 = vpop.f32.mrb[0].mxu0
      %3300 = vmatprep.mubr.f32.mxu0 %v2255
      %3301 = vmatmul.mubr.f32.gmra.mrb[0].mxu0 %v1906
      %v3302 = vpop.f32.mrb[0].mxu0
      %v3303 = vadd.f32 %v3078, %v3302
      %v3304 = vpop.f32.mrb[0].mxu0
      %3305 = vmatprep.mubr.f32.mxu0 %v2026
      %3306 = vmatmul.mubr.f32.gmra.mrb[0].mxu0 %v1957
      %v3307 = vpop.f32.mrb[0].mxu0
      %v3308 = vadd.f32 %v3083, %v3307
      %v3309 = vpop.f32.mrb[0].mxu0
      %3310 = vmatprep.mubr.f32.mxu0 %v2028
      %3311 = vmatmul.mubr.f32.gmra.mrb[0].mxu0 %v1858
      %v3312 = vpop.f32.mrb[0].mxu0
      %v3313 = vadd.f32 %v3088, %v3312
      %v3314 = vpop.f32.mrb[0].mxu0
      %3315 = vdwg.mxu0
      %3316 = vmatprep.subr.mxu0 0.0
      %3317 = vmatpush1.msra.mxu0 %v2393
      %3318 = vmatprep.subr.mxu0 0.0
      %3319 = vmatpush1.msra.mxu0 %v2394
      %3320 = vmatprep.subr.mxu0 0.0
      %3321 = vmatpush1.msra.mxu0 %v2395
      %3322 = vmatprep.subr.mxu0 0.0
      %3323 = vmatpush1.msra.mxu0 %v2396
      %3324 = vmatprep.subr.mxu0 0.0
      %3325 = vmatpush1.msra.mxu0 %v2397
      %3326 = vmatprep.subr.mxu0 0.0
      %3327 = vmatpush1.msra.mxu0 %v2398
      %3328 = vmatprep.subr.mxu0 0.0
      %3329 = vmatpush1.msra.mxu0 %v2399
      %3330 = vmatprep.subr.mxu0 0.0
      %3331 = vmatpush1.msra.mxu0 %v2400
      %3332 = vmatprep.subr.mxu0 0.0
      %3333 = vmatpush1.msra.mxu0 %v2401
      %3334 = vmatprep.subr.mxu0 0.0
      %3335 = vmatpush1.msra.mxu0 %v2402
      %3336 = vmatprep.subr.mxu0 0.0
      %3337 = vmatpush1.msra.mxu0 %v2403
      %3338 = vmatprep.subr.mxu0 0.0
      %3339 = vmatpush1.msra.mxu0 %v2404
      %3340 = vmatprep.subr.mxu0 0.0
      %3341 = vmatpush1.msra.mxu0 %v2405
      %3342 = vmatprep.subr.mxu0 0.0
      %3343 = vmatpush1.msra.mxu0 %v2406
      %3344 = vmatprep.subr.mxu0 0.0
      %3345 = vmatpush1.msra.mxu0 %v2407
      %3346 = vmatprep.subr.mxu0 0.0
      %3347 = vmatpush1.msra.mxu0 %v2408
      %3348 = vmatprep.subr.mxu0 0.0
      %3349 = vmatpush1.msra.mxu0 0.0
      %3350 = vmatprep.subr.mxu0 0.0
      %3351 = vmatpush1.msra.mxu0 0.0
      %3352 = vmatprep.subr.mxu0 0.0
      %3353 = vmatpush1.msra.mxu0 0.0
      %3354 = vmatprep.subr.mxu0 0.0
      %3355 = vmatpush1.msra.mxu0 0.0
      %3356 = vmatprep.subr.mxu0 0.0
      %3357 = vmatpush1.msra.mxu0 0.0
      %3358 = vmatprep.subr.mxu0 0.0
      %3359 = vmatpush1.msra.mxu0 0.0
      %3360 = vmatprep.subr.mxu0 0.0
      %3361 = vmatpush1.msra.mxu0 0.0
      %3362 = vmatprep.subr.mxu0 0.0
      %3363 = vmatpush1.msra.mxu0 0.0
      %3364 = vmatprep.subr.mxu0 0.0
      %3365 = vmatpush1.msra.mxu0 0.0
      %3366 = vmatprep.subr.mxu0 0.0
      %3367 = vmatpush1.msra.mxu0 0.0
      %3368 = vmatprep.subr.mxu0 0.0
      %3369 = vmatpush1.msra.mxu0 0.0
      %3370 = vmatprep.subr.mxu0 0.0
      %3371 = vmatpush1.msra.mxu0 0.0
      %3372 = vmatprep.subr.mxu0 0.0
      %3373 = vmatpush1.msra.mxu0 0.0
      %3374 = vmatprep.subr.mxu0 0.0
      %3375 = vmatpush1.msra.mxu0 0.0
      %3376 = vmatprep.subr.mxu0 0.0
      %3377 = vmatpush1.msra.mxu0 0.0
      %3378 = vmatprep.subr.mxu0 0.0
      %3379 = vmatpush1.msra.mxu0 0.0
      %3380 = vmatprep.mubr.f32.mxu0 0.0
      %3381 = vmatmul.mubr.f32.gmra.mrb[0].mxu0 %v2149
      %v3382 = vpop.f32.mrb[0].mxu0
      %v3383 = vadd.f32 %v3158, %v3382
      %v3384 = vpop.f32.mrb[0].mxu0
      %3385 = vmatprep.mubr.f32.mxu0 0.0
      %3386 = vmatmul.mubr.f32.gmra.mrb[0].mxu0 %v2151
      %v3387 = vpop.f32.mrb[0].mxu0
      %v3388 = vadd.f32 %v3163, %v3387
      %v3389 = vpop.f32.mrb[0].mxu0
      %3390 = vmatprep.mubr.f32.mxu0 0.0
      %3391 = vmatmul.mubr.f32.gmra.mrb[0].mxu0 %v2154
      %v3392 = vpop.f32.mrb[0].mxu0
      %v3393 = vadd.f32 %v3168, %v3392
      %v3394 = vpop.f32.mrb[0].mxu0
      %3395 = vmatprep.mubr.f32.mxu0 0.0
      %3396 = vmatmul.mubr.f32.gmra.mrb[0].mxu0 %v2156
      %v3397 = vpop.f32.mrb[0].mxu0
      %v3398 = vadd.f32 %v3173, %v3397
      %v3399 = vpop.f32.mrb[0].mxu0
      %3400 = vmatprep.mubr.f32.mxu0 0.0
      %3401 = vmatmul.mubr.f32.gmra.mrb[0].mxu0 %v2159
      %v3402 = vpop.f32.mrb[0].mxu0
      %v3403 = vadd.f32 %v3178, %v3402
      %v3404 = vpop.f32.mrb[0].mxu0
      %3405 = vmatprep.mubr.f32.mxu0 0.0
      %3406 = vmatmul.mubr.f32.gmra.mrb[0].mxu0 %v2161
      %v3407 = vpop.f32.mrb[0].mxu0
      %v3408 = vadd.f32 %v3183, %v3407
      %v3409 = vpop.f32.mrb[0].mxu0
      %3410 = vmatprep.mubr.f32.mxu0 0.0
      %3411 = vmatmul.mubr.f32.gmra.mrb[0].mxu0 %v2164
      %v3412 = vpop.f32.mrb[0].mxu0
      %v3413 = vadd.f32 %v3188, %v3412
      %v3414 = vpop.f32.mrb[0].mxu0
      %3415 = vmatprep.mubr.f32.mxu0 0.0
      %3416 = vmatmul.mubr.f32.gmra.mrb[0].mxu0 %v2166
      %v3417 = vpop.f32.mrb[0].mxu0
      %v3418 = vadd.f32 %v3193, %v3417
      %v3419 = vpop.f32.mrb[0].mxu0
      %3420 = vmatprep.mubr.f32.mxu0 0.0
      %3421 = vmatmul.mubr.f32.gmra.mrb[0].mxu0 %v2169
      %v3422 = vpop.f32.mrb[0].mxu0
      %v3423 = vadd.f32 %v3198, %v3422
      %v3424 = vpop.f32.mrb[0].mxu0
      %3425 = vmatprep.mubr.f32.mxu0 0.0
      %3426 = vmatmul.mubr.f32.gmra.mrb[0].mxu0 %v2171
      %v3427 = vpop.f32.mrb[0].mxu0
      %v3428 = vadd.f32 %v3203, %v3427
      %v3429 = vpop.f32.mrb[0].mxu0
      %3430 = vmatprep.mubr.f32.mxu0 0.0
      %3431 = vmatmul.mubr.f32.gmra.mrb[0].mxu0 %v2174
      %v3432 = vpop.f32.mrb[0].mxu0
      %v3433 = vadd.f32 %v3208, %v3432
      %v3434 = vpop.f32.mrb[0].mxu0
      %3435 = vmatprep.mubr.f32.mxu0 0.0
      %3436 = vmatmul.mubr.f32.gmra.mrb[0].mxu0 %v2176
      %v3437 = vpop.f32.mrb[0].mxu0
      %v3438 = vadd.f32 %v3213, %v3437
      %v3439 = vpop.f32.mrb[0].mxu0
      %3440 = vmatprep.mubr.f32.mxu0 0.0
      %3441 = vmatmul.mubr.f32.gmra.mrb[0].mxu0 %v2179
      %v3442 = vpop.f32.mrb[0].mxu0
      %v3443 = vadd.f32 %v3218, %v3442
      %v3444 = vpop.f32.mrb[0].mxu0
      %3445 = vmatprep.mubr.f32.mxu0 0.0
      %3446 = vmatmul.mubr.f32.gmra.mrb[0].mxu0 %v2181
      %v3447 = vpop.f32.mrb[0].mxu0
      %v3448 = vadd.f32 %v3223, %v3447
      %v3449 = vpop.f32.mrb[0].mxu0
      %3450 = vmatprep.mubr.f32.mxu0 0.0
      %3451 = vmatmul.mubr.f32.gmra.mrb[0].mxu0 %v2184
      %v3452 = vpop.f32.mrb[0].mxu0
      %v3453 = vadd.f32 %v3228, %v3452
      %v3454 = vpop.f32.mrb[0].mxu0
      %3455 = vmatprep.mubr.f32.mxu0 0.0
      %3456 = vmatmul.mubr.f32.gmra.mrb[0].mxu0 %v2186
      %v3457 = vpop.f32.mrb[0].mxu0
      %v3458 = vadd.f32 %v3233, %v3457
      %v3459 = vpop.f32.mrb[0].mxu0
      %3460 = vmatprep.mubr.f32.mxu0 0.0
      %3461 = vmatmul.mubr.f32.gmra.mrb[0].mxu0 %v2189
      %v3462 = vpop.f32.mrb[0].mxu0
      %v3463 = vadd.f32 %v3238, %v3462
      %v3464 = vpop.f32.mrb[0].mxu0
      %3465 = vmatprep.mubr.f32.mxu0 0.0
      %3466 = vmatmul.mubr.f32.gmra.mrb[0].mxu0 %v2191
      %v3467 = vpop.f32.mrb[0].mxu0
      %v3468 = vadd.f32 %v3243, %v3467
      %v3469 = vpop.f32.mrb[0].mxu0
      %3470 = vmatprep.mubr.f32.mxu0 0.0
      %3471 = vmatmul.mubr.f32.gmra.mrb[0].mxu0 %v2194
      %v3472 = vpop.f32.mrb[0].mxu0
      %v3473 = vadd.f32 %v3248, %v3472
      %v3474 = vpop.f32.mrb[0].mxu0
      %3475 = vmatprep.mubr.f32.mxu0 0.0
      %3476 = vmatmul.mubr.f32.gmra.mrb[0].mxu0 %v2196
      %v3477 = vpop.f32.mrb[0].mxu0
      %v3478 = vadd.f32 %v3253, %v3477
      %v3479 = vpop.f32.mrb[0].mxu0
      %3480 = vmatprep.mubr.f32.mxu0 0.0
      %3481 = vmatmul.mubr.f32.gmra.mrb[0].mxu0 %v2199
      %v3482 = vpop.f32.mrb[0].mxu0
      %v3483 = vadd.f32 %v3258, %v3482
      %v3484 = vpop.f32.mrb[0].mxu0
      %3485 = vmatprep.mubr.f32.mxu0 0.0
      %3486 = vmatmul.mubr.f32.gmra.mrb[0].mxu0 %v2201
      %v3487 = vpop.f32.mrb[0].mxu0
      %v3488 = vadd.f32 %v3263, %v3487
      %v3489 = vpop.f32.mrb[0].mxu0
      %3490 = vmatprep.mubr.f32.mxu0 0.0
      %3491 = vmatmul.mubr.f32.gmra.mrb[0].mxu0 %v2204
      %v3492 = vpop.f32.mrb[0].mxu0
      %v3493 = vadd.f32 %v3268, %v3492
      %v3494 = vpop.f32.mrb[0].mxu0
      %3495 = vmatprep.mubr.f32.mxu0 0.0
      %3496 = vmatmul.mubr.f32.gmra.mrb[0].mxu0 %v2206
      %v3497 = vpop.f32.mrb[0].mxu0
      %v3498 = vadd.f32 %v3273, %v3497
      %v3499 = vpop.f32.mrb[0].mxu0
      %3500 = vmatprep.mubr.f32.mxu0 0.0
      %3501 = vmatmul.mubr.f32.gmra.mrb[0].mxu0 %v2209
      %v3502 = vpop.f32.mrb[0].mxu0
      %v3503 = vadd.f32 %v3278, %v3502
      %v3504 = vpop.f32.mrb[0].mxu0
      %3505 = vmatprep.mubr.f32.mxu0 0.0
      %3506 = vmatmul.mubr.f32.gmra.mrb[0].mxu0 %v2211
      %v3507 = vpop.f32.mrb[0].mxu0
      %v3508 = vadd.f32 %v3283, %v3507
      %v3509 = vpop.f32.mrb[0].mxu0
      %3510 = vmatprep.mubr.f32.mxu0 0.0
      %3511 = vmatmul.mubr.f32.gmra.mrb[0].mxu0 %v2214
      %v3512 = vpop.f32.mrb[0].mxu0
      %v3513 = vadd.f32 %v3288, %v3512
      %v3514 = vpop.f32.mrb[0].mxu0
      %3515 = vmatprep.mubr.f32.mxu0 0.0
      %3516 = vmatmul.mubr.f32.gmra.mrb[0].mxu0 %v2216
      %v3517 = vpop.f32.mrb[0].mxu0
      %v3518 = vadd.f32 %v3293, %v3517
      %v3519 = vpop.f32.mrb[0].mxu0
      %3520 = vmatprep.mubr.f32.mxu0 0.0
      %3521 = vmatmul.mubr.f32.gmra.mrb[0].mxu0 %v2260
      %v3522 = vpop.f32.mrb[0].mxu0
      %v3523 = vadd.f32 %v3298, %v3522
      %v3524 = vpop.f32.mrb[0].mxu0
      %3525 = vmatprep.mubr.f32.mxu0 0.0
      %3526 = vmatmul.mubr.f32.gmra.mrb[0].mxu0 %v2262
      %v3527 = vpop.f32.mrb[0].mxu0
      %v3528 = vadd.f32 %v3303, %v3527
      %v3529 = vpop.f32.mrb[0].mxu0
      %3530 = vmatprep.mubr.f32.mxu0 0.0
      %3531 = vmatmul.mubr.f32.gmra.mrb[0].mxu0 %v2139
      %v3532 = vpop.f32.mrb[0].mxu0
      %v3533 = vadd.f32 %v3308, %v3532
      %v3534 = vpop.f32.mrb[0].mxu0
      %3535 = vmatprep.mubr.f32.mxu0 0.0
      %3536 = vmatmul.mubr.f32.gmra.mrb[0].mxu0 %v2141
      %v3537 = vpop.f32.mrb[0].mxu0
      %v3538 = vadd.f32 %v3313, %v3537
      %v3539 = vpop.f32.mrb[0].mxu0
      %3540 = vdwg.mxu0
      %v3541 = vadd.f32 %v3383, %v354
      %v3542 = vadd.f32 %v3388, %v355
      %v3543 = vadd.f32 %v3393, %v356
      %v3544 = vadd.f32 %v3398, %v357
      %v3545 = vadd.f32 %v3403, %v358
      %v3546 = vadd.f32 %v3408, %v359
      %v3547 = vadd.f32 %v3413, %v360
      %v3548 = vadd.f32 %v3418, %v361
      %v3549 = vadd.f32 %v3423, %v362
      %v3550 = vadd.f32 %v3428, %v363
      %v3551 = vadd.f32 %v3433, %v364
      %v3552 = vadd.f32 %v3438, %v365
      %v3553 = vadd.f32 %v3443, %v366
      %v3554 = vadd.f32 %v3448, %v367
      %v3555 = vadd.f32 %v3453, %v368
      %v3556 = vadd.f32 %v3458, %v369
      %v3557 = vadd.f32 %v3463, %v370
      %v3558 = vadd.f32 %v3468, %v371
      %v3559 = vadd.f32 %v3473, %v372
      %v3560 = vadd.f32 %v3478, %v373
      %v3561 = vadd.f32 %v3483, %v374
      %v3562 = vadd.f32 %v3488, %v375
      %v3563 = vadd.f32 %v3493, %v376
      %v3564 = vadd.f32 %v3498, %v377
      %v3565 = vadd.f32 %v3503, %v378
      %v3566 = vadd.f32 %v3508, %v379
      %v3567 = vadd.f32 %v3513, %v380
      %v3568 = vadd.f32 %v3518, %v381
      %v3569 = vadd.f32 %v3523, %v382
      %v3570 = vadd.f32 %v3528, %v383
      %v3571 = vadd.f32 %v3533, %v384
      %v3572 = vadd.f32 %v3538, %v385
      %3573 = vst [vmem:[%s224] sm:$0xff] %v3541
      %3574 = vst [vmem:[%s224 + $0x8] sm:$0xff] %v3542
      %3575 = vst [vmem:[%s224 + $0x10] sm:$0xff] %v3543
      %3576 = vst [vmem:[%s224 + $0x18] sm:$0xff] %v3544
      %3577 = vst [vmem:[%s224 + $0x20] sm:$0xff] %v3545
      %3578 = vst [vmem:[%s224 + $0x28] sm:$0xff] %v3546
      %3579 = vst [vmem:[%s224 + $0x30] sm:$0xff] %v3547
      %3580 = vst [vmem:[%s224 + $0x38] sm:$0xff] %v3548
      %3581 = vst [vmem:[%s224 + $0x40] sm:$0xff] %v3549
      %3582 = vst [vmem:[%s224 + $0x48] sm:$0xff] %v3550
      %3583 = vst [vmem:[%s224 + $0x50] sm:$0xff] %v3551
      %3584 = vst [vmem:[%s224 + $0x58] sm:$0xff] %v3552
      %3585 = vst [vmem:[%s224 + $0x60] sm:$0xff] %v3553
      %3586 = vst [vmem:[%s224 + $0x68] sm:$0xff] %v3554
      %3587 = vst [vmem:[%s224 + $0x70] sm:$0xff] %v3555
      %3588 = vst [vmem:[%s224 + $0x78] sm:$0xff] %v3556
      %3589 = vst [vmem:[%s224 + $0x80] sm:$0xff] %v3557
      %3590 = vst [vmem:[%s224 + $0x88] sm:$0xff] %v3558
      %3591 = vst [vmem:[%s224 + $0x90] sm:$0xff] %v3559
      %3592 = vst [vmem:[%s224 + $0x98] sm:$0xff] %v3560
      %3593 = vst [vmem:[%s224 + $0xa0] sm:$0xff] %v3561
      %3594 = vst [vmem:[%s224 + $0xa8] sm:$0xff] %v3562
      %3595 = vst [vmem:[%s224 + $0xb0] sm:$0xff] %v3563
      %3596 = vst [vmem:[%s224 + $0xb8] sm:$0xff] %v3564
      %3597 = vst [vmem:[%s224 + $0xc0] sm:$0xff] %v3565
      %3598 = vst [vmem:[%s224 + $0xc8] sm:$0xff] %v3566
      %3599 = vst [vmem:[%s224 + $0xd0] sm:$0xff] %v3567
      %3600 = vst [vmem:[%s224 + $0xd8] sm:$0xff] %v3568
      %3601 = vst [vmem:[%s224 + $0xe0] sm:$0xff] %v3569
      %3602 = vst [vmem:[%s224 + $0xe8] sm:$0xff] %v3570
      %3603 = vst [vmem:[%s224 + $0xf0] sm:$0xff] %v3571
      %3604 = vst [vmem:[%s224 + $0xf8] sm:$0xff] %v3572
      %p3605 = scmp.lt.s32.totalorder %s16, 1
      %s3606 = scalar_select %p3605, %s16, 1
      %s3607 = smul.addr %s3606, 32
      %s3608 = smul.addr %s3607, 8
      %s3609 = scalar_lea.vmem %s5, %s3608
      // Predicated region
      $region41: #{residual_block.1} parent=39 // pred_check
        %p3610 = pneg %p144
      $region42: #{residual_block.1} parent=39 // pred_check_branch
        %3612 = sbr.rel (%p3610) target = $region44
      $region43: #{residual_block.1} parent=39 // pred_region
        _
      $region44: #{residual_block.1} parent=39 // pred_fallthru
        _
    $region40: #{residual_block.1} parent=5 // pred_fallthru
      _
    %p3613 = scmp.le.s32.totalorder 2, %s11
    // Predicated region
    $region45: #{residual_block.1} parent=5 // pred_check
      %p3614 = pneg %p3613
    $region46: #{residual_block.1} parent=5 // pred_check_branch
      %3616 = sbr.rel (%p3614) target = $region48
    $region47: #{residual_block.1} parent=5 // pred_region
      %s3617 = ssub.s32 %s11, 2
      // Predicated region
      $region49: #{residual_block.1} parent=47 // pred_check
        %p3618 = pneg %p150
      $region50: #{residual_block.1} parent=47 // pred_check_branch
        %3620 = sbr.rel (%p3618) target = $region52
      $region51: #{residual_block.1} parent=47 // pred_region
        %p3621 = scmp.lt.s32.totalorder %s17, 1
        %s3622 = scalar_select %p3621, %s17, 1
        %s3623 = smul.addr %s3622, 32
        %s3624 = smul.addr %s3623, 8
        %s3625 = scalar_lea.vmem %s5, %s3624
      $region52: #{residual_block.1} parent=47 // pred_fallthru
        _
    $region48: #{residual_block.1} parent=5 // pred_fallthru
      _
  $region6: #{residual_block.1} parent=0 // loop_footer
    %s15 = sadd.s32 1, %s11
  $region7: #{residual_block.1} parent=0 // loop_footer_branch
    %10 = sbr.rel target = $region3
  $region8: #{residual_block.1} parent=0 // loop_exit
    _

</llo_original>
